<compile_context>
chip_gen: v5e
topology: v5e:2x2
jax: 0.10.0
libtpu: 0.0.40
codegen_flags: <defaults>
</compile_context>

<pallas_src>
import functools

import jax
import jax.numpy as jnp
from jax import lax
from jax.experimental import pallas as pl
from jax.experimental.pallas import tpu as pltpu

BN_EPS = 1e-5


def _round_up(x, m):
    return (x + m - 1) // m * m


def _pick_batch_tile(b):
    # Prefer the largest tile that divides B (bigger tiles amortize the ~0.35us/step grid
    # overhead and keep MXU M-runs long).  Otherwise pick a tile that bounds padding waste.
    for cand in (512, 256, 128, 64, 32, 16):
        if b % cand == 0:
            return cand
    for cand in (512, 256, 128, 64, 32, 16):
        if b >= 4 * cand:
            return cand
    return 16


def _widedeep_kernel(deep_ref, xi_ref,
                     w1_ref, g1_ref, be1_ref,
                     w2_ref, g2_ref, be2_ref,
                     w3_ref, b3_ref, ww_ref, bw_ref,
                     out_ref,
                     h1_all, h2_all,
                     s1_ref, q1_ref, s2_ref, q2_ref,
                     *, batch_rows, tile_rows, mask_tail):
    phase = pl.program_id(0)
    t = pl.program_id(1)
    inv_b = 1.0 / float(batch_rows)   # true batch size, not the padded one

    # ---- init accumulators (once) ----
    @pl.when((phase == 0) & (t == 0))
    def _init():
        s1_ref[...] = jnp.zeros_like(s1_ref)
        q1_ref[...] = jnp.zeros_like(q1_ref)
        s2_ref[...] = jnp.zeros_like(s2_ref)
        q2_ref[...] = jnp.zeros_like(q2_ref)

    # ---- phase 0: first linear layer (bias-free: BN absorbs it) + BN1 partial sums ----
    @pl.when(phase == 0)
    def _phase0():
        x = deep_ref[...]                                            # [tb, D_in] bf16
        mm1 = jnp.dot(x, w1_ref[...], preferred_element_type=jnp.float32)
        h1_all[t] = mm1.astype(jnp.bfloat16)
        # Zero-padded tail rows of deep_x contribute exactly 0 to these sums.
        s1_ref[...] += jnp.sum(mm1, axis=0, keepdims=True)
        q1_ref[...] += jnp.sum(mm1 * mm1, axis=0, keepdims=True)

    # ---- finalize BN1 stats (one-pass variance, clamped); reuse s1/q1 as scale/shift ----
    @pl.when((phase == 1) & (t == 0))
    def _finalize_bn1():
        mean = s1_ref[...] * inv_b
        var = jnp.maximum(q1_ref[...] * inv_b - mean * mean, 0.0)
        scale = g1_ref[...] * lax.rsqrt(var + BN_EPS)
        s1_ref[...] = scale
        q1_ref[...] = be1_ref[...] - mean * scale

    # ---- phase 1: bn1 + relu, second linear layer (bias-free), BN2 partial sums ----
    @pl.when(phase == 1)
    def _phase1():
        a1 = jnp.maximum(h1_all[t].astype(jnp.float32) * s1_ref[...] + q1_ref[...], 0.0)
        if mask_tail:
            # Padded tail rows would otherwise contribute relu(shift1) to the BN2 sums.
            nvalid = jnp.minimum(batch_rows - t * tile_rows, tile_rows)
            rows = lax.broadcasted_iota(jnp.int32, a1.shape, 0)
            a1 = jnp.where(rows < nvalid, a1, 0.0)
        mm2 = jnp.dot(a1.astype(jnp.bfloat16), w2_ref[...],
                      preferred_element_type=jnp.float32)
        h2_all[t] = mm2.astype(jnp.bfloat16)
        s2_ref[...] += jnp.sum(mm2, axis=0, keepdims=True)
        q2_ref[...] += jnp.sum(mm2 * mm2, axis=0, keepdims=True)

    # ---- finalize BN2 stats; reuse s2/q2 as scale/shift ----
    @pl.when((phase == 2) & (t == 0))
    def _finalize_bn2():
        mean = s2_ref[...] * inv_b
        var = jnp.maximum(q2_ref[...] * inv_b - mean * mean, 0.0)
        scale = g2_ref[...] * lax.rsqrt(var + BN_EPS)
        s2_ref[...] = scale
        q2_ref[...] = be2_ref[...] - mean * scale

    # ---- phase 2: bn2 + relu, width-1 heads on the VPU, combine + sigmoid ----
    @pl.when(phase == 2)
    def _phase2():
        a2 = jnp.maximum(h2_all[t].astype(jnp.float32) * s2_ref[...] + q2_ref[...], 0.0)
        deep = jnp.sum(a2 * w3_ref[...], axis=-1, keepdims=True) + b3_ref[...]
        xi = xi_ref[...]                                             # [tb, n_cont] f32
        wide = jnp.sum(xi * ww_ref[...], axis=-1, keepdims=True) + bw_ref[...]
        out_ref[...] = jax.nn.sigmoid(0.5 * (wide + deep))


def widedeep_forward(xi, xv, params):
    """xi: [B, n_cont] f32, xv: [B, n_cat] i32.  Returns sigmoid(0.5*wide + 0.5*deep), [B,1] f32."""
    # Glue: embedding lookups + concat, cast to bf16 (fused by XLA) -> half-width HBM stream.
    embed_outs = [jnp.take(emb, xv[:, i], axis=0).astype(jnp.bfloat16)
                  for i, emb in enumerate(params["embeddings"])]
    deep_x = jnp.concatenate([xi.astype(jnp.bfloat16)] + embed_outs, axis=1)   # [B, D_in] bf16
    B, d_in = deep_x.shape
    n_cont = xi.shape[1]

    h1 = params["w1"].shape[1]
    h2 = params["w2"].shape[1]

    tile_b = _pick_batch_tile(B)
    b_pad = _round_up(B, tile_b)
    xi_in = xi.astype(jnp.float32)
    if b_pad != B:
        deep_x = jnp.pad(deep_x, ((0, b_pad - B), (0, 0)))   # zero rows -> zero BN1 contribution
        xi_in = jnp.pad(xi_in, ((0, b_pad - B), (0, 0)))
    n_tiles = b_pad // tile_b
    last = n_tiles - 1

    # Weights: bf16 MXU operands for the big matmuls; head weights stay f32 (VPU math).
    w1 = params["w1"].astype(jnp.bfloat16)                    # [D_in, h1]
    w2 = params["w2"].astype(jnp.bfloat16)                    # [h1, h2]
    w3_row = params["w3"].T.astype(jnp.float32)               # [1, h2]
    ww_row = params["ww"].T.astype(jnp.float32)               # [1, n_cont]

    grid = (3, n_tiles)
    kernel = functools.partial(_widedeep_kernel, batch_rows=B, tile_rows=tile_b,
                               mask_tail=(b_pad != B))

    resident = lambda p, t: (0, 0)  # weights / biases stay resident across the grid
    in_specs = [
        # deep_x: cycled during phase 0; pinned to the LAST fetched block afterwards.
        pl.BlockSpec((tile_b, d_in), lambda p, t: (jnp.where(p == 0, t, last), 0)),
        # xi: only cycled during phase 2 (tiny DMA), pinned to block 0 otherwise.
        pl.BlockSpec((tile_b, n_cont), lambda p, t: (jnp.where(p == 2, t, 0), 0)),
        pl.BlockSpec((d_in, h1), resident),    # w1 (bf16)
        pl.BlockSpec((1, h1), resident),       # g1
        pl.BlockSpec((1, h1), resident),       # be1
        pl.BlockSpec((h1, h2), resident),      # w2 (bf16)
        pl.BlockSpec((1, h2), resident),       # g2
        pl.BlockSpec((1, h2), resident),       # be2
        pl.BlockSpec((1, h2), resident),       # w3 row
        pl.BlockSpec((1, 1), resident),        # b3
        pl.BlockSpec((1, n_cont), resident),   # ww row
        pl.BlockSpec((1, 1), resident),        # bw
    ]
    # Output block only cycles during phase 2.
    out_specs = pl.BlockSpec((tile_b, 1), lambda p, t: (jnp.where(p == 2, t, 0), 0))

    scratch_shapes = [
        pltpu.VMEM((n_tiles, tile_b, h1), jnp.bfloat16),   # mm1 for the whole batch (bf16)
        pltpu.VMEM((n_tiles, tile_b, h2), jnp.bfloat16),   # mm2 for the whole batch (bf16)
        pltpu.VMEM((1, h1), jnp.float32),                  # BN1 sum      -> scale
        pltpu.VMEM((1, h1), jnp.float32),                  # BN1 sum-sq   -> shift
        pltpu.VMEM((1, h2), jnp.float32),                  # BN2 sum      -> scale
        pltpu.VMEM((1, h2), jnp.float32),                  # BN2 sum-sq   -> shift
    ]

    # VMEM budget: bf16 batch scratch + double-buffered (lane-padded) I/O tiles + weights.
    scratch_bytes = b_pad * (h1 + h2) * 2 + 8 * (h1 + h2)
    io_bytes = 2 * (tile_b * 128 * 2          # deep_x tile (lanes pad to 128, bf16)
                    + tile_b * 128 * 4        # xi tile (lanes pad to 128, f32)
                    + tile_b * 128 * 4)       # out tile (lanes pad to 128, f32)
    weight_bytes = 2 * (w1.size * 2 + w2.size * 2
                        + 4 * (2 * h1 + 3 * h2 + n_cont + 2))
    need = scratch_bytes + io_bytes + weight_bytes + (8 << 20)
    try:
        cap = int(getattr(pltpu.get_tpu_info(), "vmem_capacity_bytes", 64 << 20))
    except Exception:  # pragma: no cover - conservative fallback
        cap = 64 << 20
    ceiling = max(cap - (8 << 20), 32 << 20)   # v5e/v6e ~120 MiB, v7x ~56 MiB
    vmem_limit = int(min(max(need, 32 << 20), ceiling))

    cost = pl.CostEstimate(
        flops=int(2 * b_pad * (d_in * h1 + h1 * h2 + h2 + n_cont)
                  + 10 * b_pad * (h1 + h2)),
        transcendentals=int(b_pad + h1 + h2),
        bytes_accessed=int(b_pad * d_in * 2 + b_pad * n_cont * 4 + b_pad * 4
                           + w1.size * 2 + w2.size * 2
                           + 4 * (2 * h1 + 3 * h2 + n_cont + 2)),
    )

    out = pl.pallas_call(
        kernel,
        out_shape=jax.ShapeDtypeStruct((b_pad, 1), jnp.float32),
        grid=grid,
        in_specs=in_specs,
        out_specs=out_specs,
        scratch_shapes=scratch_shapes,
        compiler_params=pltpu.CompilerParams(
            # Both axes are sequential: BN statistics are global over the batch, so the
            # batch-tile axis cannot be megacore-parallel without a cross-core combine
            # (see TODO for v7x).
            dimension_semantics=("arbitrary", "arbitrary"),
            vmem_limit_bytes=vmem_limit,
        ),
        cost_estimate=cost,
    )(deep_x, xi_in, w1,
      params["g1"], params["be1"],
      w2, params["g2"], params["be2"],
      w3_row, params["b3"], ww_row, params["bw"])

    if b_pad != B:
        out = out[:B]
    return out


def widedeep_reference(xi, xv, params):
    """Pure-JAX reference matching the PyTorch forward (training-mode BN)."""
    embed_outs = [jnp.take(emb, xv[:, i], axis=0)
                  for i, emb in enumerate(params["embeddings"])]
    deep_x = jnp.concatenate([xi] + embed_outs, axis=1)

    h = deep_x @ params["w1"] + params["b1"]
    m = h.mean(0, keepdims=True)
    v = ((h - m) ** 2).mean(0, keepdims=True)
    h = jnp.maximum((h - m) / jnp.sqrt(v + BN_EPS) * params["g1"] + params["be1"], 0.0)

    h = h @ params["w2"] + params["b2"]
    m = h.mean(0, keepdims=True)
    v = ((h - m) ** 2).mean(0, keepdims=True)
    h = jnp.maximum((h - m) / jnp.sqrt(v + BN_EPS) * params["g2"] + params["be2"], 0.0)

    deep = h @ params["w3"] + params["b3"]
    wide = xi @ params["ww"] + params["bw"]
    return jax.nn.sigmoid(0.5 * wide + 0.5 * deep)


def make_params(key, vocab_sizes, n_cont, embed_dim, hidden_dim):
    keys = jax.random.split(key, 16)
    d_in = len(vocab_sizes) * embed_dim + n_cont
    h1, h2 = hidden_dim

    def lin(k, fan_in, fan_out):
        kw, kb = jax.random.split(k)
        bound = 1.0 / jnp.sqrt(fan_in)
        w = jax.random.uniform(kw, (fan_in, fan_out), jnp.float32, -bound, bound)
        b = jax.random.uniform(kb, (1, fan_out), jnp.float32, -bound, bound)
        return w, b

    embeddings = [jax.random.normal(keys[i], (v, embed_dim), jnp.float32)
                  for i, v in enumerate(vocab_sizes)]
    w1, b1 = lin(keys[8], d_in, h1)
    w2, b2 = lin(keys[9], h1, h2)
    w3, b3 = lin(keys[10], h2, 1)
    ww, bw = lin(keys[11], n_cont, 1)

    return dict(
        embeddings=embeddings,
        w1=w1, b1=b1, g1=jnp.ones((1, h1), jnp.float32), be1=jnp.zeros((1, h1), jnp.float32),
        w2=w2, b2=b2, g2=jnp.ones((1, h2), jnp.float32), be2=jnp.zeros((1, h2), jnp.float32),
        w3=w3, b3=b3,
        ww=ww, bw=bw,
    )


if __name__ == "__main__":
    # Small, deterministic example consistent with the module's forward().
    B = 1024                             # 2 batch tiles of 512 -> exercises the tiled BN path
    vocab_sizes = [50, 30, 20]           # categorial_feature_vocabsize
    n_cont = 4                           # len(continous_feature_names)
    embed_dim = 10
    hidden_dim = [128, 128]

    key = jax.random.PRNGKey(0)
    k_params, k_xi, k_xv = jax.random.split(key, 3)

    params = make_params(k_params, vocab_sizes, n_cont, embed_dim, hidden_dim)
    xi = jax.random.normal(k_xi, (B, n_cont), jnp.float32)
    xv = jnp.stack(
        [jax.random.randint(jax.random.fold_in(k_xv, i), (B,), 0, v, jnp.int32)
         for i, v in enumerate(vocab_sizes)], axis=1)                # [B, n_cat] int32

    out = widedeep_forward(xi, xv, params)
    jax.block_until_ready(out)
    assert out.shape == (B, 1) and out.dtype == jnp.float32

    ref = widedeep_reference(xi, xv, params)
    max_err = float(jnp.max(jnp.abs(out - ref)))
    assert max_err < 5e-2, f"kernel mismatch vs reference: {max_err}"
    print("KERNEL_OK")
</pallas_src>

<mosaic_0001>
module attributes {stable_mosaic.version = 11 : i64} {
  func.func @_widedeep_kernel(%arg0: i32, %arg1: i32, %arg2: memref<512x34xbf16, #tpu.memory_space<vmem>>, %arg3: memref<512x4xf32, #tpu.memory_space<vmem>>, %arg4: memref<34x128xbf16, #tpu.memory_space<vmem>>, %arg5: memref<1x128xf32, #tpu.memory_space<vmem>>, %arg6: memref<1x128xf32, #tpu.memory_space<vmem>>, %arg7: memref<128x128xbf16, #tpu.memory_space<vmem>>, %arg8: memref<1x128xf32, #tpu.memory_space<vmem>>, %arg9: memref<1x128xf32, #tpu.memory_space<vmem>>, %arg10: memref<1x128xf32, #tpu.memory_space<vmem>>, %arg11: memref<1x1xf32, #tpu.memory_space<vmem>>, %arg12: memref<1x4xf32, #tpu.memory_space<vmem>>, %arg13: memref<1x1xf32, #tpu.memory_space<vmem>>, %arg14: memref<512x1xf32, #tpu.memory_space<vmem>>, %arg15: memref<2x512x128xbf16, #tpu.memory_space<vmem>>, %arg16: memref<2x512x128xbf16, #tpu.memory_space<vmem>>, %arg17: memref<1x128xf32, #tpu.memory_space<vmem>>, %arg18: memref<1x128xf32, #tpu.memory_space<vmem>>, %arg19: memref<1x128xf32, #tpu.memory_space<vmem>>, %arg20: memref<1x128xf32, #tpu.memory_space<vmem>>) attributes {dimension_semantics = [#tpu.dimension_semantics<arbitrary>, #tpu.dimension_semantics<arbitrary>], iteration_bounds = array<i64: 3, 2>, scalar_prefetch = 0 : i64, scratch_operands = 6 : i64, tpu.core_type = #tpu.core_type<tc>, window_params = [{transform_indices = @transform_0, window_bounds = array<i64: 512, 34>}, {transform_indices = @transform_1, window_bounds = array<i64: 512, 4>}, {pipeline_mode = #tpu.pipeline_mode<synchronous>, transform_indices = @transform_2, window_bounds = array<i64: 34, 128>}, {pipeline_mode = #tpu.pipeline_mode<synchronous>, transform_indices = @transform_3, window_bounds = array<i64: 1, 128>}, {pipeline_mode = #tpu.pipeline_mode<synchronous>, transform_indices = @transform_4, window_bounds = array<i64: 1, 128>}, {pipeline_mode = #tpu.pipeline_mode<synchronous>, transform_indices = @transform_5, window_bounds = array<i64: 128, 128>}, {pipeline_mode = #tpu.pipeline_mode<synchronous>, transform_indices = @transform_6, window_bounds = array<i64: 1, 128>}, {pipeline_mode = #tpu.pipeline_mode<synchronous>, transform_indices = @transform_7, window_bounds = array<i64: 1, 128>}, {pipeline_mode = #tpu.pipeline_mode<synchronous>, transform_indices = @transform_8, window_bounds = array<i64: 1, 128>}, {pipeline_mode = #tpu.pipeline_mode<synchronous>, transform_indices = @transform_9, window_bounds = array<i64: 1, 1>}, {pipeline_mode = #tpu.pipeline_mode<synchronous>, transform_indices = @transform_10, window_bounds = array<i64: 1, 4>}, {pipeline_mode = #tpu.pipeline_mode<synchronous>, transform_indices = @transform_11, window_bounds = array<i64: 1, 1>}, {transform_indices = @transform_12, window_bounds = array<i64: 512, 1>}]} {
    %c0_i32 = arith.constant 0 : i32
    %0 = arith.cmpi eq, %arg0, %c0_i32 : i32
    %c0_i32_0 = arith.constant 0 : i32
    %1 = arith.cmpi eq, %arg1, %c0_i32_0 : i32
    %2 = arith.andi %0, %1 : i1
    %3 = arith.extui %2 : i1 to i32
    %c0_i32_1 = arith.constant 0 : i32
    %4 = arith.cmpi ne, %3, %c0_i32_1 : i32
    scf.if %4 {
      %cst = arith.constant 0.000000e+00 : f32
      %24 = vector.broadcast %cst : f32 to vector<1x128xf32>
      %c0 = arith.constant 0 : index
      %c0_12 = arith.constant 0 : index
      %25 = vector.load %arg17[%c0, %c0_12] : memref<1x128xf32, #tpu.memory_space<vmem>>, vector<1x128xf32>
      tpu.vector_store %arg17[%c0, %c0_12], %24 {strides = array<i32>} : memref<1x128xf32, #tpu.memory_space<vmem>>, vector<1x128xf32>,
      %cst_13 = arith.constant 0.000000e+00 : f32
      %26 = vector.broadcast %cst_13 : f32 to vector<1x128xf32>
      %c0_14 = arith.constant 0 : index
      %c0_15 = arith.constant 0 : index
      %27 = vector.load %arg18[%c0_14, %c0_15] : memref<1x128xf32, #tpu.memory_space<vmem>>, vector<1x128xf32>
      tpu.vector_store %arg18[%c0_14, %c0_15], %26 {strides = array<i32>} : memref<1x128xf32, #tpu.memory_space<vmem>>, vector<1x128xf32>,
      %cst_16 = arith.constant 0.000000e+00 : f32
      %28 = vector.broadcast %cst_16 : f32 to vector<1x128xf32>
      %c0_17 = arith.constant 0 : index
      %c0_18 = arith.constant 0 : index
      %29 = vector.load %arg19[%c0_17, %c0_18] : memref<1x128xf32, #tpu.memory_space<vmem>>, vector<1x128xf32>
      tpu.vector_store %arg19[%c0_17, %c0_18], %28 {strides = array<i32>} : memref<1x128xf32, #tpu.memory_space<vmem>>, vector<1x128xf32>,
      %cst_19 = arith.constant 0.000000e+00 : f32
      %30 = vector.broadcast %cst_19 : f32 to vector<1x128xf32>
      %c0_20 = arith.constant 0 : index
      %c0_21 = arith.constant 0 : index
      %31 = vector.load %arg20[%c0_20, %c0_21] : memref<1x128xf32, #tpu.memory_space<vmem>>, vector<1x128xf32>
      tpu.vector_store %arg20[%c0_20, %c0_21], %30 {strides = array<i32>} : memref<1x128xf32, #tpu.memory_space<vmem>>, vector<1x128xf32>,
    } else {
    }
    %c0_i32_2 = arith.constant 0 : i32
    %5 = arith.cmpi eq, %arg0, %c0_i32_2 : i32
    %6 = arith.extui %5 : i1 to i32
    %c0_i32_3 = arith.constant 0 : i32
    %7 = arith.cmpi ne, %6, %c0_i32_3 : i32
    scf.if %7 {
      %c0 = arith.constant 0 : index
      %c0_12 = arith.constant 0 : index
      %24 = vector.load %arg2[%c0, %c0_12] : memref<512x34xbf16, #tpu.memory_space<vmem>>, vector<512x34xbf16>
      %c0_13 = arith.constant 0 : index
      %c0_14 = arith.constant 0 : index
      %25 = vector.load %arg4[%c0_13, %c0_14] : memref<34x128xbf16, #tpu.memory_space<vmem>>, vector<34x128xbf16>
      %cst = arith.constant dense<0.000000e+00> : vector<512x128xf32>
      %26 = tpu.matmul %24, %25, %cst {dimension_numbers = #tpu.dot_dimension_numbers<[1], [0], [0], [1], [0, 0, 1, 1], [], []>} : vector<512x34xbf16>, vector<34x128xbf16>, vector<512x128xf32> -> vector<512x128xf32>
      %27 = arith.truncf %26 : vector<512x128xf32> to vector<512x128xbf16>
      %28 = arith.index_cast %arg1 : i32 to index
      %c0_15 = arith.constant 0 : index
      %c0_16 = arith.constant 0 : index
      %29 = vector.load %arg15[%28, %c0_15, %c0_16] : memref<2x512x128xbf16, #tpu.memory_space<vmem>>, vector<1x512x128xbf16>
      %30 = vector.shape_cast %29 : vector<1x512x128xbf16> to vector<512x128xbf16>
      %31 = vector.shape_cast %27 : vector<512x128xbf16> to vector<1x512x128xbf16>
      tpu.vector_store %arg15[%28, %c0_15, %c0_16], %31 {strides = array<i32>} : memref<2x512x128xbf16, #tpu.memory_space<vmem>>, vector<1x512x128xbf16>,
      %c0_17 = arith.constant 0 : index
      %c0_18 = arith.constant 0 : index
      %32 = vector.load %arg17[%c0_17, %c0_18] : memref<1x128xf32, #tpu.memory_space<vmem>>, vector<1x128xf32>
      %cst_19 = arith.constant dense<0.000000e+00> : vector<128xf32>
      %33 = vector.multi_reduction <add>, %26, %cst_19 [0] : vector<512x128xf32> to vector<128xf32>
      %34 = vector.shape_cast %33 : vector<128xf32> to vector<1x128xf32>
      %35 = arith.addf %32, %34 : vector<1x128xf32>
      %c0_20 = arith.constant 0 : index
      %c0_21 = arith.constant 0 : index
      %36 = vector.load %arg17[%c0_20, %c0_21] : memref<1x128xf32, #tpu.memory_space<vmem>>, vector<1x128xf32>
      tpu.vector_store %arg17[%c0_20, %c0_21], %35 {strides = array<i32>} : memref<1x128xf32, #tpu.memory_space<vmem>>, vector<1x128xf32>,
      %c0_22 = arith.constant 0 : index
      %c0_23 = arith.constant 0 : index
      %37 = vector.load %arg18[%c0_22, %c0_23] : memref<1x128xf32, #tpu.memory_space<vmem>>, vector<1x128xf32>
      %38 = arith.mulf %26, %26 : vector<512x128xf32>
      %cst_24 = arith.constant dense<0.000000e+00> : vector<128xf32>
      %39 = vector.multi_reduction <add>, %38, %cst_24 [0] : vector<512x128xf32> to vector<128xf32>
      %40 = vector.shape_cast %39 : vector<128xf32> to vector<1x128xf32>
      %41 = arith.addf %37, %40 : vector<1x128xf32>
      %c0_25 = arith.constant 0 : index
      %c0_26 = arith.constant 0 : index
      %42 = vector.load %arg18[%c0_25, %c0_26] : memref<1x128xf32, #tpu.memory_space<vmem>>, vector<1x128xf32>
      tpu.vector_store %arg18[%c0_25, %c0_26], %41 {strides = array<i32>} : memref<1x128xf32, #tpu.memory_space<vmem>>, vector<1x128xf32>,
    } else {
    }
    %c1_i32 = arith.constant 1 : i32
    %8 = arith.cmpi eq, %arg0, %c1_i32 : i32
    %c0_i32_4 = arith.constant 0 : i32
    %9 = arith.cmpi eq, %arg1, %c0_i32_4 : i32
    %10 = arith.andi %8, %9 : i1
    %11 = arith.extui %10 : i1 to i32
    %c0_i32_5 = arith.constant 0 : i32
    %12 = arith.cmpi ne, %11, %c0_i32_5 : i32
    scf.if %12 {
      %c0 = arith.constant 0 : index
      %c0_12 = arith.constant 0 : index
      %24 = vector.load %arg17[%c0, %c0_12] : memref<1x128xf32, #tpu.memory_space<vmem>>, vector<1x128xf32>
      %cst = arith.constant 9.765625E-4 : f32
      %25 = vector.broadcast %cst : f32 to vector<1x128xf32>
      %26 = arith.mulf %24, %25 : vector<1x128xf32>
      %c0_13 = arith.constant 0 : index
      %c0_14 = arith.constant 0 : index
      %27 = vector.load %arg18[%c0_13, %c0_14] : memref<1x128xf32, #tpu.memory_space<vmem>>, vector<1x128xf32>
      %cst_15 = arith.constant 9.765625E-4 : f32
      %28 = vector.broadcast %cst_15 : f32 to vector<1x128xf32>
      %29 = arith.mulf %27, %28 : vector<1x128xf32>
      %30 = arith.mulf %26, %26 : vector<1x128xf32>
      %31 = arith.subf %29, %30 : vector<1x128xf32>
      %cst_16 = arith.constant 0.000000e+00 : f32
      %32 = vector.broadcast %cst_16 : f32 to vector<1x128xf32>
      %33 = arith.maximumf %31, %32 : vector<1x128xf32>
      %c0_17 = arith.constant 0 : index
      %c0_18 = arith.constant 0 : index
      %34 = vector.load %arg5[%c0_17, %c0_18] : memref<1x128xf32, #tpu.memory_space<vmem>>, vector<1x128xf32>
      %cst_19 = arith.constant 9.99999974E-6 : f32
      %35 = vector.broadcast %cst_19 : f32 to vector<1x128xf32>
      %36 = arith.addf %33, %35 : vector<1x128xf32>
      %37 = math.rsqrt %36 : vector<1x128xf32>
      %38 = arith.mulf %34, %37 : vector<1x128xf32>
      %c0_20 = arith.constant 0 : index
      %c0_21 = arith.constant 0 : index
      %39 = vector.load %arg17[%c0_20, %c0_21] : memref<1x128xf32, #tpu.memory_space<vmem>>, vector<1x128xf32>
      tpu.vector_store %arg17[%c0_20, %c0_21], %38 {strides = array<i32>} : memref<1x128xf32, #tpu.memory_space<vmem>>, vector<1x128xf32>,
      %c0_22 = arith.constant 0 : index
      %c0_23 = arith.constant 0 : index
      %40 = vector.load %arg6[%c0_22, %c0_23] : memref<1x128xf32, #tpu.memory_space<vmem>>, vector<1x128xf32>
      %41 = arith.mulf %26, %38 : vector<1x128xf32>
      %42 = arith.subf %40, %41 : vector<1x128xf32>
      %c0_24 = arith.constant 0 : index
      %c0_25 = arith.constant 0 : index
      %43 = vector.load %arg18[%c0_24, %c0_25] : memref<1x128xf32, #tpu.memory_space<vmem>>, vector<1x128xf32>
      tpu.vector_store %arg18[%c0_24, %c0_25], %42 {strides = array<i32>} : memref<1x128xf32, #tpu.memory_space<vmem>>, vector<1x128xf32>,
    } else {
    }
    %c1_i32_6 = arith.constant 1 : i32
    %13 = arith.cmpi eq, %arg0, %c1_i32_6 : i32
    %14 = arith.extui %13 : i1 to i32
    %c0_i32_7 = arith.constant 0 : i32
    %15 = arith.cmpi ne, %14, %c0_i32_7 : i32
    scf.if %15 {
      %24 = arith.index_cast %arg1 : i32 to index
      %c0 = arith.constant 0 : index
      %c0_12 = arith.constant 0 : index
      %25 = vector.load %arg15[%24, %c0, %c0_12] : memref<2x512x128xbf16, #tpu.memory_space<vmem>>, vector<1x512x128xbf16>
      %26 = vector.shape_cast %25 : vector<1x512x128xbf16> to vector<512x128xbf16>
      %27 = arith.extf %26 : vector<512x128xbf16> to vector<512x128xf32>
      %c0_13 = arith.constant 0 : index
      %c0_14 = arith.constant 0 : index
      %28 = vector.load %arg17[%c0_13, %c0_14] : memref<1x128xf32, #tpu.memory_space<vmem>>, vector<1x128xf32>
      %29 = vector.broadcast %28 : vector<1x128xf32> to vector<512x128xf32>
      %30 = arith.mulf %27, %29 : vector<512x128xf32>
      %c0_15 = arith.constant 0 : index
      %c0_16 = arith.constant 0 : index
      %31 = vector.load %arg18[%c0_15, %c0_16] : memref<1x128xf32, #tpu.memory_space<vmem>>, vector<1x128xf32>
      %32 = vector.broadcast %31 : vector<1x128xf32> to vector<512x128xf32>
      %33 = arith.addf %30, %32 : vector<512x128xf32>
      %cst = arith.constant 0.000000e+00 : f32
      %34 = vector.broadcast %cst : f32 to vector<512x128xf32>
      %35 = arith.maximumf %33, %34 : vector<512x128xf32>
      %36 = arith.truncf %35 : vector<512x128xf32> to vector<512x128xbf16>
      %c0_17 = arith.constant 0 : index
      %c0_18 = arith.constant 0 : index
      %37 = vector.load %arg7[%c0_17, %c0_18] : memref<128x128xbf16, #tpu.memory_space<vmem>>, vector<128x128xbf16>
      %cst_19 = arith.constant dense<0.000000e+00> : vector<512x128xf32>
      %38 = tpu.matmul %36, %37, %cst_19 {dimension_numbers = #tpu.dot_dimension_numbers<[1], [0], [0], [1], [0, 0, 1, 1], [], []>} : vector<512x128xbf16>, vector<128x128xbf16>, vector<512x128xf32> -> vector<512x128xf32>
      %39 = arith.truncf %38 : vector<512x128xf32> to vector<512x128xbf16>
      %40 = arith.index_cast %arg1 : i32 to index
      %c0_20 = arith.constant 0 : index
      %c0_21 = arith.constant 0 : index
      %41 = vector.load %arg16[%40, %c0_20, %c0_21] : memref<2x512x128xbf16, #tpu.memory_space<vmem>>, vector<1x512x128xbf16>
      %42 = vector.shape_cast %41 : vector<1x512x128xbf16> to vector<512x128xbf16>
      %43 = vector.shape_cast %39 : vector<512x128xbf16> to vector<1x512x128xbf16>
      tpu.vector_store %arg16[%40, %c0_20, %c0_21], %43 {strides = array<i32>} : memref<2x512x128xbf16, #tpu.memory_space<vmem>>, vector<1x512x128xbf16>,
      %c0_22 = arith.constant 0 : index
      %c0_23 = arith.constant 0 : index
      %44 = vector.load %arg19[%c0_22, %c0_23] : memref<1x128xf32, #tpu.memory_space<vmem>>, vector<1x128xf32>
      %cst_24 = arith.constant dense<0.000000e+00> : vector<128xf32>
      %45 = vector.multi_reduction <add>, %38, %cst_24 [0] : vector<512x128xf32> to vector<128xf32>
      %46 = vector.shape_cast %45 : vector<128xf32> to vector<1x128xf32>
      %47 = arith.addf %44, %46 : vector<1x128xf32>
      %c0_25 = arith.constant 0 : index
      %c0_26 = arith.constant 0 : index
      %48 = vector.load %arg19[%c0_25, %c0_26] : memref<1x128xf32, #tpu.memory_space<vmem>>, vector<1x128xf32>
      tpu.vector_store %arg19[%c0_25, %c0_26], %47 {strides = array<i32>} : memref<1x128xf32, #tpu.memory_space<vmem>>, vector<1x128xf32>,
      %c0_27 = arith.constant 0 : index
      %c0_28 = arith.constant 0 : index
      %49 = vector.load %arg20[%c0_27, %c0_28] : memref<1x128xf32, #tpu.memory_space<vmem>>, vector<1x128xf32>
      %50 = arith.mulf %38, %38 : vector<512x128xf32>
      %cst_29 = arith.constant dense<0.000000e+00> : vector<128xf32>
      %51 = vector.multi_reduction <add>, %50, %cst_29 [0] : vector<512x128xf32> to vector<128xf32>
      %52 = vector.shape_cast %51 : vector<128xf32> to vector<1x128xf32>
      %53 = arith.addf %49, %52 : vector<1x128xf32>
      %c0_30 = arith.constant 0 : index
      %c0_31 = arith.constant 0 : index
      %54 = vector.load %arg20[%c0_30, %c0_31] : memref<1x128xf32, #tpu.memory_space<vmem>>, vector<1x128xf32>
      tpu.vector_store %arg20[%c0_30, %c0_31], %53 {strides = array<i32>} : memref<1x128xf32, #tpu.memory_space<vmem>>, vector<1x128xf32>,
    } else {
    }
    %c2_i32 = arith.constant 2 : i32
    %16 = arith.cmpi eq, %arg0, %c2_i32 : i32
    %c0_i32_8 = arith.constant 0 : i32
    %17 = arith.cmpi eq, %arg1, %c0_i32_8 : i32
    %18 = arith.andi %16, %17 : i1
    %19 = arith.extui %18 : i1 to i32
    %c0_i32_9 = arith.constant 0 : i32
    %20 = arith.cmpi ne, %19, %c0_i32_9 : i32
    scf.if %20 {
      %c0 = arith.constant 0 : index
      %c0_12 = arith.constant 0 : index
      %24 = vector.load %arg19[%c0, %c0_12] : memref<1x128xf32, #tpu.memory_space<vmem>>, vector<1x128xf32>
      %cst = arith.constant 9.765625E-4 : f32
      %25 = vector.broadcast %cst : f32 to vector<1x128xf32>
      %26 = arith.mulf %24, %25 : vector<1x128xf32>
      %c0_13 = arith.constant 0 : index
      %c0_14 = arith.constant 0 : index
      %27 = vector.load %arg20[%c0_13, %c0_14] : memref<1x128xf32, #tpu.memory_space<vmem>>, vector<1x128xf32>
      %cst_15 = arith.constant 9.765625E-4 : f32
      %28 = vector.broadcast %cst_15 : f32 to vector<1x128xf32>
      %29 = arith.mulf %27, %28 : vector<1x128xf32>
      %30 = arith.mulf %26, %26 : vector<1x128xf32>
      %31 = arith.subf %29, %30 : vector<1x128xf32>
      %cst_16 = arith.constant 0.000000e+00 : f32
      %32 = vector.broadcast %cst_16 : f32 to vector<1x128xf32>
      %33 = arith.maximumf %31, %32 : vector<1x128xf32>
      %c0_17 = arith.constant 0 : index
      %c0_18 = arith.constant 0 : index
      %34 = vector.load %arg8[%c0_17, %c0_18] : memref<1x128xf32, #tpu.memory_space<vmem>>, vector<1x128xf32>
      %cst_19 = arith.constant 9.99999974E-6 : f32
      %35 = vector.broadcast %cst_19 : f32 to vector<1x128xf32>
      %36 = arith.addf %33, %35 : vector<1x128xf32>
      %37 = math.rsqrt %36 : vector<1x128xf32>
      %38 = arith.mulf %34, %37 : vector<1x128xf32>
      %c0_20 = arith.constant 0 : index
      %c0_21 = arith.constant 0 : index
      %39 = vector.load %arg19[%c0_20, %c0_21] : memref<1x128xf32, #tpu.memory_space<vmem>>, vector<1x128xf32>
      tpu.vector_store %arg19[%c0_20, %c0_21], %38 {strides = array<i32>} : memref<1x128xf32, #tpu.memory_space<vmem>>, vector<1x128xf32>,
      %c0_22 = arith.constant 0 : index
      %c0_23 = arith.constant 0 : index
      %40 = vector.load %arg9[%c0_22, %c0_23] : memref<1x128xf32, #tpu.memory_space<vmem>>, vector<1x128xf32>
      %41 = arith.mulf %26, %38 : vector<1x128xf32>
      %42 = arith.subf %40, %41 : vector<1x128xf32>
      %c0_24 = arith.constant 0 : index
      %c0_25 = arith.constant 0 : index
      %43 = vector.load %arg20[%c0_24, %c0_25] : memref<1x128xf32, #tpu.memory_space<vmem>>, vector<1x128xf32>
      tpu.vector_store %arg20[%c0_24, %c0_25], %42 {strides = array<i32>} : memref<1x128xf32, #tpu.memory_space<vmem>>, vector<1x128xf32>,
    } else {
    }
    %c2_i32_10 = arith.constant 2 : i32
    %21 = arith.cmpi eq, %arg0, %c2_i32_10 : i32
    %22 = arith.extui %21 : i1 to i32
    %c0_i32_11 = arith.constant 0 : i32
    %23 = arith.cmpi ne, %22, %c0_i32_11 : i32
    scf.if %23 {
      %24 = arith.index_cast %arg1 : i32 to index
      %c0 = arith.constant 0 : index
      %c0_12 = arith.constant 0 : index
      %25 = vector.load %arg16[%24, %c0, %c0_12] : memref<2x512x128xbf16, #tpu.memory_space<vmem>>, vector<1x512x128xbf16>
      %26 = vector.shape_cast %25 : vector<1x512x128xbf16> to vector<512x128xbf16>
      %27 = arith.extf %26 : vector<512x128xbf16> to vector<512x128xf32>
      %c0_13 = arith.constant 0 : index
      %c0_14 = arith.constant 0 : index
      %28 = vector.load %arg19[%c0_13, %c0_14] : memref<1x128xf32, #tpu.memory_space<vmem>>, vector<1x128xf32>
      %29 = vector.broadcast %28 : vector<1x128xf32> to vector<512x128xf32>
      %30 = arith.mulf %27, %29 : vector<512x128xf32>
      %c0_15 = arith.constant 0 : index
      %c0_16 = arith.constant 0 : index
      %31 = vector.load %arg20[%c0_15, %c0_16] : memref<1x128xf32, #tpu.memory_space<vmem>>, vector<1x128xf32>
      %32 = vector.broadcast %31 : vector<1x128xf32> to vector<512x128xf32>
      %33 = arith.addf %30, %32 : vector<512x128xf32>
      %cst = arith.constant 0.000000e+00 : f32
      %34 = vector.broadcast %cst : f32 to vector<512x128xf32>
      %35 = arith.maximumf %33, %34 : vector<512x128xf32>
      %c0_17 = arith.constant 0 : index
      %c0_18 = arith.constant 0 : index
      %36 = vector.load %arg10[%c0_17, %c0_18] : memref<1x128xf32, #tpu.memory_space<vmem>>, vector<1x128xf32>
      %37 = vector.broadcast %36 : vector<1x128xf32> to vector<512x128xf32>
      %38 = arith.mulf %35, %37 : vector<512x128xf32>
      %cst_19 = arith.constant dense<0.000000e+00> : vector<512xf32>
      %39 = vector.multi_reduction <add>, %38, %cst_19 [1] : vector<512x128xf32> to vector<512xf32>
      %40 = vector.shape_cast %39 : vector<512xf32> to vector<512x1xf32>
      %c0_20 = arith.constant 0 : index
      %c0_21 = arith.constant 0 : index
      %41 = vector.load %arg11[%c0_20, %c0_21] : memref<1x1xf32, #tpu.memory_space<vmem>>, vector<1x1xf32>
      %42 = vector.broadcast %41 : vector<1x1xf32> to vector<512x1xf32>
      %43 = arith.addf %40, %42 : vector<512x1xf32>
      %c0_22 = arith.constant 0 : index
      %c0_23 = arith.constant 0 : index
      %44 = vector.load %arg3[%c0_22, %c0_23] : memref<512x4xf32, #tpu.memory_space<vmem>>, vector<512x4xf32>
      %c0_24 = arith.constant 0 : index
      %c0_25 = arith.constant 0 : index
      %45 = vector.load %arg12[%c0_24, %c0_25] : memref<1x4xf32, #tpu.memory_space<vmem>>, vector<1x4xf32>
      %46 = vector.broadcast %45 : vector<1x4xf32> to vector<512x4xf32>
      %47 = arith.mulf %44, %46 : vector<512x4xf32>
      %cst_26 = arith.constant dense<0.000000e+00> : vector<512xf32>
      %48 = vector.multi_reduction <add>, %47, %cst_26 [1] : vector<512x4xf32> to vector<512xf32>
      %49 = vector.shape_cast %48 : vector<512xf32> to vector<512x1xf32>
      %c0_27 = arith.constant 0 : index
      %c0_28 = arith.constant 0 : index
      %50 = vector.load %arg13[%c0_27, %c0_28] : memref<1x1xf32, #tpu.memory_space<vmem>>, vector<1x1xf32>
      %51 = vector.broadcast %50 : vector<1x1xf32> to vector<512x1xf32>
      %52 = arith.addf %49, %51 : vector<512x1xf32>
      %53 = arith.addf %52, %43 : vector<512x1xf32>
      %cst_29 = arith.constant 5.000000e-01 : f32
      %54 = vector.broadcast %cst_29 : f32 to vector<512x1xf32>
      %55 = arith.mulf %54, %53 : vector<512x1xf32>
      %56 = arith.negf %55 : vector<512x1xf32>
      %57 = math.exp %56 : vector<512x1xf32>
      %cst_30 = arith.constant 1.000000e+00 : f32
      %58 = vector.broadcast %cst_30 : f32 to vector<512x1xf32>
      %59 = arith.addf %58, %57 : vector<512x1xf32>
      %60 = arith.divf %58, %59 : vector<512x1xf32>
      %c0_31 = arith.constant 0 : index
      %c0_32 = arith.constant 0 : index
      %61 = vector.load %arg14[%c0_31, %c0_32] : memref<512x1xf32, #tpu.memory_space<vmem>>, vector<512x1xf32>
      tpu.vector_store %arg14[%c0_31, %c0_32], %60 {strides = array<i32>} : memref<512x1xf32, #tpu.memory_space<vmem>>, vector<512x1xf32>,
    } else {
    }
    return
  }
  func.func @transform_0(%arg0: i32, %arg1: i32) -> (i32, i32) {
    %c0_i32 = arith.constant 0 : i32
    %0 = arith.cmpi eq, %arg0, %c0_i32 : i32
    %c1_i32 = arith.constant 1 : i32
    %1 = arith.select %0, %arg1, %c1_i32 : i32
    %c0_i32_0 = arith.constant 0 : i32
    %c0_i32_1 = arith.constant 0 : i32
    return %1, %c0_i32_0 : i32, i32
  }
  func.func @transform_1(%arg0: i32, %arg1: i32) -> (i32, i32) {
    %c2_i32 = arith.constant 2 : i32
    %0 = arith.cmpi eq, %arg0, %c2_i32 : i32
    %c0_i32 = arith.constant 0 : i32
    %1 = arith.select %0, %arg1, %c0_i32 : i32
    %c0_i32_0 = arith.constant 0 : i32
    %c0_i32_1 = arith.constant 0 : i32
    return %1, %c0_i32_0 : i32, i32
  }
  func.func @transform_2(%arg0: i32, %arg1: i32) -> (i32, i32) {
    %c0_i32 = arith.constant 0 : i32
    %c0_i32_0 = arith.constant 0 : i32
    %c0_i32_1 = arith.constant 0 : i32
    return %c0_i32, %c0_i32_0 : i32, i32
  }
  func.func @transform_3(%arg0: i32, %arg1: i32) -> (i32, i32) {
    %c0_i32 = arith.constant 0 : i32
    %c0_i32_0 = arith.constant 0 : i32
    %c0_i32_1 = arith.constant 0 : i32
    return %c0_i32, %c0_i32_0 : i32, i32
  }
  func.func @transform_4(%arg0: i32, %arg1: i32) -> (i32, i32) {
    %c0_i32 = arith.constant 0 : i32
    %c0_i32_0 = arith.constant 0 : i32
    %c0_i32_1 = arith.constant 0 : i32
    return %c0_i32, %c0_i32_0 : i32, i32
  }
  func.func @transform_5(%arg0: i32, %arg1: i32) -> (i32, i32) {
    %c0_i32 = arith.constant 0 : i32
    %c0_i32_0 = arith.constant 0 : i32
    %c0_i32_1 = arith.constant 0 : i32
    return %c0_i32, %c0_i32_0 : i32, i32
  }
  func.func @transform_6(%arg0: i32, %arg1: i32) -> (i32, i32) {
    %c0_i32 = arith.constant 0 : i32
    %c0_i32_0 = arith.constant 0 : i32
    %c0_i32_1 = arith.constant 0 : i32
    return %c0_i32, %c0_i32_0 : i32, i32
  }
  func.func @transform_7(%arg0: i32, %arg1: i32) -> (i32, i32) {
    %c0_i32 = arith.constant 0 : i32
    %c0_i32_0 = arith.constant 0 : i32
    %c0_i32_1 = arith.constant 0 : i32
    return %c0_i32, %c0_i32_0 : i32, i32
  }
  func.func @transform_8(%arg0: i32, %arg1: i32) -> (i32, i32) {
    %c0_i32 = arith.constant 0 : i32
    %c0_i32_0 = arith.constant 0 : i32
    %c0_i32_1 = arith.constant 0 : i32
    return %c0_i32, %c0_i32_0 : i32, i32
  }
  func.func @transform_9(%arg0: i32, %arg1: i32) -> (i32, i32) {
    %c0_i32 = arith.constant 0 : i32
    %c0_i32_0 = arith.constant 0 : i32
    %c0_i32_1 = arith.constant 0 : i32
    return %c0_i32, %c0_i32_0 : i32, i32
  }
  func.func @transform_10(%arg0: i32, %arg1: i32) -> (i32, i32) {
    %c0_i32 = arith.constant 0 : i32
    %c0_i32_0 = arith.constant 0 : i32
    %c0_i32_1 = arith.constant 0 : i32
    return %c0_i32, %c0_i32_0 : i32, i32
  }
  func.func @transform_11(%arg0: i32, %arg1: i32) -> (i32, i32) {
    %c0_i32 = arith.constant 0 : i32
    %c0_i32_0 = arith.constant 0 : i32
    %c0_i32_1 = arith.constant 0 : i32
    return %c0_i32, %c0_i32_0 : i32, i32
  }
  func.func @transform_12(%arg0: i32, %arg1: i32) -> (i32, i32) {
    %c2_i32 = arith.constant 2 : i32
    %0 = arith.cmpi eq, %arg0, %c2_i32 : i32
    %c0_i32 = arith.constant 0 : i32
    %1 = arith.select %0, %arg1, %c0_i32 : i32
    %c0_i32_0 = arith.constant 0 : i32
    %c0_i32_1 = arith.constant 0 : i32
    return %1, %c0_i32_0 : i32, i32
  }
}

</mosaic_0001>

<llo_original>
// kernel: tpu_custom_call.1
$region0: #{tpu_custom_call.1}
  #allocation0 [shape = 'u32[]', space=smem, size = 0x4, offset = 0x4, fixed_abs, tag = 'smem constant byte address 0x4 - core index']
  #allocation1 [shape = 'u32[72,128]{1,0:T(1,128)}', space=vmem, size = 0x9000, scoped, tag = 'internal scratch']
  #allocation2 [shape = 'bf16[2,512,128]{2,1,0:T(8,128)(2,1)}', space=vmem, size = 0x40000, scoped, tag = 'scratch operand']
  #allocation3 [shape = 'bf16[2,512,128]{2,1,0:T(8,128)(2,1)}', space=vmem, size = 0x40000, scoped, tag = 'scratch operand']
  #allocation4 [shape = 'f32[1,128]{1,0:T(1,128)}', space=vmem, size = 0x200, scoped, tag = 'scratch operand']
  #allocation5 [shape = 'f32[1,128]{1,0:T(1,128)}', space=vmem, size = 0x200, scoped, tag = 'scratch operand']
  #allocation6 [shape = 'f32[1,128]{1,0:T(1,128)}', space=vmem, size = 0x200, scoped, tag = 'scratch operand']
  #allocation7 [shape = 'f32[1,128]{1,0:T(1,128)}', space=vmem, size = 0x200, scoped, tag = 'scratch operand']
  #allocation8 [shape = 'f32[1,1]{1,0:T(1,128)S(1)}', space=vmem, size = 0x200, scoped, tag = 'scoped memory for tpu_custom_call.1']
  #allocation9 [shape = 'f32[1,1]{1,0:T(1,128)S(1)}', space=vmem, size = 0x200, scoped, tag = 'scoped memory for tpu_custom_call.1']
  %s0 = inlined_call_operand.vmem [shape: bf16[1024,34], index: 0, kind: input, shape index: {}]
  %s1 = inlined_call_operand.vmem [shape: f32[1024,4], index: 1, kind: input, shape index: {}]
  %s2 = inlined_call_operand.vmem [shape: bf16[34,128], index: 2, kind: input, shape index: {}]
  %s3 = inlined_call_operand.vmem [shape: f32[1,128], index: 3, kind: input, shape index: {}]
  %s4 = inlined_call_operand.vmem [shape: f32[1,128], index: 4, kind: input, shape index: {}]
  %s5 = inlined_call_operand.vmem [shape: bf16[128,128], index: 5, kind: input, shape index: {}]
  %s6 = inlined_call_operand.vmem [shape: f32[1,128], index: 6, kind: input, shape index: {}]
  %s7 = inlined_call_operand.vmem [shape: f32[1,128], index: 7, kind: input, shape index: {}]
  %s8 = inlined_call_operand.vmem [shape: f32[1,128], index: 8, kind: input, shape index: {}]
  %s9 = inlined_call_operand.<no memory space> [shape: f32[1,1], index: 9, kind: input, shape index: {}]
  %s10 = inlined_call_operand.vmem [shape: f32[1,4], index: 10, kind: input, shape index: {}]
  %s11 = inlined_call_operand.<no memory space> [shape: f32[1,1], index: 11, kind: input, shape index: {}]
  %s12 = inlined_call_operand.vmem [shape: f32[1024,1], index: 12, kind: output, shape index: {}]
  %s13 = sld [smem:[#allocation0]]
  $region105: #{tpu_custom_call.1} parent=0
    _
  %s15 = ssub.s32 1, %s13
  %s16 = scalar_select 0, %s15, %s13
  %v17 = vstv %s9
  %18 = vst [vmem:[#allocation8] sm:$0x1] %v17
  %v19 = vstv %s11
  %20 = vst [vmem:[#allocation9] sm:$0x1] %v19
  loop: start=0, step=1, limit=8
  $region2: #{tpu_custom_call.1} parent=0 // loop_pre_header
    _
  $region3: #{tpu_custom_call.1} parent=0 // loop_header
    %s22 = sphi 0, %s26
    %p23 = scmp.ge.s32.totalorder %s22, 8
    %s29 = sphi 0, %s41
    %s30 = sphi 0, %s37
    %s31 = sphi 0, %s29
    %s32 = sphi 0, %s30
    %s33 = sphi 0, %s31
    %s34 = sphi 0, %s32
    %s48 = sphi 0, %s50
    %s51 = sphi 0, %s48
    %s52 = sphi 0, %s51
    %s68 = sphi 0, %s52
    %s78 = sphi 0, %s80
    %s81 = sphi 0, %s78
    %s82 = sphi 0, %s81
    %s98 = sphi 0, %s82
    %s102 = sphi 0, %s102
    %s104 = sphi 0, %s102
    %s105 = sphi 0, %s104
    %s119 = sphi 0, %s105
    %s123 = sphi 0, %s123
    %s125 = sphi 0, %s123
    %s126 = sphi 0, %s125
    %s140 = sphi 0, %s126
    %s144 = sphi 0, %s144
    %s146 = sphi 0, %s144
    %s147 = sphi 0, %s146
    %s161 = sphi 0, %s147
    %s165 = sphi 0, %s165
    %s167 = sphi 0, %s165
    %s168 = sphi 0, %s167
    %s182 = sphi 0, %s168
    %s186 = sphi 0, %s186
    %s188 = sphi 0, %s186
    %s189 = sphi 0, %s188
    %s203 = sphi 0, %s189
    %s207 = sphi 0, %s207
    %s209 = sphi 0, %s207
    %s210 = sphi 0, %s209
    %s224 = sphi 0, %s210
    %s228 = sphi 0, %s228
    %s230 = sphi 0, %s228
    %s231 = sphi 0, %s230
    %s245 = sphi 0, %s231
    %s249 = sphi 0, %s249
    %s251 = sphi 0, %s249
    %s252 = sphi 0, %s251
    %s266 = sphi 0, %s252
    %s270 = sphi 0, %s270
    %s272 = sphi 0, %s270
    %s273 = sphi 0, %s272
    %s287 = sphi 0, %s273
    %s291 = sphi 0, %s291
    %s293 = sphi 0, %s291
    %s294 = sphi 0, %s293
    %s308 = sphi 0, %s294
    %s318 = sphi 0, %s320
    %s321 = sphi 0, %s318
    %s322 = sphi 0, %s321
    %s338 = sphi 0, %s322
  $region4: #{tpu_custom_call.1} parent=0 // loop_header_branch
    %25 = sbr.rel (%p23) target = $region8
  $region5: #{tpu_custom_call.1} parent=0 // loop_body
    %s27 = ssub.s32 %s22, 1
    %s28 = ssub.s32 %s22, 2
    %s35 = sadd.s32 1, %s30
    %p36 = scmp.ge.s32.totalorder %s35, 2
    %s37 = scalar_select %p36, 0, %s35
    %s38 = sadd.s32 1, %s29
    %s39 = scalar_select %p36, %s38, %s29
    %p40 = scmp.ge.s32.totalorder %s39, 3
    %s41 = scalar_select %p40, 0, %s39
    %p42 = scmp.eq.s32.totalorder %s29, 0
    %s43 = scalar_select %p42, %s30, 1
    %p44 = scmp.eq.s32.totalorder %s41, 0
    %s45 = scalar_select %p44, %s37, 1
    %s46 = ssub.s32 %s43, %s45
    %p47 = scmp.eq.s32.totalorder %s46, 0
    %s49 = sadd.s32 %s48, 1
    %s50 = scalar_select %p47, %s48, %s49
    %p53 = pneg %p47
    %p54 = scmp.eq.s32.totalorder %s22, 5
    %p55 = por %p53, %p54
    %p56 = scmp.ne.s32.totalorder %s48, %s51
    %p57 = scmp.eq.s32.totalorder %s22, 0
    %p58 = por %p56, %p57
    %p59 = scmp.ne.s32.totalorder %s48, %s51
    %p60 = scmp.eq.s32.totalorder %s27, 5
    %p61 = por %p59, %p60
    %p62 = scmp.ne.s32.totalorder %s51, %s52
    %p63 = scmp.eq.s32.totalorder %s27, 0
    %p64 = por %p62, %p63
    %p65 = scmp.ne.s32.totalorder %s51, %s52
    %p66 = scmp.eq.s32.totalorder %s28, 5
    %p67 = por %p65, %p66
    %p69 = scmp.ne.s32.totalorder %s52, %s68
    %p70 = scmp.eq.s32.totalorder %s28, 0
    %p71 = por %p69, %p70
    %p72 = scmp.eq.s32.totalorder %s29, 2
    %s73 = scalar_select %p72, %s30, 0
    %p74 = scmp.eq.s32.totalorder %s41, 2
    %s75 = scalar_select %p74, %s37, 0
    %s76 = ssub.s32 %s73, %s75
    %p77 = scmp.eq.s32.totalorder %s76, 0
    %s79 = sadd.s32 %s78, 1
    %s80 = scalar_select %p77, %s78, %s79
    %p83 = pneg %p77
    %p84 = scmp.eq.s32.totalorder %s22, 5
    %p85 = por %p83, %p84
    %p86 = scmp.ne.s32.totalorder %s78, %s81
    %p87 = scmp.eq.s32.totalorder %s22, 0
    %p88 = por %p86, %p87
    %p89 = scmp.ne.s32.totalorder %s78, %s81
    %p90 = scmp.eq.s32.totalorder %s27, 5
    %p91 = por %p89, %p90
    %p92 = scmp.ne.s32.totalorder %s81, %s82
    %p93 = scmp.eq.s32.totalorder %s27, 0
    %p94 = por %p92, %p93
    %p95 = scmp.ne.s32.totalorder %s81, %s82
    %p96 = scmp.eq.s32.totalorder %s28, 5
    %p97 = por %p95, %p96
    %p99 = scmp.ne.s32.totalorder %s82, %s98
    %p100 = scmp.eq.s32.totalorder %s28, 0
    %p101 = por %p99, %p100
    %s103 = sadd.s32 %s102, 1
    %p106 = scmp.eq.s32.totalorder %s22, 5
    %p107 = scmp.ne.s32.totalorder %s102, %s104
    %p108 = scmp.eq.s32.totalorder %s22, 0
    %p109 = por %p107, %p108
    %p110 = scmp.ne.s32.totalorder %s102, %s104
    %p111 = scmp.eq.s32.totalorder %s27, 5
    %p112 = por %p110, %p111
    %p113 = scmp.ne.s32.totalorder %s104, %s105
    %p114 = scmp.eq.s32.totalorder %s27, 0
    %p115 = por %p113, %p114
    %p116 = scmp.ne.s32.totalorder %s104, %s105
    %p117 = scmp.eq.s32.totalorder %s28, 5
    %p118 = por %p116, %p117
    %p120 = scmp.ne.s32.totalorder %s105, %s119
    %p121 = scmp.eq.s32.totalorder %s28, 0
    %p122 = por %p120, %p121
    %s124 = sadd.s32 %s123, 1
    %p127 = scmp.eq.s32.totalorder %s22, 5
    %p128 = scmp.ne.s32.totalorder %s123, %s125
    %p129 = scmp.eq.s32.totalorder %s22, 0
    %p130 = por %p128, %p129
    %p131 = scmp.ne.s32.totalorder %s123, %s125
    %p132 = scmp.eq.s32.totalorder %s27, 5
    %p133 = por %p131, %p132
    %p134 = scmp.ne.s32.totalorder %s125, %s126
    %p135 = scmp.eq.s32.totalorder %s27, 0
    %p136 = por %p134, %p135
    %p137 = scmp.ne.s32.totalorder %s125, %s126
    %p138 = scmp.eq.s32.totalorder %s28, 5
    %p139 = por %p137, %p138
    %p141 = scmp.ne.s32.totalorder %s126, %s140
    %p142 = scmp.eq.s32.totalorder %s28, 0
    %p143 = por %p141, %p142
    %s145 = sadd.s32 %s144, 1
    %p148 = scmp.eq.s32.totalorder %s22, 5
    %p149 = scmp.ne.s32.totalorder %s144, %s146
    %p150 = scmp.eq.s32.totalorder %s22, 0
    %p151 = por %p149, %p150
    %p152 = scmp.ne.s32.totalorder %s144, %s146
    %p153 = scmp.eq.s32.totalorder %s27, 5
    %p154 = por %p152, %p153
    %p155 = scmp.ne.s32.totalorder %s146, %s147
    %p156 = scmp.eq.s32.totalorder %s27, 0
    %p157 = por %p155, %p156
    %p158 = scmp.ne.s32.totalorder %s146, %s147
    %p159 = scmp.eq.s32.totalorder %s28, 5
    %p160 = por %p158, %p159
    %p162 = scmp.ne.s32.totalorder %s147, %s161
    %p163 = scmp.eq.s32.totalorder %s28, 0
    %p164 = por %p162, %p163
    %s166 = sadd.s32 %s165, 1
    %p169 = scmp.eq.s32.totalorder %s22, 5
    %p170 = scmp.ne.s32.totalorder %s165, %s167
    %p171 = scmp.eq.s32.totalorder %s22, 0
    %p172 = por %p170, %p171
    %p173 = scmp.ne.s32.totalorder %s165, %s167
    %p174 = scmp.eq.s32.totalorder %s27, 5
    %p175 = por %p173, %p174
    %p176 = scmp.ne.s32.totalorder %s167, %s168
    %p177 = scmp.eq.s32.totalorder %s27, 0
    %p178 = por %p176, %p177
    %p179 = scmp.ne.s32.totalorder %s167, %s168
    %p180 = scmp.eq.s32.totalorder %s28, 5
    %p181 = por %p179, %p180
    %p183 = scmp.ne.s32.totalorder %s168, %s182
    %p184 = scmp.eq.s32.totalorder %s28, 0
    %p185 = por %p183, %p184
    %s187 = sadd.s32 %s186, 1
    %p190 = scmp.eq.s32.totalorder %s22, 5
    %p191 = scmp.ne.s32.totalorder %s186, %s188
    %p192 = scmp.eq.s32.totalorder %s22, 0
    %p193 = por %p191, %p192
    %p194 = scmp.ne.s32.totalorder %s186, %s188
    %p195 = scmp.eq.s32.totalorder %s27, 5
    %p196 = por %p194, %p195
    %p197 = scmp.ne.s32.totalorder %s188, %s189
    %p198 = scmp.eq.s32.totalorder %s27, 0
    %p199 = por %p197, %p198
    %p200 = scmp.ne.s32.totalorder %s188, %s189
    %p201 = scmp.eq.s32.totalorder %s28, 5
    %p202 = por %p200, %p201
    %p204 = scmp.ne.s32.totalorder %s189, %s203
    %p205 = scmp.eq.s32.totalorder %s28, 0
    %p206 = por %p204, %p205
    %s208 = sadd.s32 %s207, 1
    %p211 = scmp.eq.s32.totalorder %s22, 5
    %p212 = scmp.ne.s32.totalorder %s207, %s209
    %p213 = scmp.eq.s32.totalorder %s22, 0
    %p214 = por %p212, %p213
    %p215 = scmp.ne.s32.totalorder %s207, %s209
    %p216 = scmp.eq.s32.totalorder %s27, 5
    %p217 = por %p215, %p216
    %p218 = scmp.ne.s32.totalorder %s209, %s210
    %p219 = scmp.eq.s32.totalorder %s27, 0
    %p220 = por %p218, %p219
    %p221 = scmp.ne.s32.totalorder %s209, %s210
    %p222 = scmp.eq.s32.totalorder %s28, 5
    %p223 = por %p221, %p222
    %p225 = scmp.ne.s32.totalorder %s210, %s224
    %p226 = scmp.eq.s32.totalorder %s28, 0
    %p227 = por %p225, %p226
    %s229 = sadd.s32 %s228, 1
    %p232 = scmp.eq.s32.totalorder %s22, 5
    %p233 = scmp.ne.s32.totalorder %s228, %s230
    %p234 = scmp.eq.s32.totalorder %s22, 0
    %p235 = por %p233, %p234
    %p236 = scmp.ne.s32.totalorder %s228, %s230
    %p237 = scmp.eq.s32.totalorder %s27, 5
    %p238 = por %p236, %p237
    %p239 = scmp.ne.s32.totalorder %s230, %s231
    %p240 = scmp.eq.s32.totalorder %s27, 0
    %p241 = por %p239, %p240
    %p242 = scmp.ne.s32.totalorder %s230, %s231
    %p243 = scmp.eq.s32.totalorder %s28, 5
    %p244 = por %p242, %p243
    %p246 = scmp.ne.s32.totalorder %s231, %s245
    %p247 = scmp.eq.s32.totalorder %s28, 0
    %p248 = por %p246, %p247
    %s250 = sadd.s32 %s249, 1
    %p253 = scmp.eq.s32.totalorder %s22, 5
    %p254 = scmp.ne.s32.totalorder %s249, %s251
    %p255 = scmp.eq.s32.totalorder %s22, 0
    %p256 = por %p254, %p255
    %p257 = scmp.ne.s32.totalorder %s249, %s251
    %p258 = scmp.eq.s32.totalorder %s27, 5
    %p259 = por %p257, %p258
    %p260 = scmp.ne.s32.totalorder %s251, %s252
    %p261 = scmp.eq.s32.totalorder %s27, 0
    %p262 = por %p260, %p261
    %p263 = scmp.ne.s32.totalorder %s251, %s252
    %p264 = scmp.eq.s32.totalorder %s28, 5
    %p265 = por %p263, %p264
    %p267 = scmp.ne.s32.totalorder %s252, %s266
    %p268 = scmp.eq.s32.totalorder %s28, 0
    %p269 = por %p267, %p268
    %s271 = sadd.s32 %s270, 1
    %p274 = scmp.eq.s32.totalorder %s22, 5
    %p275 = scmp.ne.s32.totalorder %s270, %s272
    %p276 = scmp.eq.s32.totalorder %s22, 0
    %p277 = por %p275, %p276
    %p278 = scmp.ne.s32.totalorder %s270, %s272
    %p279 = scmp.eq.s32.totalorder %s27, 5
    %p280 = por %p278, %p279
    %p281 = scmp.ne.s32.totalorder %s272, %s273
    %p282 = scmp.eq.s32.totalorder %s27, 0
    %p283 = por %p281, %p282
    %p284 = scmp.ne.s32.totalorder %s272, %s273
    %p285 = scmp.eq.s32.totalorder %s28, 5
    %p286 = por %p284, %p285
    %p288 = scmp.ne.s32.totalorder %s273, %s287
    %p289 = scmp.eq.s32.totalorder %s28, 0
    %p290 = por %p288, %p289
    %s292 = sadd.s32 %s291, 1
    %p295 = scmp.eq.s32.totalorder %s22, 5
    %p296 = scmp.ne.s32.totalorder %s291, %s293
    %p297 = scmp.eq.s32.totalorder %s22, 0
    %p298 = por %p296, %p297
    %p299 = scmp.ne.s32.totalorder %s291, %s293
    %p300 = scmp.eq.s32.totalorder %s27, 5
    %p301 = por %p299, %p300
    %p302 = scmp.ne.s32.totalorder %s293, %s294
    %p303 = scmp.eq.s32.totalorder %s27, 0
    %p304 = por %p302, %p303
    %p305 = scmp.ne.s32.totalorder %s293, %s294
    %p306 = scmp.eq.s32.totalorder %s28, 5
    %p307 = por %p305, %p306
    %p309 = scmp.ne.s32.totalorder %s294, %s308
    %p310 = scmp.eq.s32.totalorder %s28, 0
    %p311 = por %p309, %p310
    %p312 = scmp.eq.s32.totalorder %s29, 2
    %s313 = scalar_select %p312, %s30, 0
    %p314 = scmp.eq.s32.totalorder %s41, 2
    %s315 = scalar_select %p314, %s37, 0
    %s316 = ssub.s32 %s313, %s315
    %p317 = scmp.eq.s32.totalorder %s316, 0
    %s319 = sadd.s32 %s318, 1
    %s320 = scalar_select %p317, %s318, %s319
    %p323 = pneg %p317
    %p324 = scmp.eq.s32.totalorder %s22, 5
    %p325 = por %p323, %p324
    %p326 = scmp.ne.s32.totalorder %s318, %s321
    %p327 = scmp.eq.s32.totalorder %s22, 0
    %p328 = por %p326, %p327
    %p329 = scmp.ne.s32.totalorder %s318, %s321
    %p330 = scmp.eq.s32.totalorder %s27, 5
    %p331 = por %p329, %p330
    %p332 = scmp.ne.s32.totalorder %s321, %s322
    %p333 = scmp.eq.s32.totalorder %s27, 0
    %p334 = por %p332, %p333
    %p335 = scmp.ne.s32.totalorder %s321, %s322
    %p336 = scmp.eq.s32.totalorder %s28, 5
    %p337 = por %p335, %p336
    %p339 = scmp.ne.s32.totalorder %s322, %s338
    %p340 = scmp.eq.s32.totalorder %s28, 0
    %p341 = por %p339, %p340
    %p342 = scmp.le.s32.totalorder 1, %s22
    %p343 = scmp.lt.s32.totalorder %s22, 7
    %p344 = pnand %p342, %p343
    %p345 = pneg %p344
    // Predicated region
    $region9: #{tpu_custom_call.1} parent=5 // pred_check
      _
    $region10: #{tpu_custom_call.1} parent=5 // pred_check_branch
      %347 = sbr.rel (%p344) target = $region12
    $region11: #{tpu_custom_call.1} parent=5 // pred_region
      %s348 = ssub.s32 %s22, 1
      // Predicated region
      $region13: #{tpu_custom_call.1} parent=11 // pred_check
        %p349 = pneg %p115
      $region14: #{tpu_custom_call.1} parent=11 // pred_check_branch
        %351 = sbr.rel (%p349) target = $region16
      $region15: #{tpu_custom_call.1} parent=11 // pred_region
        _
      $region16: #{tpu_custom_call.1} parent=11 // pred_fallthru
        _
      // Predicated region
      $region17: #{tpu_custom_call.1} parent=11 // pred_check
        %p352 = pneg %p136
      $region18: #{tpu_custom_call.1} parent=11 // pred_check_branch
        %354 = sbr.rel (%p352) target = $region20
      $region19: #{tpu_custom_call.1} parent=11 // pred_region
        _
      $region20: #{tpu_custom_call.1} parent=11 // pred_fallthru
        _
      // Predicated region
      $region21: #{tpu_custom_call.1} parent=11 // pred_check
        %p355 = pneg %p157
      $region22: #{tpu_custom_call.1} parent=11 // pred_check_branch
        %357 = sbr.rel (%p355) target = $region24
      $region23: #{tpu_custom_call.1} parent=11 // pred_region
        _
      $region24: #{tpu_custom_call.1} parent=11 // pred_fallthru
        _
      // Predicated region
      $region25: #{tpu_custom_call.1} parent=11 // pred_check
        %p358 = pneg %p178
      $region26: #{tpu_custom_call.1} parent=11 // pred_check_branch
        %360 = sbr.rel (%p358) target = $region28
      $region27: #{tpu_custom_call.1} parent=11 // pred_region
        _
      $region28: #{tpu_custom_call.1} parent=11 // pred_fallthru
        _
      // Predicated region
      $region29: #{tpu_custom_call.1} parent=11 // pred_check
        %p361 = pneg %p199
      $region30: #{tpu_custom_call.1} parent=11 // pred_check_branch
        %363 = sbr.rel (%p361) target = $region32
      $region31: #{tpu_custom_call.1} parent=11 // pred_region
        _
      $region32: #{tpu_custom_call.1} parent=11 // pred_fallthru
        _
      // Predicated region
      $region33: #{tpu_custom_call.1} parent=11 // pred_check
        %p364 = pneg %p220
      $region34: #{tpu_custom_call.1} parent=11 // pred_check_branch
        %366 = sbr.rel (%p364) target = $region36
      $region35: #{tpu_custom_call.1} parent=11 // pred_region
        _
      $region36: #{tpu_custom_call.1} parent=11 // pred_fallthru
        _
      // Predicated region
      $region37: #{tpu_custom_call.1} parent=11 // pred_check
        %p367 = pneg %p241
      $region38: #{tpu_custom_call.1} parent=11 // pred_check_branch
        %369 = sbr.rel (%p367) target = $region40
      $region39: #{tpu_custom_call.1} parent=11 // pred_region
        _
      $region40: #{tpu_custom_call.1} parent=11 // pred_fallthru
        _
      // Predicated region
      $region41: #{tpu_custom_call.1} parent=11 // pred_check
        %p370 = pneg %p262
      $region42: #{tpu_custom_call.1} parent=11 // pred_check_branch
        %372 = sbr.rel (%p370) target = $region44
      $region43: #{tpu_custom_call.1} parent=11 // pred_region
        _
      $region44: #{tpu_custom_call.1} parent=11 // pred_fallthru
        _
      // Predicated region
      $region45: #{tpu_custom_call.1} parent=11 // pred_check
        %p373 = pneg %p283
      $region46: #{tpu_custom_call.1} parent=11 // pred_check_branch
        %375 = sbr.rel (%p373) target = $region48
      $region47: #{tpu_custom_call.1} parent=11 // pred_region
        _
      $region48: #{tpu_custom_call.1} parent=11 // pred_fallthru
        _
      // Predicated region
      $region49: #{tpu_custom_call.1} parent=11 // pred_check
        %p376 = pneg %p304
      $region50: #{tpu_custom_call.1} parent=11 // pred_check_branch
        %378 = sbr.rel (%p376) target = $region52
      $region51: #{tpu_custom_call.1} parent=11 // pred_region
        _
      $region52: #{tpu_custom_call.1} parent=11 // pred_fallthru
        _
    $region12: #{tpu_custom_call.1} parent=5 // pred_fallthru
      _
    %p379 = scmp.lt.s32.totalorder %s22, 6
    // Predicated region
    $region53: #{tpu_custom_call.1} parent=5 // pred_check
      %p380 = pneg %p379
    $region54: #{tpu_custom_call.1} parent=5 // pred_check_branch
      %382 = sbr.rel (%p380) target = $region56
    $region55: #{tpu_custom_call.1} parent=5 // pred_region
      // Predicated region
      $region57: #{tpu_custom_call.1} parent=55 // pred_check
        %p383 = pneg %p58
      $region58: #{tpu_custom_call.1} parent=55 // pred_check_branch
        %385 = sbr.rel (%p383) target = $region60
      $region59: #{tpu_custom_call.1} parent=55 // pred_region
        %p386 = scmp.eq.s32.totalorder %s29, 0
        %s387 = scalar_select %p386, %s30, 1
        %s388 = smul.u32 64, %s387
        %p389 = scmp.lt.s32.totalorder %s388, 127
        %s390 = scalar_select %p389, %s388, 127
        %s391 = smul.addr %s390, 4
        %s392 = scalar_lea.vmem %s0, %s391
        %p393 = scmp.eq.s32.totalorder %s29, 0
        %s394 = scalar_select %p393, %s30, 1
        %s395 = smul.u32 64, %s394
      $region60: #{tpu_custom_call.1} parent=55 // pred_fallthru
        _
      // Predicated region
      $region61: #{tpu_custom_call.1} parent=55 // pred_check
        %p396 = pneg %p88
      $region62: #{tpu_custom_call.1} parent=55 // pred_check_branch
        %398 = sbr.rel (%p396) target = $region64
      $region63: #{tpu_custom_call.1} parent=55 // pred_region
        %p399 = scmp.eq.s32.totalorder %s29, 2
        %s400 = scalar_select %p399, %s30, 0
        %s401 = smul.u32 64, %s400
        %p402 = scmp.lt.s32.totalorder %s401, 127
        %s403 = scalar_select %p402, %s401, 127
        %s404 = smul.addr %s403, 8
        %s405 = scalar_lea.vmem %s1, %s404
        %p406 = scmp.eq.s32.totalorder %s29, 2
        %s407 = scalar_select %p406, %s30, 0
        %s408 = smul.u32 64, %s407
      $region64: #{tpu_custom_call.1} parent=55 // pred_fallthru
        _
    $region56: #{tpu_custom_call.1} parent=5 // pred_fallthru
      _
    %p409 = scmp.le.s32.totalorder 1, %s22
    %p410 = scmp.lt.s32.totalorder %s22, 7
    %p411 = pnand %p409, %p410
    %p412 = pneg %p411
    // Predicated region
    $region65: #{tpu_custom_call.1} parent=5 // pred_check
      _
    $region66: #{tpu_custom_call.1} parent=5 // pred_check_branch
      %414 = sbr.rel (%p411) target = $region68
    $region67: #{tpu_custom_call.1} parent=5 // pred_region
      %s415 = ssub.s32 %s22, 1
      %p416 = scmp.eq.s32.totalorder %s31, 0
      %s417 = scalar_select %p416, %s32, 1
      %s418 = smul.u32 64, %s417
      %p419 = scmp.lt.s32.totalorder %s418, 127
      %s420 = scalar_select %p419, %s418, 127
      %s421 = smul.addr %s420, 4
      %s422 = scalar_lea.vmem %s0, %s421
      %p423 = pneg %p64
      %p424 = pneg %p61
      %p425 = scmp.eq.s32.totalorder %s31, 2
      %s426 = scalar_select %p425, %s32, 0
      %s427 = smul.u32 64, %s426
      %p428 = scmp.lt.s32.totalorder %s427, 127
      %s429 = scalar_select %p428, %s427, 127
      %s430 = smul.addr %s429, 8
      %s431 = scalar_lea.vmem %s1, %s430
      %p432 = pneg %p94
      %p433 = pneg %p91
      %p434 = pneg %p115
      %p435 = pneg %p112
      %p436 = pneg %p136
      %p437 = pneg %p133
      %p438 = pneg %p157
      %p439 = pneg %p154
      %p440 = pneg %p178
      %p441 = pneg %p175
      %p442 = pneg %p199
      %p443 = pneg %p196
      %p444 = pneg %p220
      %p445 = pneg %p217
      %p446 = pneg %p241
      %p447 = pneg %p238
      %p448 = pneg %p262
      %p449 = pneg %p259
      %p450 = pneg %p283
      %p451 = pneg %p280
      %p452 = pneg %p304
      %p453 = pneg %p301
      %p454 = pneg %p334
      %p455 = pneg %p331
      %p456 = scmp.eq.s32.totalorder %s31, 2
      %s457 = scalar_select %p456, %s32, 0
      %s458 = smul.u32 64, %s457
      %p459 = scmp.lt.s32.totalorder %s458, 127
      %s460 = scalar_select %p459, %s458, 127
      %s461 = smul.addr %s460, 8
      %s462 = scalar_lea.vmem %s12, %s461
      %p463 = scmp.eq.s32.totalorder %s31, 0
      %s464 = scalar_select %p463, %s32, 1
      %s465 = smul.u32 64, %s464
      %p466 = scmp.lt.s32.totalorder %s465, 127
      %s467 = scalar_select %p466, %s465, 127
      %s468 = smul.addr %s467, 4
      %s469 = scalar_lea.vmem %s0, %s468
      %p470 = scmp.eq.s32.totalorder %s31, 0
      %s471 = scalar_select %p470, %s32, 1
      %s472 = smul.u32 64, %s471
      %p473 = scmp.eq.s32.totalorder %s31, 2
      %s474 = scalar_select %p473, %s32, 0
      %s475 = smul.u32 64, %s474
      %p476 = scmp.lt.s32.totalorder %s475, 127
      %s477 = scalar_select %p476, %s475, 127
      %s478 = smul.addr %s477, 8
      %s479 = scalar_lea.vmem %s1, %s478
      %p480 = scmp.eq.s32.totalorder %s31, 2
      %s481 = scalar_select %p480, %s32, 0
      %s482 = smul.u32 64, %s481
      %p483 = scmp.eq.s32.totalorder %s31, 2
      %s484 = scalar_select %p483, %s32, 0
      %s485 = smul.u32 64, %s484
      %p486 = scmp.lt.s32.totalorder %s485, 127
      %s487 = scalar_select %p486, %s485, 127
      %s488 = smul.addr %s487, 8
      %s489 = scalar_lea.vmem %s12, %s488
      %p490 = scmp.eq.s32.totalorder %s31, 2
      %s491 = scalar_select %p490, %s32, 0
      %s492 = smul.u32 64, %s491
      %p494 = scmp.eq.s32.totalorder %s31, 0
      %p495 = scmp.eq.s32.totalorder %s32, 0
      %p496 = pnand %p494, %p495
      %p497 = pneg %p496
      // Predicated region
      $region69: #{tpu_custom_call.1} parent=67 // pred_check
        _
      $region70: #{tpu_custom_call.1} parent=67 // pred_check_branch
        %499 = sbr.rel (%p496) target = $region72
      $region71: #{tpu_custom_call.1} parent=67 // pred_region
        %500 = vst [vmem:[#allocation4] sm:$0x1] 0.0
        %501 = vst [vmem:[#allocation5] sm:$0x1] 0.0
        %502 = vst [vmem:[#allocation6] sm:$0x1] 0.0
        %503 = vst [vmem:[#allocation7] sm:$0x1] 0.0
      $region72: #{tpu_custom_call.1} parent=67 // pred_fallthru
        _
      // Predicated region
      $region73: #{tpu_custom_call.1} parent=67 // pred_check
        %p504 = pneg %p494
      $region74: #{tpu_custom_call.1} parent=67 // pred_check_branch
        %506 = sbr.rel (%p504) target = $region76
      $region75: #{tpu_custom_call.1} parent=67 // pred_region
        %v507 = vld [vmem:[%s469] sm:$0xf]
        %v508 = vld [vmem:[%s469 + $0x4] sm:$0xf]
        %v509 = vld [vmem:[%s469 + $0x8] sm:$0xf]
        %v510 = vld [vmem:[%s469 + $0xc] sm:$0xf]
        %v511 = vld [vmem:[%s469 + $0x10] sm:$0xf]
        %v512 = vld [vmem:[%s469 + $0x14] sm:$0xf]
        %v513 = vld [vmem:[%s469 + $0x18] sm:$0xf]
        %v514 = vld [vmem:[%s469 + $0x1c] sm:$0xf]
        %v515 = vld [vmem:[%s469 + $0x20] sm:$0xf]
        %v516 = vld [vmem:[%s469 + $0x24] sm:$0xf]
        %v517 = vld [vmem:[%s469 + $0x28] sm:$0xf]
        %v518 = vld [vmem:[%s469 + $0x2c] sm:$0xf]
        %v519 = vld [vmem:[%s469 + $0x30] sm:$0xf]
        %v520 = vld [vmem:[%s469 + $0x34] sm:$0xf]
        %v521 = vld [vmem:[%s469 + $0x38] sm:$0xf]
        %v522 = vld [vmem:[%s469 + $0x3c] sm:$0xf]
        %v523 = vld [vmem:[%s469 + $0x40] sm:$0xf]
        %v524 = vld [vmem:[%s469 + $0x44] sm:$0xf]
        %v525 = vld [vmem:[%s469 + $0x48] sm:$0xf]
        %v526 = vld [vmem:[%s469 + $0x4c] sm:$0xf]
        %v527 = vld [vmem:[%s469 + $0x50] sm:$0xf]
        %v528 = vld [vmem:[%s469 + $0x54] sm:$0xf]
        %v529 = vld [vmem:[%s469 + $0x58] sm:$0xf]
        %v530 = vld [vmem:[%s469 + $0x5c] sm:$0xf]
        %v531 = vld [vmem:[%s469 + $0x60] sm:$0xf]
        %v532 = vld [vmem:[%s469 + $0x64] sm:$0xf]
        %v533 = vld [vmem:[%s469 + $0x68] sm:$0xf]
        %v534 = vld [vmem:[%s469 + $0x6c] sm:$0xf]
        %v535 = vld [vmem:[%s469 + $0x70] sm:$0xf]
        %v536 = vld [vmem:[%s469 + $0x74] sm:$0xf]
        %v537 = vld [vmem:[%s469 + $0x78] sm:$0xf]
        %v538 = vld [vmem:[%s469 + $0x7c] sm:$0xf]
        %v539 = vld [vmem:[%s469 + $0x80] sm:$0xf]
        %v540 = vld [vmem:[%s469 + $0x84] sm:$0xf]
        %v541 = vld [vmem:[%s469 + $0x88] sm:$0xf]
        %v542 = vld [vmem:[%s469 + $0x8c] sm:$0xf]
        %v543 = vld [vmem:[%s469 + $0x90] sm:$0xf]
        %v544 = vld [vmem:[%s469 + $0x94] sm:$0xf]
        %v545 = vld [vmem:[%s469 + $0x98] sm:$0xf]
        %v546 = vld [vmem:[%s469 + $0x9c] sm:$0xf]
        %v547 = vld [vmem:[%s469 + $0xa0] sm:$0xf]
        %v548 = vld [vmem:[%s469 + $0xa4] sm:$0xf]
        %v549 = vld [vmem:[%s469 + $0xa8] sm:$0xf]
        %v550 = vld [vmem:[%s469 + $0xac] sm:$0xf]
        %v551 = vld [vmem:[%s469 + $0xb0] sm:$0xf]
        %v552 = vld [vmem:[%s469 + $0xb4] sm:$0xf]
        %v553 = vld [vmem:[%s469 + $0xb8] sm:$0xf]
        %v554 = vld [vmem:[%s469 + $0xbc] sm:$0xf]
        %v555 = vld [vmem:[%s469 + $0xc0] sm:$0xf]
        %v556 = vld [vmem:[%s469 + $0xc4] sm:$0xf]
        %v557 = vld [vmem:[%s469 + $0xc8] sm:$0xf]
        %v558 = vld [vmem:[%s469 + $0xcc] sm:$0xf]
        %v559 = vld [vmem:[%s469 + $0xd0] sm:$0xf]
        %v560 = vld [vmem:[%s469 + $0xd4] sm:$0xf]
        %v561 = vld [vmem:[%s469 + $0xd8] sm:$0xf]
        %v562 = vld [vmem:[%s469 + $0xdc] sm:$0xf]
        %v563 = vld [vmem:[%s469 + $0xe0] sm:$0xf]
        %v564 = vld [vmem:[%s469 + $0xe4] sm:$0xf]
        %v565 = vld [vmem:[%s469 + $0xe8] sm:$0xf]
        %v566 = vld [vmem:[%s469 + $0xec] sm:$0xf]
        %v567 = vld [vmem:[%s469 + $0xf0] sm:$0xf]
        %v568 = vld [vmem:[%s469 + $0xf4] sm:$0xf]
        %v569 = vld [vmem:[%s469 + $0xf8] sm:$0xf]
        %v570 = vld [vmem:[%s469 + $0xfc] sm:$0xf]
        %v571 = vld [vmem:[%s2] sm:$0xf]
        %v572 = vld [vmem:[%s2 + $0x4] sm:$0xf]
        %v573 = vld [vmem:[%s2 + $0x8] sm:$0xf]
        %v574 = vld [vmem:[%s2 + $0xc] sm:$0xf]
        %v575 = vld [vmem:[%s2 + $0x10] sm:$0x1]
        %v640 = vunpack.c.l.b16 %v507
        %v641 = vunpack.c.l.b16 %v508
        %v642 = vunpack.c.l.b16 %v509
        %v643 = vunpack.c.l.b16 %v510
        %v644 = vunpack.c.l.b16 %v511
        %v645 = vunpack.c.l.b16 %v512
        %v646 = vunpack.c.l.b16 %v513
        %v647 = vunpack.c.l.b16 %v514
        %v648 = vunpack.c.l.b16 %v515
        %v649 = vunpack.c.l.b16 %v516
        %v650 = vunpack.c.l.b16 %v517
        %v651 = vunpack.c.l.b16 %v518
        %v652 = vunpack.c.l.b16 %v519
        %v653 = vunpack.c.l.b16 %v520
        %v654 = vunpack.c.l.b16 %v521
        %v655 = vunpack.c.l.b16 %v522
        %v656 = vunpack.c.l.b16 %v523
        %v657 = vunpack.c.l.b16 %v524
        %v658 = vunpack.c.l.b16 %v525
        %v659 = vunpack.c.l.b16 %v526
        %v660 = vunpack.c.l.b16 %v527
        %v661 = vunpack.c.l.b16 %v528
        %v662 = vunpack.c.l.b16 %v529
        %v663 = vunpack.c.l.b16 %v530
        %v664 = vunpack.c.l.b16 %v531
        %v665 = vunpack.c.l.b16 %v532
        %v666 = vunpack.c.l.b16 %v533
        %v667 = vunpack.c.l.b16 %v534
        %v668 = vunpack.c.l.b16 %v535
        %v669 = vunpack.c.l.b16 %v536
        %v670 = vunpack.c.l.b16 %v537
        %v671 = vunpack.c.l.b16 %v538
        %v672 = vunpack.c.l.b16 %v539
        %v673 = vunpack.c.l.b16 %v540
        %v674 = vunpack.c.l.b16 %v541
        %v675 = vunpack.c.l.b16 %v542
        %v676 = vunpack.c.l.b16 %v543
        %v677 = vunpack.c.l.b16 %v544
        %v678 = vunpack.c.l.b16 %v545
        %v679 = vunpack.c.l.b16 %v546
        %v680 = vunpack.c.l.b16 %v547
        %v681 = vunpack.c.l.b16 %v548
        %v682 = vunpack.c.l.b16 %v549
        %v683 = vunpack.c.l.b16 %v550
        %v684 = vunpack.c.l.b16 %v551
        %v685 = vunpack.c.l.b16 %v552
        %v686 = vunpack.c.l.b16 %v553
        %v687 = vunpack.c.l.b16 %v554
        %v688 = vunpack.c.l.b16 %v555
        %v689 = vunpack.c.l.b16 %v556
        %v690 = vunpack.c.l.b16 %v557
        %v691 = vunpack.c.l.b16 %v558
        %v692 = vunpack.c.l.b16 %v559
        %v693 = vunpack.c.l.b16 %v560
        %v694 = vunpack.c.l.b16 %v561
        %v695 = vunpack.c.l.b16 %v562
        %v696 = vunpack.c.l.b16 %v563
        %v697 = vunpack.c.l.b16 %v564
        %v698 = vunpack.c.l.b16 %v565
        %v699 = vunpack.c.l.b16 %v566
        %v700 = vunpack.c.l.b16 %v567
        %v701 = vunpack.c.l.b16 %v568
        %v702 = vunpack.c.l.b16 %v569
        %v703 = vunpack.c.l.b16 %v570
        %v704 = vpack.c.b16 %v641, %v640
        %v705 = vpack.c.b16 %v643, %v642
        %v706 = vpack.c.b16 %v645, %v644
        %v707 = vpack.c.b16 %v647, %v646
        %v708 = vpack.c.b16 %v649, %v648
        %v709 = vpack.c.b16 %v651, %v650
        %v710 = vpack.c.b16 %v653, %v652
        %v711 = vpack.c.b16 %v655, %v654
        %v712 = vpack.c.b16 %v657, %v656
        %v713 = vpack.c.b16 %v659, %v658
        %v714 = vpack.c.b16 %v661, %v660
        %v715 = vpack.c.b16 %v663, %v662
        %v716 = vpack.c.b16 %v665, %v664
        %v717 = vpack.c.b16 %v667, %v666
        %v718 = vpack.c.b16 %v669, %v668
        %v719 = vpack.c.b16 %v671, %v670
        %v720 = vpack.c.b16 %v673, %v672
        %v721 = vpack.c.b16 %v675, %v674
        %v722 = vpack.c.b16 %v677, %v676
        %v723 = vpack.c.b16 %v679, %v678
        %v724 = vpack.c.b16 %v681, %v680
        %v725 = vpack.c.b16 %v683, %v682
        %v726 = vpack.c.b16 %v685, %v684
        %v727 = vpack.c.b16 %v687, %v686
        %v728 = vpack.c.b16 %v689, %v688
        %v729 = vpack.c.b16 %v691, %v690
        %v730 = vpack.c.b16 %v693, %v692
        %v731 = vpack.c.b16 %v695, %v694
        %v732 = vpack.c.b16 %v697, %v696
        %v733 = vpack.c.b16 %v699, %v698
        %v734 = vpack.c.b16 %v701, %v700
        %v735 = vpack.c.b16 %v703, %v702
        %v741 = vunpack.c.l.b16 %v571
        %v742 = vunpack.c.l.b16 %v572
        %v743 = vunpack.c.l.b16 %v573
        %v744 = vunpack.c.l.b16 %v574
        %v745 = vunpack.c.l.b16 %v575
        %v746 = vpack.c.b16 %v742, %v741
        %v747 = vpack.c.b16 %v744, %v743
        %v748 = vpack.c.b16 %v745, %v745
        %vm751 = vcmask 277504
        %v753 = vsel %vm751, %v704, 0
        %v756 = vsel %vm751, %v705, 0
        %v759 = vsel %vm751, %v706, 0
        %v762 = vsel %vm751, %v707, 0
        %v765 = vsel %vm751, %v708, 0
        %v768 = vsel %vm751, %v709, 0
        %v771 = vsel %vm751, %v710, 0
        %v774 = vsel %vm751, %v711, 0
        %v777 = vsel %vm751, %v712, 0
        %v780 = vsel %vm751, %v713, 0
        %v783 = vsel %vm751, %v714, 0
        %v786 = vsel %vm751, %v715, 0
        %v789 = vsel %vm751, %v716, 0
        %v792 = vsel %vm751, %v717, 0
        %v795 = vsel %vm751, %v718, 0
        %v798 = vsel %vm751, %v719, 0
        %v801 = vsel %vm751, %v720, 0
        %v804 = vsel %vm751, %v721, 0
        %v807 = vsel %vm751, %v722, 0
        %v810 = vsel %vm751, %v723, 0
        %v813 = vsel %vm751, %v724, 0
        %v816 = vsel %vm751, %v725, 0
        %v819 = vsel %vm751, %v726, 0
        %v822 = vsel %vm751, %v727, 0
        %v825 = vsel %vm751, %v728, 0
        %v828 = vsel %vm751, %v729, 0
        %v831 = vsel %vm751, %v730, 0
        %v834 = vsel %vm751, %v731, 0
        %v837 = vsel %vm751, %v732, 0
        %v840 = vsel %vm751, %v733, 0
        %v843 = vsel %vm751, %v734, 0
        %v846 = vsel %vm751, %v735, 0
        %vm848 = vcmask 1040384
        %v850 = vsel %vm848, %v748, 0
        %852 = vmatpush.bf16.msra.mxu0 0
        %853 = vmatpush.bf16.msra.mxu0 0
        %854 = vmatpush.bf16.msra.mxu0 0
        %855 = vmatpush.bf16.msra.mxu0 0
        %856 = vmatpush.bf16.msra.mxu0 0
        %857 = vmatpush.bf16.msra.mxu0 %v850
        %858 = vmatpush.bf16.msra.mxu0 %v747
        %859 = vmatpush.bf16.msra.mxu0 %v746
        %860 = vmatmul.bf16.gmra.mxu0 %v753
        %v861 = vpop.f32.mrf.mxu0
        %v862 = vadd.f32 0.0, %v861
        %v863 = vpop.f32.mrf.mxu0
        %v864 = vadd.f32 0.0, %v863
        %865 = vmatmul.bf16.gmra.mxu0 %v756
        %v866 = vpop.f32.mrf.mxu0
        %v867 = vadd.f32 0.0, %v866
        %v868 = vpop.f32.mrf.mxu0
        %v869 = vadd.f32 0.0, %v868
        %870 = vmatmul.bf16.gmra.mxu0 %v759
        %v871 = vpop.f32.mrf.mxu0
        %v872 = vadd.f32 0.0, %v871
        %v873 = vpop.f32.mrf.mxu0
        %v874 = vadd.f32 0.0, %v873
        %875 = vmatmul.bf16.gmra.mxu0 %v762
        %v876 = vpop.f32.mrf.mxu0
        %v877 = vadd.f32 0.0, %v876
        %v878 = vpop.f32.mrf.mxu0
        %v879 = vadd.f32 0.0, %v878
        %880 = vmatmul.bf16.gmra.mxu0 %v765
        %v881 = vpop.f32.mrf.mxu0
        %v882 = vadd.f32 0.0, %v881
        %v883 = vpop.f32.mrf.mxu0
        %v884 = vadd.f32 0.0, %v883
        %885 = vmatmul.bf16.gmra.mxu0 %v768
        %v886 = vpop.f32.mrf.mxu0
        %v887 = vadd.f32 0.0, %v886
        %v888 = vpop.f32.mrf.mxu0
        %v889 = vadd.f32 0.0, %v888
        %890 = vmatmul.bf16.gmra.mxu0 %v771
        %v891 = vpop.f32.mrf.mxu0
        %v892 = vadd.f32 0.0, %v891
        %v893 = vpop.f32.mrf.mxu0
        %v894 = vadd.f32 0.0, %v893
        %895 = vmatmul.bf16.gmra.mxu0 %v774
        %v896 = vpop.f32.mrf.mxu0
        %v897 = vadd.f32 0.0, %v896
        %v898 = vpop.f32.mrf.mxu0
        %v899 = vadd.f32 0.0, %v898
        %900 = vmatmul.bf16.gmra.mxu0 %v777
        %v901 = vpop.f32.mrf.mxu0
        %v902 = vadd.f32 0.0, %v901
        %v903 = vpop.f32.mrf.mxu0
        %v904 = vadd.f32 0.0, %v903
        %905 = vmatmul.bf16.gmra.mxu0 %v780
        %v906 = vpop.f32.mrf.mxu0
        %v907 = vadd.f32 0.0, %v906
        %v908 = vpop.f32.mrf.mxu0
        %v909 = vadd.f32 0.0, %v908
        %910 = vmatmul.bf16.gmra.mxu0 %v783
        %v911 = vpop.f32.mrf.mxu0
        %v912 = vadd.f32 0.0, %v911
        %v913 = vpop.f32.mrf.mxu0
        %v914 = vadd.f32 0.0, %v913
        %915 = vmatmul.bf16.gmra.mxu0 %v786
        %v916 = vpop.f32.mrf.mxu0
        %v917 = vadd.f32 0.0, %v916
        %v918 = vpop.f32.mrf.mxu0
        %v919 = vadd.f32 0.0, %v918
        %920 = vmatmul.bf16.gmra.mxu0 %v789
        %v921 = vpop.f32.mrf.mxu0
        %v922 = vadd.f32 0.0, %v921
        %v923 = vpop.f32.mrf.mxu0
        %v924 = vadd.f32 0.0, %v923
        %925 = vmatmul.bf16.gmra.mxu0 %v792
        %v926 = vpop.f32.mrf.mxu0
        %v927 = vadd.f32 0.0, %v926
        %v928 = vpop.f32.mrf.mxu0
        %v929 = vadd.f32 0.0, %v928
        %930 = vmatmul.bf16.gmra.mxu0 %v795
        %v931 = vpop.f32.mrf.mxu0
        %v932 = vadd.f32 0.0, %v931
        %v933 = vpop.f32.mrf.mxu0
        %v934 = vadd.f32 0.0, %v933
        %935 = vmatmul.bf16.gmra.mxu0 %v798
        %v936 = vpop.f32.mrf.mxu0
        %v937 = vadd.f32 0.0, %v936
        %v938 = vpop.f32.mrf.mxu0
        %v939 = vadd.f32 0.0, %v938
        %940 = vmatmul.bf16.gmra.mxu0 %v801
        %v941 = vpop.f32.mrf.mxu0
        %v942 = vadd.f32 0.0, %v941
        %v943 = vpop.f32.mrf.mxu0
        %v944 = vadd.f32 0.0, %v943
        %945 = vmatmul.bf16.gmra.mxu0 %v804
        %v946 = vpop.f32.mrf.mxu0
        %v947 = vadd.f32 0.0, %v946
        %v948 = vpop.f32.mrf.mxu0
        %v949 = vadd.f32 0.0, %v948
        %950 = vmatmul.bf16.gmra.mxu0 %v807
        %v951 = vpop.f32.mrf.mxu0
        %v952 = vadd.f32 0.0, %v951
        %v953 = vpop.f32.mrf.mxu0
        %v954 = vadd.f32 0.0, %v953
        %955 = vmatmul.bf16.gmra.mxu0 %v810
        %v956 = vpop.f32.mrf.mxu0
        %v957 = vadd.f32 0.0, %v956
        %v958 = vpop.f32.mrf.mxu0
        %v959 = vadd.f32 0.0, %v958
        %960 = vmatmul.bf16.gmra.mxu0 %v813
        %v961 = vpop.f32.mrf.mxu0
        %v962 = vadd.f32 0.0, %v961
        %v963 = vpop.f32.mrf.mxu0
        %v964 = vadd.f32 0.0, %v963
        %965 = vmatmul.bf16.gmra.mxu0 %v816
        %v966 = vpop.f32.mrf.mxu0
        %v967 = vadd.f32 0.0, %v966
        %v968 = vpop.f32.mrf.mxu0
        %v969 = vadd.f32 0.0, %v968
        %970 = vmatmul.bf16.gmra.mxu0 %v819
        %v971 = vpop.f32.mrf.mxu0
        %v972 = vadd.f32 0.0, %v971
        %v973 = vpop.f32.mrf.mxu0
        %v974 = vadd.f32 0.0, %v973
        %975 = vmatmul.bf16.gmra.mxu0 %v822
        %v976 = vpop.f32.mrf.mxu0
        %v977 = vadd.f32 0.0, %v976
        %v978 = vpop.f32.mrf.mxu0
        %v979 = vadd.f32 0.0, %v978
        %980 = vmatmul.bf16.gmra.mxu0 %v825
        %v981 = vpop.f32.mrf.mxu0
        %v982 = vadd.f32 0.0, %v981
        %v983 = vpop.f32.mrf.mxu0
        %v984 = vadd.f32 0.0, %v983
        %985 = vmatmul.bf16.gmra.mxu0 %v828
        %v986 = vpop.f32.mrf.mxu0
        %v987 = vadd.f32 0.0, %v986
        %v988 = vpop.f32.mrf.mxu0
        %v989 = vadd.f32 0.0, %v988
        %990 = vmatmul.bf16.gmra.mxu0 %v831
        %v991 = vpop.f32.mrf.mxu0
        %v992 = vadd.f32 0.0, %v991
        %v993 = vpop.f32.mrf.mxu0
        %v994 = vadd.f32 0.0, %v993
        %995 = vmatmul.bf16.gmra.mxu0 %v834
        %v996 = vpop.f32.mrf.mxu0
        %v997 = vadd.f32 0.0, %v996
        %v998 = vpop.f32.mrf.mxu0
        %v999 = vadd.f32 0.0, %v998
        %1000 = vmatmul.bf16.gmra.mxu0 %v837
        %v1001 = vpop.f32.mrf.mxu0
        %v1002 = vadd.f32 0.0, %v1001
        %v1003 = vpop.f32.mrf.mxu0
        %v1004 = vadd.f32 0.0, %v1003
        %1005 = vmatmul.bf16.gmra.mxu0 %v840
        %v1006 = vpop.f32.mrf.mxu0
        %v1007 = vadd.f32 0.0, %v1006
        %v1008 = vpop.f32.mrf.mxu0
        %v1009 = vadd.f32 0.0, %v1008
        %1010 = vmatmul.bf16.gmra.mxu0 %v843
        %v1011 = vpop.f32.mrf.mxu0
        %v1012 = vadd.f32 0.0, %v1011
        %v1013 = vpop.f32.mrf.mxu0
        %v1014 = vadd.f32 0.0, %v1013
        %1015 = vmatmul.bf16.gmra.mxu0 %v846
        %v1016 = vpop.f32.mrf.mxu0
        %v1017 = vadd.f32 0.0, %v1016
        %v1018 = vpop.f32.mrf.mxu0
        %v1019 = vadd.f32 0.0, %v1018
        %1020 = vdwg.mxu0
        %v1021 = vpack.c.bf16 %v862, %v862
        %v1022 = vpack.c.bf16 %v864, %v864
        %v1023 = vpack.c.bf16 %v867, %v867
        %v1024 = vpack.c.bf16 %v869, %v869
        %v1025 = vpack.c.bf16 %v872, %v872
        %v1026 = vpack.c.bf16 %v874, %v874
        %v1027 = vpack.c.bf16 %v877, %v877
        %v1028 = vpack.c.bf16 %v879, %v879
        %v1029 = vpack.c.bf16 %v882, %v882
        %v1030 = vpack.c.bf16 %v884, %v884
        %v1031 = vpack.c.bf16 %v887, %v887
        %v1032 = vpack.c.bf16 %v889, %v889
        %v1033 = vpack.c.bf16 %v892, %v892
        %v1034 = vpack.c.bf16 %v894, %v894
        %v1035 = vpack.c.bf16 %v897, %v897
        %v1036 = vpack.c.bf16 %v899, %v899
        %v1037 = vpack.c.bf16 %v902, %v902
        %v1038 = vpack.c.bf16 %v904, %v904
        %v1039 = vpack.c.bf16 %v907, %v907
        %v1040 = vpack.c.bf16 %v909, %v909
        %v1041 = vpack.c.bf16 %v912, %v912
        %v1042 = vpack.c.bf16 %v914, %v914
        %v1043 = vpack.c.bf16 %v917, %v917
        %v1044 = vpack.c.bf16 %v919, %v919
        %v1045 = vpack.c.bf16 %v922, %v922
        %v1046 = vpack.c.bf16 %v924, %v924
        %v1047 = vpack.c.bf16 %v927, %v927
        %v1048 = vpack.c.bf16 %v929, %v929
        %v1049 = vpack.c.bf16 %v932, %v932
        %v1050 = vpack.c.bf16 %v934, %v934
        %v1051 = vpack.c.bf16 %v937, %v937
        %v1052 = vpack.c.bf16 %v939, %v939
        %v1053 = vpack.c.bf16 %v942, %v942
        %v1054 = vpack.c.bf16 %v944, %v944
        %v1055 = vpack.c.bf16 %v947, %v947
        %v1056 = vpack.c.bf16 %v949, %v949
        %v1057 = vpack.c.bf16 %v952, %v952
        %v1058 = vpack.c.bf16 %v954, %v954
        %v1059 = vpack.c.bf16 %v957, %v957
        %v1060 = vpack.c.bf16 %v959, %v959
        %v1061 = vpack.c.bf16 %v962, %v962
        %v1062 = vpack.c.bf16 %v964, %v964
        %v1063 = vpack.c.bf16 %v967, %v967
        %v1064 = vpack.c.bf16 %v969, %v969
        %v1065 = vpack.c.bf16 %v972, %v972
        %v1066 = vpack.c.bf16 %v974, %v974
        %v1067 = vpack.c.bf16 %v977, %v977
        %v1068 = vpack.c.bf16 %v979, %v979
        %v1069 = vpack.c.bf16 %v982, %v982
        %v1070 = vpack.c.bf16 %v984, %v984
        %v1071 = vpack.c.bf16 %v987, %v987
        %v1072 = vpack.c.bf16 %v989, %v989
        %v1073 = vpack.c.bf16 %v992, %v992
        %v1074 = vpack.c.bf16 %v994, %v994
        %v1075 = vpack.c.bf16 %v997, %v997
        %v1076 = vpack.c.bf16 %v999, %v999
        %v1077 = vpack.c.bf16 %v1002, %v1002
        %v1078 = vpack.c.bf16 %v1004, %v1004
        %v1079 = vpack.c.bf16 %v1007, %v1007
        %v1080 = vpack.c.bf16 %v1009, %v1009
        %v1081 = vpack.c.bf16 %v1012, %v1012
        %v1082 = vpack.c.bf16 %v1014, %v1014
        %v1083 = vpack.c.bf16 %v1017, %v1017
        %v1084 = vpack.c.bf16 %v1019, %v1019
        %s1085 = smul.u32 %s32, 64
        %s1086 = smul.addr %s1085, 4
        %s1087 = scalar_lea.vmem [#allocation2], %s1086
        %1088 = vst [vmem:[%s1087] sm:$0xf] %v1021
        %1089 = vst [vmem:[%s1087 + $0x4] sm:$0xf] %v1022
        %1090 = vst [vmem:[%s1087 + $0x8] sm:$0xf] %v1023
        %1091 = vst [vmem:[%s1087 + $0xc] sm:$0xf] %v1024
        %1092 = vst [vmem:[%s1087 + $0x10] sm:$0xf] %v1025
        %1093 = vst [vmem:[%s1087 + $0x14] sm:$0xf] %v1026
        %1094 = vst [vmem:[%s1087 + $0x18] sm:$0xf] %v1027
        %1095 = vst [vmem:[%s1087 + $0x1c] sm:$0xf] %v1028
        %1096 = vst [vmem:[%s1087 + $0x20] sm:$0xf] %v1029
        %1097 = vst [vmem:[%s1087 + $0x24] sm:$0xf] %v1030
        %1098 = vst [vmem:[%s1087 + $0x28] sm:$0xf] %v1031
        %1099 = vst [vmem:[%s1087 + $0x2c] sm:$0xf] %v1032
        %1100 = vst [vmem:[%s1087 + $0x30] sm:$0xf] %v1033
        %1101 = vst [vmem:[%s1087 + $0x34] sm:$0xf] %v1034
        %1102 = vst [vmem:[%s1087 + $0x38] sm:$0xf] %v1035
        %1103 = vst [vmem:[%s1087 + $0x3c] sm:$0xf] %v1036
        %1104 = vst [vmem:[%s1087 + $0x40] sm:$0xf] %v1037
        %1105 = vst [vmem:[%s1087 + $0x44] sm:$0xf] %v1038
        %1106 = vst [vmem:[%s1087 + $0x48] sm:$0xf] %v1039
        %1107 = vst [vmem:[%s1087 + $0x4c] sm:$0xf] %v1040
        %1108 = vst [vmem:[%s1087 + $0x50] sm:$0xf] %v1041
        %1109 = vst [vmem:[%s1087 + $0x54] sm:$0xf] %v1042
        %1110 = vst [vmem:[%s1087 + $0x58] sm:$0xf] %v1043
        %1111 = vst [vmem:[%s1087 + $0x5c] sm:$0xf] %v1044
        %1112 = vst [vmem:[%s1087 + $0x60] sm:$0xf] %v1045
        %1113 = vst [vmem:[%s1087 + $0x64] sm:$0xf] %v1046
        %1114 = vst [vmem:[%s1087 + $0x68] sm:$0xf] %v1047
        %1115 = vst [vmem:[%s1087 + $0x6c] sm:$0xf] %v1048
        %1116 = vst [vmem:[%s1087 + $0x70] sm:$0xf] %v1049
        %1117 = vst [vmem:[%s1087 + $0x74] sm:$0xf] %v1050
        %1118 = vst [vmem:[%s1087 + $0x78] sm:$0xf] %v1051
        %1119 = vst [vmem:[%s1087 + $0x7c] sm:$0xf] %v1052
        %1120 = vst [vmem:[%s1087 + $0x80] sm:$0xf] %v1053
        %1121 = vst [vmem:[%s1087 + $0x84] sm:$0xf] %v1054
        %1122 = vst [vmem:[%s1087 + $0x88] sm:$0xf] %v1055
        %1123 = vst [vmem:[%s1087 + $0x8c] sm:$0xf] %v1056
        %1124 = vst [vmem:[%s1087 + $0x90] sm:$0xf] %v1057
        %1125 = vst [vmem:[%s1087 + $0x94] sm:$0xf] %v1058
        %1126 = vst [vmem:[%s1087 + $0x98] sm:$0xf] %v1059
        %1127 = vst [vmem:[%s1087 + $0x9c] sm:$0xf] %v1060
        %1128 = vst [vmem:[%s1087 + $0xa0] sm:$0xf] %v1061
        %1129 = vst [vmem:[%s1087 + $0xa4] sm:$0xf] %v1062
        %1130 = vst [vmem:[%s1087 + $0xa8] sm:$0xf] %v1063
        %1131 = vst [vmem:[%s1087 + $0xac] sm:$0xf] %v1064
        %1132 = vst [vmem:[%s1087 + $0xb0] sm:$0xf] %v1065
        %1133 = vst [vmem:[%s1087 + $0xb4] sm:$0xf] %v1066
        %1134 = vst [vmem:[%s1087 + $0xb8] sm:$0xf] %v1067
        %1135 = vst [vmem:[%s1087 + $0xbc] sm:$0xf] %v1068
        %1136 = vst [vmem:[%s1087 + $0xc0] sm:$0xf] %v1069
        %1137 = vst [vmem:[%s1087 + $0xc4] sm:$0xf] %v1070
        %1138 = vst [vmem:[%s1087 + $0xc8] sm:$0xf] %v1071
        %1139 = vst [vmem:[%s1087 + $0xcc] sm:$0xf] %v1072
        %1140 = vst [vmem:[%s1087 + $0xd0] sm:$0xf] %v1073
        %1141 = vst [vmem:[%s1087 + $0xd4] sm:$0xf] %v1074
        %1142 = vst [vmem:[%s1087 + $0xd8] sm:$0xf] %v1075
        %1143 = vst [vmem:[%s1087 + $0xdc] sm:$0xf] %v1076
        %1144 = vst [vmem:[%s1087 + $0xe0] sm:$0xf] %v1077
        %1145 = vst [vmem:[%s1087 + $0xe4] sm:$0xf] %v1078
        %1146 = vst [vmem:[%s1087 + $0xe8] sm:$0xf] %v1079
        %1147 = vst [vmem:[%s1087 + $0xec] sm:$0xf] %v1080
        %1148 = vst [vmem:[%s1087 + $0xf0] sm:$0xf] %v1081
        %1149 = vst [vmem:[%s1087 + $0xf4] sm:$0xf] %v1082
        %1150 = vst [vmem:[%s1087 + $0xf8] sm:$0xf] %v1083
        %1151 = vst [vmem:[%s1087 + $0xfc] sm:$0xf] %v1084
        %v1152 = vld [vmem:[#allocation4] sm:$0x1]
        %v1153 = vadd.f32 %v862, %v864
        %v1154 = vadd.f32 %v1153, %v867
        %v1155 = vadd.f32 %v1154, %v869
        %v1156 = vadd.f32 %v1155, %v872
        %v1157 = vadd.f32 %v1156, %v874
        %v1158 = vadd.f32 %v1157, %v877
        %v1159 = vadd.f32 %v1158, %v879
        %v1160 = vadd.f32 %v1159, %v882
        %v1161 = vadd.f32 %v1160, %v884
        %v1162 = vadd.f32 %v1161, %v887
        %v1163 = vadd.f32 %v1162, %v889
        %v1164 = vadd.f32 %v1163, %v892
        %v1165 = vadd.f32 %v1164, %v894
        %v1166 = vadd.f32 %v1165, %v897
        %v1167 = vadd.f32 %v1166, %v899
        %v1168 = vadd.f32 %v1167, %v902
        %v1169 = vadd.f32 %v1168, %v904
        %v1170 = vadd.f32 %v1169, %v907
        %v1171 = vadd.f32 %v1170, %v909
        %v1172 = vadd.f32 %v1171, %v912
        %v1173 = vadd.f32 %v1172, %v914
        %v1174 = vadd.f32 %v1173, %v917
        %v1175 = vadd.f32 %v1174, %v919
        %v1176 = vadd.f32 %v1175, %v922
        %v1177 = vadd.f32 %v1176, %v924
        %v1178 = vadd.f32 %v1177, %v927
        %v1179 = vadd.f32 %v1178, %v929
        %v1180 = vadd.f32 %v1179, %v932
        %v1181 = vadd.f32 %v1180, %v934
        %v1182 = vadd.f32 %v1181, %v937
        %v1183 = vadd.f32 %v1182, %v939
        %v1184 = vadd.f32 %v1183, %v942
        %v1185 = vadd.f32 %v1184, %v944
        %v1186 = vadd.f32 %v1185, %v947
        %v1187 = vadd.f32 %v1186, %v949
        %v1188 = vadd.f32 %v1187, %v952
        %v1189 = vadd.f32 %v1188, %v954
        %v1190 = vadd.f32 %v1189, %v957
        %v1191 = vadd.f32 %v1190, %v959
        %v1192 = vadd.f32 %v1191, %v962
        %v1193 = vadd.f32 %v1192, %v964
        %v1194 = vadd.f32 %v1193, %v967
        %v1195 = vadd.f32 %v1194, %v969
        %v1196 = vadd.f32 %v1195, %v972
        %v1197 = vadd.f32 %v1196, %v974
        %v1198 = vadd.f32 %v1197, %v977
        %v1199 = vadd.f32 %v1198, %v979
        %v1200 = vadd.f32 %v1199, %v982
        %v1201 = vadd.f32 %v1200, %v984
        %v1202 = vadd.f32 %v1201, %v987
        %v1203 = vadd.f32 %v1202, %v989
        %v1204 = vadd.f32 %v1203, %v992
        %v1205 = vadd.f32 %v1204, %v994
        %v1206 = vadd.f32 %v1205, %v997
        %v1207 = vadd.f32 %v1206, %v999
        %v1208 = vadd.f32 %v1207, %v1002
        %v1209 = vadd.f32 %v1208, %v1004
        %v1210 = vadd.f32 %v1209, %v1007
        %v1211 = vadd.f32 %v1210, %v1009
        %v1212 = vadd.f32 %v1211, %v1012
        %v1213 = vadd.f32 %v1212, %v1014
        %v1214 = vadd.f32 %v1213, %v1017
        %v1215 = vadd.f32 %v1214, %v1019
        %v1216 = vrot.slane %v1215, 4
        %v1217 = vadd.f32 %v1215, %v1216
        %v1218 = vrot.slane %v1217, 2
        %v1219 = vadd.f32 %v1217, %v1218
        %v1220 = vrot.slane %v1219, 1
        %v1221 = vadd.f32 %v1219, %v1220
        %v1222 = vadd.f32 %v1152, %v1221
        %1223 = vst [vmem:[#allocation4] sm:$0x1] %v1222
        %v1224 = vld [vmem:[#allocation5] sm:$0x1]
        %v1225 = vmul.f32 %v862, %v862
        %v1226 = vmul.f32 %v864, %v864
        %v1227 = vmul.f32 %v867, %v867
        %v1228 = vmul.f32 %v869, %v869
        %v1229 = vmul.f32 %v872, %v872
        %v1230 = vmul.f32 %v874, %v874
        %v1231 = vmul.f32 %v877, %v877
        %v1232 = vmul.f32 %v879, %v879
        %v1233 = vmul.f32 %v882, %v882
        %v1234 = vmul.f32 %v884, %v884
        %v1235 = vmul.f32 %v887, %v887
        %v1236 = vmul.f32 %v889, %v889
        %v1237 = vmul.f32 %v892, %v892
        %v1238 = vmul.f32 %v894, %v894
        %v1239 = vmul.f32 %v897, %v897
        %v1240 = vmul.f32 %v899, %v899
        %v1241 = vmul.f32 %v902, %v902
        %v1242 = vmul.f32 %v904, %v904
        %v1243 = vmul.f32 %v907, %v907
        %v1244 = vmul.f32 %v909, %v909
        %v1245 = vmul.f32 %v912, %v912
        %v1246 = vmul.f32 %v914, %v914
        %v1247 = vmul.f32 %v917, %v917
        %v1248 = vmul.f32 %v919, %v919
        %v1249 = vmul.f32 %v922, %v922
        %v1250 = vmul.f32 %v924, %v924
        %v1251 = vmul.f32 %v927, %v927
        %v1252 = vmul.f32 %v929, %v929
        %v1253 = vmul.f32 %v932, %v932
        %v1254 = vmul.f32 %v934, %v934
        %v1255 = vmul.f32 %v937, %v937
        %v1256 = vmul.f32 %v939, %v939
        %v1257 = vmul.f32 %v942, %v942
        %v1258 = vmul.f32 %v944, %v944
        %v1259 = vmul.f32 %v947, %v947
        %v1260 = vmul.f32 %v949, %v949
        %v1261 = vmul.f32 %v952, %v952
        %v1262 = vmul.f32 %v954, %v954
        %v1263 = vmul.f32 %v957, %v957
        %v1264 = vmul.f32 %v959, %v959
        %v1265 = vmul.f32 %v962, %v962
        %v1266 = vmul.f32 %v964, %v964
        %v1267 = vmul.f32 %v967, %v967
        %v1268 = vmul.f32 %v969, %v969
        %v1269 = vmul.f32 %v972, %v972
        %v1270 = vmul.f32 %v974, %v974
        %v1271 = vmul.f32 %v977, %v977
        %v1272 = vmul.f32 %v979, %v979
        %v1273 = vmul.f32 %v982, %v982
        %v1274 = vmul.f32 %v984, %v984
        %v1275 = vmul.f32 %v987, %v987
        %v1276 = vmul.f32 %v989, %v989
        %v1277 = vmul.f32 %v992, %v992
        %v1278 = vmul.f32 %v994, %v994
        %v1279 = vmul.f32 %v997, %v997
        %v1280 = vmul.f32 %v999, %v999
        %v1281 = vmul.f32 %v1002, %v1002
        %v1282 = vmul.f32 %v1004, %v1004
        %v1283 = vmul.f32 %v1007, %v1007
        %v1284 = vmul.f32 %v1009, %v1009
        %v1285 = vmul.f32 %v1012, %v1012
        %v1286 = vmul.f32 %v1014, %v1014
        %v1287 = vmul.f32 %v1017, %v1017
        %v1288 = vmul.f32 %v1019, %v1019
        %v1289 = vadd.f32 %v1225, %v1226
        %v1290 = vadd.f32 %v1289, %v1227
        %v1291 = vadd.f32 %v1290, %v1228
        %v1292 = vadd.f32 %v1291, %v1229
        %v1293 = vadd.f32 %v1292, %v1230
        %v1294 = vadd.f32 %v1293, %v1231
        %v1295 = vadd.f32 %v1294, %v1232
        %v1296 = vadd.f32 %v1295, %v1233
        %v1297 = vadd.f32 %v1296, %v1234
        %v1298 = vadd.f32 %v1297, %v1235
        %v1299 = vadd.f32 %v1298, %v1236
        %v1300 = vadd.f32 %v1299, %v1237
        %v1301 = vadd.f32 %v1300, %v1238
        %v1302 = vadd.f32 %v1301, %v1239
        %v1303 = vadd.f32 %v1302, %v1240
        %v1304 = vadd.f32 %v1303, %v1241
        %v1305 = vadd.f32 %v1304, %v1242
        %v1306 = vadd.f32 %v1305, %v1243
        %v1307 = vadd.f32 %v1306, %v1244
        %v1308 = vadd.f32 %v1307, %v1245
        %v1309 = vadd.f32 %v1308, %v1246
        %v1310 = vadd.f32 %v1309, %v1247
        %v1311 = vadd.f32 %v1310, %v1248
        %v1312 = vadd.f32 %v1311, %v1249
        %v1313 = vadd.f32 %v1312, %v1250
        %v1314 = vadd.f32 %v1313, %v1251
        %v1315 = vadd.f32 %v1314, %v1252
        %v1316 = vadd.f32 %v1315, %v1253
        %v1317 = vadd.f32 %v1316, %v1254
        %v1318 = vadd.f32 %v1317, %v1255
        %v1319 = vadd.f32 %v1318, %v1256
        %v1320 = vadd.f32 %v1319, %v1257
        %v1321 = vadd.f32 %v1320, %v1258
        %v1322 = vadd.f32 %v1321, %v1259
        %v1323 = vadd.f32 %v1322, %v1260
        %v1324 = vadd.f32 %v1323, %v1261
        %v1325 = vadd.f32 %v1324, %v1262
        %v1326 = vadd.f32 %v1325, %v1263
        %v1327 = vadd.f32 %v1326, %v1264
        %v1328 = vadd.f32 %v1327, %v1265
        %v1329 = vadd.f32 %v1328, %v1266
        %v1330 = vadd.f32 %v1329, %v1267
        %v1331 = vadd.f32 %v1330, %v1268
        %v1332 = vadd.f32 %v1331, %v1269
        %v1333 = vadd.f32 %v1332, %v1270
        %v1334 = vadd.f32 %v1333, %v1271
        %v1335 = vadd.f32 %v1334, %v1272
        %v1336 = vadd.f32 %v1335, %v1273
        %v1337 = vadd.f32 %v1336, %v1274
        %v1338 = vadd.f32 %v1337, %v1275
        %v1339 = vadd.f32 %v1338, %v1276
        %v1340 = vadd.f32 %v1339, %v1277
        %v1341 = vadd.f32 %v1340, %v1278
        %v1342 = vadd.f32 %v1341, %v1279
        %v1343 = vadd.f32 %v1342, %v1280
        %v1344 = vadd.f32 %v1343, %v1281
        %v1345 = vadd.f32 %v1344, %v1282
        %v1346 = vadd.f32 %v1345, %v1283
        %v1347 = vadd.f32 %v1346, %v1284
        %v1348 = vadd.f32 %v1347, %v1285
        %v1349 = vadd.f32 %v1348, %v1286
        %v1350 = vadd.f32 %v1349, %v1287
        %v1351 = vadd.f32 %v1350, %v1288
        %v1352 = vrot.slane %v1351, 4
        %v1353 = vadd.f32 %v1351, %v1352
        %v1354 = vrot.slane %v1353, 2
        %v1355 = vadd.f32 %v1353, %v1354
        %v1356 = vrot.slane %v1355, 1
        %v1357 = vadd.f32 %v1355, %v1356
        %v1358 = vadd.f32 %v1224, %v1357
        %1359 = vst [vmem:[#allocation5] sm:$0x1] %v1358
      $region76: #{tpu_custom_call.1} parent=67 // pred_fallthru
        _
      %p1360 = scmp.eq.s32.totalorder %s31, 1
      %p1361 = pnand %p1360, %p495
      %p1362 = pneg %p1361
      // Predicated region
      $region77: #{tpu_custom_call.1} parent=67 // pred_check
        _
      $region78: #{tpu_custom_call.1} parent=67 // pred_check_branch
        %1364 = sbr.rel (%p1361) target = $region80
      $region79: #{tpu_custom_call.1} parent=67 // pred_region
        %v1365 = vld [vmem:[#allocation4] sm:$0x1]
        %v1366 = vmul.f32 %v1365, 0.0009765625
        %v1367 = vld [vmem:[#allocation5] sm:$0x1]
        %v1368 = vmul.f32 %v1367, 0.0009765625
        %v1369 = vmul.f32 %v1366, %v1366
        %v1370 = vsub.f32 %v1368, %v1369
        %v1371 = vmax.f32 %v1370, 0.0
        %v1372 = vld [vmem:[%s3] sm:$0x1]
        %v1373 = vadd.f32 %v1371, 1e-05
        %v1374 = vrsqrt.pop %v1373
        %v1375 = vmul.f32 %v1374, %v1373
        %v1376 = vmul.f32 %v1375, %v1374
        %v1377 = vmul.f32 0.5, %v1376
        %v1378 = vsub.f32 1.5, %v1377
        %v1379 = vmul.f32 %v1374, %v1378
        %vm1380 = vweird.f32 %v1373
        %vm1381 = vweird.f32 %v1374
        %vm1382 = vmor %vm1380, %vm1381
        %v1383 = vsel %vm1382, %v1374, %v1379
        %v1384 = vmul.f32 %v1372, %v1383
        %1385 = vst [vmem:[#allocation4] sm:$0x1] %v1384
        %v1386 = vld [vmem:[%s4] sm:$0x1]
        %v1387 = vmul.f32 %v1366, %v1384
        %v1388 = vsub.f32 %v1386, %v1387
        %1389 = vst [vmem:[#allocation5] sm:$0x1] %v1388
      $region80: #{tpu_custom_call.1} parent=67 // pred_fallthru
        _
      // Predicated region
      $region81: #{tpu_custom_call.1} parent=67 // pred_check
        %p1390 = pneg %p1360
      $region82: #{tpu_custom_call.1} parent=67 // pred_check_branch
        %1392 = sbr.rel (%p1390) target = $region84
      $region83: #{tpu_custom_call.1} parent=67 // pred_region
        %s1393 = smul.u32 %s32, 64
        %s1394 = smul.addr %s1393, 4
        %s1395 = scalar_lea.vmem [#allocation2], %s1394
        %v1396 = vld [vmem:[%s1395] sm:$0xf]
        %v1397 = vld [vmem:[%s1395 + $0x4] sm:$0xf]
        %v1398 = vld [vmem:[%s1395 + $0x8] sm:$0xf]
        %v1399 = vld [vmem:[%s1395 + $0xc] sm:$0xf]
        %v1400 = vld [vmem:[%s1395 + $0x10] sm:$0xf]
        %v1401 = vld [vmem:[%s1395 + $0x14] sm:$0xf]
        %v1402 = vld [vmem:[%s1395 + $0x18] sm:$0xf]
        %v1403 = vld [vmem:[%s1395 + $0x1c] sm:$0xf]
        %v1404 = vld [vmem:[%s1395 + $0x20] sm:$0xf]
        %v1405 = vld [vmem:[%s1395 + $0x24] sm:$0xf]
        %v1406 = vld [vmem:[%s1395 + $0x28] sm:$0xf]
        %v1407 = vld [vmem:[%s1395 + $0x2c] sm:$0xf]
        %v1408 = vld [vmem:[%s1395 + $0x30] sm:$0xf]
        %v1409 = vld [vmem:[%s1395 + $0x34] sm:$0xf]
        %v1410 = vld [vmem:[%s1395 + $0x38] sm:$0xf]
        %v1411 = vld [vmem:[%s1395 + $0x3c] sm:$0xf]
        %v1412 = vld [vmem:[%s1395 + $0x40] sm:$0xf]
        %v1413 = vld [vmem:[%s1395 + $0x44] sm:$0xf]
        %v1414 = vld [vmem:[%s1395 + $0x48] sm:$0xf]
        %v1415 = vld [vmem:[%s1395 + $0x4c] sm:$0xf]
        %v1416 = vld [vmem:[%s1395 + $0x50] sm:$0xf]
        %v1417 = vld [vmem:[%s1395 + $0x54] sm:$0xf]
        %v1418 = vld [vmem:[%s1395 + $0x58] sm:$0xf]
        %v1419 = vld [vmem:[%s1395 + $0x5c] sm:$0xf]
        %v1420 = vld [vmem:[%s1395 + $0x60] sm:$0xf]
        %v1421 = vld [vmem:[%s1395 + $0x64] sm:$0xf]
        %v1422 = vld [vmem:[%s1395 + $0x68] sm:$0xf]
        %v1423 = vld [vmem:[%s1395 + $0x6c] sm:$0xf]
        %v1424 = vld [vmem:[%s1395 + $0x70] sm:$0xf]
        %v1425 = vld [vmem:[%s1395 + $0x74] sm:$0xf]
        %v1426 = vld [vmem:[%s1395 + $0x78] sm:$0xf]
        %v1427 = vld [vmem:[%s1395 + $0x7c] sm:$0xf]
        %v1428 = vld [vmem:[%s1395 + $0x80] sm:$0xf]
        %v1429 = vld [vmem:[%s1395 + $0x84] sm:$0xf]
        %v1430 = vld [vmem:[%s1395 + $0x88] sm:$0xf]
        %v1431 = vld [vmem:[%s1395 + $0x8c] sm:$0xf]
        %v1432 = vld [vmem:[%s1395 + $0x90] sm:$0xf]
        %v1433 = vld [vmem:[%s1395 + $0x94] sm:$0xf]
        %v1434 = vld [vmem:[%s1395 + $0x98] sm:$0xf]
        %v1435 = vld [vmem:[%s1395 + $0x9c] sm:$0xf]
        %v1436 = vld [vmem:[%s1395 + $0xa0] sm:$0xf]
        %v1437 = vld [vmem:[%s1395 + $0xa4] sm:$0xf]
        %v1438 = vld [vmem:[%s1395 + $0xa8] sm:$0xf]
        %v1439 = vld [vmem:[%s1395 + $0xac] sm:$0xf]
        %v1440 = vld [vmem:[%s1395 + $0xb0] sm:$0xf]
        %v1441 = vld [vmem:[%s1395 + $0xb4] sm:$0xf]
        %v1442 = vld [vmem:[%s1395 + $0xb8] sm:$0xf]
        %v1443 = vld [vmem:[%s1395 + $0xbc] sm:$0xf]
        %v1444 = vld [vmem:[%s1395 + $0xc0] sm:$0xf]
        %v1445 = vld [vmem:[%s1395 + $0xc4] sm:$0xf]
        %v1446 = vld [vmem:[%s1395 + $0xc8] sm:$0xf]
        %v1447 = vld [vmem:[%s1395 + $0xcc] sm:$0xf]
        %v1448 = vld [vmem:[%s1395 + $0xd0] sm:$0xf]
        %v1449 = vld [vmem:[%s1395 + $0xd4] sm:$0xf]
        %v1450 = vld [vmem:[%s1395 + $0xd8] sm:$0xf]
        %v1451 = vld [vmem:[%s1395 + $0xdc] sm:$0xf]
        %v1452 = vld [vmem:[%s1395 + $0xe0] sm:$0xf]
        %v1453 = vld [vmem:[%s1395 + $0xe4] sm:$0xf]
        %v1454 = vld [vmem:[%s1395 + $0xe8] sm:$0xf]
        %v1455 = vld [vmem:[%s1395 + $0xec] sm:$0xf]
        %v1456 = vld [vmem:[%s1395 + $0xf0] sm:$0xf]
        %v1457 = vld [vmem:[%s1395 + $0xf4] sm:$0xf]
        %v1458 = vld [vmem:[%s1395 + $0xf8] sm:$0xf]
        %v1459 = vld [vmem:[%s1395 + $0xfc] sm:$0xf]
        %v1460 = vunpack.c.l.bf16 %v1396
        %v1461 = vunpack.c.l.bf16 %v1397
        %v1462 = vunpack.c.l.bf16 %v1398
        %v1463 = vunpack.c.l.bf16 %v1399
        %v1464 = vunpack.c.l.bf16 %v1400
        %v1465 = vunpack.c.l.bf16 %v1401
        %v1466 = vunpack.c.l.bf16 %v1402
        %v1467 = vunpack.c.l.bf16 %v1403
        %v1468 = vunpack.c.l.bf16 %v1404
        %v1469 = vunpack.c.l.bf16 %v1405
        %v1470 = vunpack.c.l.bf16 %v1406
        %v1471 = vunpack.c.l.bf16 %v1407
        %v1472 = vunpack.c.l.bf16 %v1408
        %v1473 = vunpack.c.l.bf16 %v1409
        %v1474 = vunpack.c.l.bf16 %v1410
        %v1475 = vunpack.c.l.bf16 %v1411
        %v1476 = vunpack.c.l.bf16 %v1412
        %v1477 = vunpack.c.l.bf16 %v1413
        %v1478 = vunpack.c.l.bf16 %v1414
        %v1479 = vunpack.c.l.bf16 %v1415
        %v1480 = vunpack.c.l.bf16 %v1416
        %v1481 = vunpack.c.l.bf16 %v1417
        %v1482 = vunpack.c.l.bf16 %v1418
        %v1483 = vunpack.c.l.bf16 %v1419
        %v1484 = vunpack.c.l.bf16 %v1420
        %v1485 = vunpack.c.l.bf16 %v1421
        %v1486 = vunpack.c.l.bf16 %v1422
        %v1487 = vunpack.c.l.bf16 %v1423
        %v1488 = vunpack.c.l.bf16 %v1424
        %v1489 = vunpack.c.l.bf16 %v1425
        %v1490 = vunpack.c.l.bf16 %v1426
        %v1491 = vunpack.c.l.bf16 %v1427
        %v1492 = vunpack.c.l.bf16 %v1428
        %v1493 = vunpack.c.l.bf16 %v1429
        %v1494 = vunpack.c.l.bf16 %v1430
        %v1495 = vunpack.c.l.bf16 %v1431
        %v1496 = vunpack.c.l.bf16 %v1432
        %v1497 = vunpack.c.l.bf16 %v1433
        %v1498 = vunpack.c.l.bf16 %v1434
        %v1499 = vunpack.c.l.bf16 %v1435
        %v1500 = vunpack.c.l.bf16 %v1436
        %v1501 = vunpack.c.l.bf16 %v1437
        %v1502 = vunpack.c.l.bf16 %v1438
        %v1503 = vunpack.c.l.bf16 %v1439
        %v1504 = vunpack.c.l.bf16 %v1440
        %v1505 = vunpack.c.l.bf16 %v1441
        %v1506 = vunpack.c.l.bf16 %v1442
        %v1507 = vunpack.c.l.bf16 %v1443
        %v1508 = vunpack.c.l.bf16 %v1444
        %v1509 = vunpack.c.l.bf16 %v1445
        %v1510 = vunpack.c.l.bf16 %v1446
        %v1511 = vunpack.c.l.bf16 %v1447
        %v1512 = vunpack.c.l.bf16 %v1448
        %v1513 = vunpack.c.l.bf16 %v1449
        %v1514 = vunpack.c.l.bf16 %v1450
        %v1515 = vunpack.c.l.bf16 %v1451
        %v1516 = vunpack.c.l.bf16 %v1452
        %v1517 = vunpack.c.l.bf16 %v1453
        %v1518 = vunpack.c.l.bf16 %v1454
        %v1519 = vunpack.c.l.bf16 %v1455
        %v1520 = vunpack.c.l.bf16 %v1456
        %v1521 = vunpack.c.l.bf16 %v1457
        %v1522 = vunpack.c.l.bf16 %v1458
        %v1523 = vunpack.c.l.bf16 %v1459
        %v1524 = vld [vmem:[#allocation4] sm:$0x1]
        %v1526 = vperm.slane %v1524, 0
        %v1528 = vmul.f32 %v1460, %v1526
        %v1529 = vmul.f32 %v1461, %v1526
        %v1530 = vmul.f32 %v1462, %v1526
        %v1531 = vmul.f32 %v1463, %v1526
        %v1532 = vmul.f32 %v1464, %v1526
        %v1533 = vmul.f32 %v1465, %v1526
        %v1534 = vmul.f32 %v1466, %v1526
        %v1535 = vmul.f32 %v1467, %v1526
        %v1536 = vmul.f32 %v1468, %v1526
        %v1537 = vmul.f32 %v1469, %v1526
        %v1538 = vmul.f32 %v1470, %v1526
        %v1539 = vmul.f32 %v1471, %v1526
        %v1540 = vmul.f32 %v1472, %v1526
        %v1541 = vmul.f32 %v1473, %v1526
        %v1542 = vmul.f32 %v1474, %v1526
        %v1543 = vmul.f32 %v1475, %v1526
        %v1544 = vmul.f32 %v1476, %v1526
        %v1545 = vmul.f32 %v1477, %v1526
        %v1546 = vmul.f32 %v1478, %v1526
        %v1547 = vmul.f32 %v1479, %v1526
        %v1548 = vmul.f32 %v1480, %v1526
        %v1549 = vmul.f32 %v1481, %v1526
        %v1550 = vmul.f32 %v1482, %v1526
        %v1551 = vmul.f32 %v1483, %v1526
        %v1552 = vmul.f32 %v1484, %v1526
        %v1553 = vmul.f32 %v1485, %v1526
        %v1554 = vmul.f32 %v1486, %v1526
        %v1555 = vmul.f32 %v1487, %v1526
        %v1556 = vmul.f32 %v1488, %v1526
        %v1557 = vmul.f32 %v1489, %v1526
        %v1558 = vmul.f32 %v1490, %v1526
        %v1559 = vmul.f32 %v1491, %v1526
        %v1560 = vmul.f32 %v1492, %v1526
        %v1561 = vmul.f32 %v1493, %v1526
        %v1562 = vmul.f32 %v1494, %v1526
        %v1563 = vmul.f32 %v1495, %v1526
        %v1564 = vmul.f32 %v1496, %v1526
        %v1565 = vmul.f32 %v1497, %v1526
        %v1566 = vmul.f32 %v1498, %v1526
        %v1567 = vmul.f32 %v1499, %v1526
        %v1568 = vmul.f32 %v1500, %v1526
        %v1569 = vmul.f32 %v1501, %v1526
        %v1570 = vmul.f32 %v1502, %v1526
        %v1571 = vmul.f32 %v1503, %v1526
        %v1572 = vmul.f32 %v1504, %v1526
        %v1573 = vmul.f32 %v1505, %v1526
        %v1574 = vmul.f32 %v1506, %v1526
        %v1575 = vmul.f32 %v1507, %v1526
        %v1576 = vmul.f32 %v1508, %v1526
        %v1577 = vmul.f32 %v1509, %v1526
        %v1578 = vmul.f32 %v1510, %v1526
        %v1579 = vmul.f32 %v1511, %v1526
        %v1580 = vmul.f32 %v1512, %v1526
        %v1581 = vmul.f32 %v1513, %v1526
        %v1582 = vmul.f32 %v1514, %v1526
        %v1583 = vmul.f32 %v1515, %v1526
        %v1584 = vmul.f32 %v1516, %v1526
        %v1585 = vmul.f32 %v1517, %v1526
        %v1586 = vmul.f32 %v1518, %v1526
        %v1587 = vmul.f32 %v1519, %v1526
        %v1588 = vmul.f32 %v1520, %v1526
        %v1589 = vmul.f32 %v1521, %v1526
        %v1590 = vmul.f32 %v1522, %v1526
        %v1591 = vmul.f32 %v1523, %v1526
        %v1592 = vld [vmem:[#allocation5] sm:$0x1]
        %v1594 = vperm.slane %v1592, 0
        %v1596 = vadd.f32 %v1528, %v1594
        %v1597 = vadd.f32 %v1529, %v1594
        %v1598 = vadd.f32 %v1530, %v1594
        %v1599 = vadd.f32 %v1531, %v1594
        %v1600 = vadd.f32 %v1532, %v1594
        %v1601 = vadd.f32 %v1533, %v1594
        %v1602 = vadd.f32 %v1534, %v1594
        %v1603 = vadd.f32 %v1535, %v1594
        %v1604 = vadd.f32 %v1536, %v1594
        %v1605 = vadd.f32 %v1537, %v1594
        %v1606 = vadd.f32 %v1538, %v1594
        %v1607 = vadd.f32 %v1539, %v1594
        %v1608 = vadd.f32 %v1540, %v1594
        %v1609 = vadd.f32 %v1541, %v1594
        %v1610 = vadd.f32 %v1542, %v1594
        %v1611 = vadd.f32 %v1543, %v1594
        %v1612 = vadd.f32 %v1544, %v1594
        %v1613 = vadd.f32 %v1545, %v1594
        %v1614 = vadd.f32 %v1546, %v1594
        %v1615 = vadd.f32 %v1547, %v1594
        %v1616 = vadd.f32 %v1548, %v1594
        %v1617 = vadd.f32 %v1549, %v1594
        %v1618 = vadd.f32 %v1550, %v1594
        %v1619 = vadd.f32 %v1551, %v1594
        %v1620 = vadd.f32 %v1552, %v1594
        %v1621 = vadd.f32 %v1553, %v1594
        %v1622 = vadd.f32 %v1554, %v1594
        %v1623 = vadd.f32 %v1555, %v1594
        %v1624 = vadd.f32 %v1556, %v1594
        %v1625 = vadd.f32 %v1557, %v1594
        %v1626 = vadd.f32 %v1558, %v1594
        %v1627 = vadd.f32 %v1559, %v1594
        %v1628 = vadd.f32 %v1560, %v1594
        %v1629 = vadd.f32 %v1561, %v1594
        %v1630 = vadd.f32 %v1562, %v1594
        %v1631 = vadd.f32 %v1563, %v1594
        %v1632 = vadd.f32 %v1564, %v1594
        %v1633 = vadd.f32 %v1565, %v1594
        %v1634 = vadd.f32 %v1566, %v1594
        %v1635 = vadd.f32 %v1567, %v1594
        %v1636 = vadd.f32 %v1568, %v1594
        %v1637 = vadd.f32 %v1569, %v1594
        %v1638 = vadd.f32 %v1570, %v1594
        %v1639 = vadd.f32 %v1571, %v1594
        %v1640 = vadd.f32 %v1572, %v1594
        %v1641 = vadd.f32 %v1573, %v1594
        %v1642 = vadd.f32 %v1574, %v1594
        %v1643 = vadd.f32 %v1575, %v1594
        %v1644 = vadd.f32 %v1576, %v1594
        %v1645 = vadd.f32 %v1577, %v1594
        %v1646 = vadd.f32 %v1578, %v1594
        %v1647 = vadd.f32 %v1579, %v1594
        %v1648 = vadd.f32 %v1580, %v1594
        %v1649 = vadd.f32 %v1581, %v1594
        %v1650 = vadd.f32 %v1582, %v1594
        %v1651 = vadd.f32 %v1583, %v1594
        %v1652 = vadd.f32 %v1584, %v1594
        %v1653 = vadd.f32 %v1585, %v1594
        %v1654 = vadd.f32 %v1586, %v1594
        %v1655 = vadd.f32 %v1587, %v1594
        %v1656 = vadd.f32 %v1588, %v1594
        %v1657 = vadd.f32 %v1589, %v1594
        %v1658 = vadd.f32 %v1590, %v1594
        %v1659 = vadd.f32 %v1591, %v1594
        %v1660 = vmax.f32 %v1596, 0.0
        %v1661 = vmax.f32 %v1597, 0.0
        %v1662 = vmax.f32 %v1598, 0.0
        %v1663 = vmax.f32 %v1599, 0.0
        %v1664 = vmax.f32 %v1600, 0.0
        %v1665 = vmax.f32 %v1601, 0.0
        %v1666 = vmax.f32 %v1602, 0.0
        %v1667 = vmax.f32 %v1603, 0.0
        %v1668 = vmax.f32 %v1604, 0.0
        %v1669 = vmax.f32 %v1605, 0.0
        %v1670 = vmax.f32 %v1606, 0.0
        %v1671 = vmax.f32 %v1607, 0.0
        %v1672 = vmax.f32 %v1608, 0.0
        %v1673 = vmax.f32 %v1609, 0.0
        %v1674 = vmax.f32 %v1610, 0.0
        %v1675 = vmax.f32 %v1611, 0.0
        %v1676 = vmax.f32 %v1612, 0.0
        %v1677 = vmax.f32 %v1613, 0.0
        %v1678 = vmax.f32 %v1614, 0.0
        %v1679 = vmax.f32 %v1615, 0.0
        %v1680 = vmax.f32 %v1616, 0.0
        %v1681 = vmax.f32 %v1617, 0.0
        %v1682 = vmax.f32 %v1618, 0.0
        %v1683 = vmax.f32 %v1619, 0.0
        %v1684 = vmax.f32 %v1620, 0.0
        %v1685 = vmax.f32 %v1621, 0.0
        %v1686 = vmax.f32 %v1622, 0.0
        %v1687 = vmax.f32 %v1623, 0.0
        %v1688 = vmax.f32 %v1624, 0.0
        %v1689 = vmax.f32 %v1625, 0.0
        %v1690 = vmax.f32 %v1626, 0.0
        %v1691 = vmax.f32 %v1627, 0.0
        %v1692 = vmax.f32 %v1628, 0.0
        %v1693 = vmax.f32 %v1629, 0.0
        %v1694 = vmax.f32 %v1630, 0.0
        %v1695 = vmax.f32 %v1631, 0.0
        %v1696 = vmax.f32 %v1632, 0.0
        %v1697 = vmax.f32 %v1633, 0.0
        %v1698 = vmax.f32 %v1634, 0.0
        %v1699 = vmax.f32 %v1635, 0.0
        %v1700 = vmax.f32 %v1636, 0.0
        %v1701 = vmax.f32 %v1637, 0.0
        %v1702 = vmax.f32 %v1638, 0.0
        %v1703 = vmax.f32 %v1639, 0.0
        %v1704 = vmax.f32 %v1640, 0.0
        %v1705 = vmax.f32 %v1641, 0.0
        %v1706 = vmax.f32 %v1642, 0.0
        %v1707 = vmax.f32 %v1643, 0.0
        %v1708 = vmax.f32 %v1644, 0.0
        %v1709 = vmax.f32 %v1645, 0.0
        %v1710 = vmax.f32 %v1646, 0.0
        %v1711 = vmax.f32 %v1647, 0.0
        %v1712 = vmax.f32 %v1648, 0.0
        %v1713 = vmax.f32 %v1649, 0.0
        %v1714 = vmax.f32 %v1650, 0.0
        %v1715 = vmax.f32 %v1651, 0.0
        %v1716 = vmax.f32 %v1652, 0.0
        %v1717 = vmax.f32 %v1653, 0.0
        %v1718 = vmax.f32 %v1654, 0.0
        %v1719 = vmax.f32 %v1655, 0.0
        %v1720 = vmax.f32 %v1656, 0.0
        %v1721 = vmax.f32 %v1657, 0.0
        %v1722 = vmax.f32 %v1658, 0.0
        %v1723 = vmax.f32 %v1659, 0.0
        %v1724 = vpack.c.bf16 %v1661, %v1660
        %v1725 = vpack.c.bf16 %v1663, %v1662
        %v1726 = vpack.c.bf16 %v1665, %v1664
        %v1727 = vpack.c.bf16 %v1667, %v1666
        %v1728 = vpack.c.bf16 %v1669, %v1668
        %v1729 = vpack.c.bf16 %v1671, %v1670
        %v1730 = vpack.c.bf16 %v1673, %v1672
        %v1731 = vpack.c.bf16 %v1675, %v1674
        %v1732 = vpack.c.bf16 %v1677, %v1676
        %v1733 = vpack.c.bf16 %v1679, %v1678
        %v1734 = vpack.c.bf16 %v1681, %v1680
        %v1735 = vpack.c.bf16 %v1683, %v1682
        %v1736 = vpack.c.bf16 %v1685, %v1684
        %v1737 = vpack.c.bf16 %v1687, %v1686
        %v1738 = vpack.c.bf16 %v1689, %v1688
        %v1739 = vpack.c.bf16 %v1691, %v1690
        %v1740 = vpack.c.bf16 %v1693, %v1692
        %v1741 = vpack.c.bf16 %v1695, %v1694
        %v1742 = vpack.c.bf16 %v1697, %v1696
        %v1743 = vpack.c.bf16 %v1699, %v1698
        %v1744 = vpack.c.bf16 %v1701, %v1700
        %v1745 = vpack.c.bf16 %v1703, %v1702
        %v1746 = vpack.c.bf16 %v1705, %v1704
        %v1747 = vpack.c.bf16 %v1707, %v1706
        %v1748 = vpack.c.bf16 %v1709, %v1708
        %v1749 = vpack.c.bf16 %v1711, %v1710
        %v1750 = vpack.c.bf16 %v1713, %v1712
        %v1751 = vpack.c.bf16 %v1715, %v1714
        %v1752 = vpack.c.bf16 %v1717, %v1716
        %v1753 = vpack.c.bf16 %v1719, %v1718
        %v1754 = vpack.c.bf16 %v1721, %v1720
        %v1755 = vpack.c.bf16 %v1723, %v1722
        %v1756 = vld [vmem:[%s5] sm:$0xf]
        %v1757 = vld [vmem:[%s5 + $0x4] sm:$0xf]
        %v1758 = vld [vmem:[%s5 + $0x8] sm:$0xf]
        %v1759 = vld [vmem:[%s5 + $0xc] sm:$0xf]
        %v1760 = vld [vmem:[%s5 + $0x10] sm:$0xf]
        %v1761 = vld [vmem:[%s5 + $0x14] sm:$0xf]
        %v1762 = vld [vmem:[%s5 + $0x18] sm:$0xf]
        %v1763 = vld [vmem:[%s5 + $0x1c] sm:$0xf]
        %v1764 = vld [vmem:[%s5 + $0x20] sm:$0xf]
        %v1765 = vld [vmem:[%s5 + $0x24] sm:$0xf]
        %v1766 = vld [vmem:[%s5 + $0x28] sm:$0xf]
        %v1767 = vld [vmem:[%s5 + $0x2c] sm:$0xf]
        %v1768 = vld [vmem:[%s5 + $0x30] sm:$0xf]
        %v1769 = vld [vmem:[%s5 + $0x34] sm:$0xf]
        %v1770 = vld [vmem:[%s5 + $0x38] sm:$0xf]
        %v1771 = vld [vmem:[%s5 + $0x3c] sm:$0xf]
        %v1788 = vunpack.c.l.b16 %v1756
        %v1789 = vunpack.c.l.b16 %v1757
        %v1790 = vunpack.c.l.b16 %v1758
        %v1791 = vunpack.c.l.b16 %v1759
        %v1792 = vunpack.c.l.b16 %v1760
        %v1793 = vunpack.c.l.b16 %v1761
        %v1794 = vunpack.c.l.b16 %v1762
        %v1795 = vunpack.c.l.b16 %v1763
        %v1796 = vunpack.c.l.b16 %v1764
        %v1797 = vunpack.c.l.b16 %v1765
        %v1798 = vunpack.c.l.b16 %v1766
        %v1799 = vunpack.c.l.b16 %v1767
        %v1800 = vunpack.c.l.b16 %v1768
        %v1801 = vunpack.c.l.b16 %v1769
        %v1802 = vunpack.c.l.b16 %v1770
        %v1803 = vunpack.c.l.b16 %v1771
        %v1804 = vpack.c.b16 %v1789, %v1788
        %v1805 = vpack.c.b16 %v1791, %v1790
        %v1806 = vpack.c.b16 %v1793, %v1792
        %v1807 = vpack.c.b16 %v1795, %v1794
        %v1808 = vpack.c.b16 %v1797, %v1796
        %v1809 = vpack.c.b16 %v1799, %v1798
        %v1810 = vpack.c.b16 %v1801, %v1800
        %v1811 = vpack.c.b16 %v1803, %v1802
        %1820 = vmatpush.bf16.msra.mxu0 %v1811
        %1821 = vmatpush.bf16.msra.mxu0 %v1810
        %1822 = vmatpush.bf16.msra.mxu0 %v1809
        %1823 = vmatpush.bf16.msra.mxu0 %v1808
        %1824 = vmatpush.bf16.msra.mxu0 %v1807
        %1825 = vmatpush.bf16.msra.mxu0 %v1806
        %1826 = vmatpush.bf16.msra.mxu0 %v1805
        %1827 = vmatpush.bf16.msra.mxu0 %v1804
        %1828 = vmatmul.bf16.gmra.mxu0 %v1724
        %v1829 = vpop.f32.mrf.mxu0
        %v1830 = vadd.f32 0.0, %v1829
        %v1831 = vpop.f32.mrf.mxu0
        %v1832 = vadd.f32 0.0, %v1831
        %1833 = vmatmul.bf16.gmra.mxu0 %v1725
        %v1834 = vpop.f32.mrf.mxu0
        %v1835 = vadd.f32 0.0, %v1834
        %v1836 = vpop.f32.mrf.mxu0
        %v1837 = vadd.f32 0.0, %v1836
        %1838 = vmatmul.bf16.gmra.mxu0 %v1726
        %v1839 = vpop.f32.mrf.mxu0
        %v1840 = vadd.f32 0.0, %v1839
        %v1841 = vpop.f32.mrf.mxu0
        %v1842 = vadd.f32 0.0, %v1841
        %1843 = vmatmul.bf16.gmra.mxu0 %v1727
        %v1844 = vpop.f32.mrf.mxu0
        %v1845 = vadd.f32 0.0, %v1844
        %v1846 = vpop.f32.mrf.mxu0
        %v1847 = vadd.f32 0.0, %v1846
        %1848 = vmatmul.bf16.gmra.mxu0 %v1728
        %v1849 = vpop.f32.mrf.mxu0
        %v1850 = vadd.f32 0.0, %v1849
        %v1851 = vpop.f32.mrf.mxu0
        %v1852 = vadd.f32 0.0, %v1851
        %1853 = vmatmul.bf16.gmra.mxu0 %v1729
        %v1854 = vpop.f32.mrf.mxu0
        %v1855 = vadd.f32 0.0, %v1854
        %v1856 = vpop.f32.mrf.mxu0
        %v1857 = vadd.f32 0.0, %v1856
        %1858 = vmatmul.bf16.gmra.mxu0 %v1730
        %v1859 = vpop.f32.mrf.mxu0
        %v1860 = vadd.f32 0.0, %v1859
        %v1861 = vpop.f32.mrf.mxu0
        %v1862 = vadd.f32 0.0, %v1861
        %1863 = vmatmul.bf16.gmra.mxu0 %v1731
        %v1864 = vpop.f32.mrf.mxu0
        %v1865 = vadd.f32 0.0, %v1864
        %v1866 = vpop.f32.mrf.mxu0
        %v1867 = vadd.f32 0.0, %v1866
        %1868 = vmatmul.bf16.gmra.mxu0 %v1732
        %v1869 = vpop.f32.mrf.mxu0
        %v1870 = vadd.f32 0.0, %v1869
        %v1871 = vpop.f32.mrf.mxu0
        %v1872 = vadd.f32 0.0, %v1871
        %1873 = vmatmul.bf16.gmra.mxu0 %v1733
        %v1874 = vpop.f32.mrf.mxu0
        %v1875 = vadd.f32 0.0, %v1874
        %v1876 = vpop.f32.mrf.mxu0
        %v1877 = vadd.f32 0.0, %v1876
        %1878 = vmatmul.bf16.gmra.mxu0 %v1734
        %v1879 = vpop.f32.mrf.mxu0
        %v1880 = vadd.f32 0.0, %v1879
        %v1881 = vpop.f32.mrf.mxu0
        %v1882 = vadd.f32 0.0, %v1881
        %1883 = vmatmul.bf16.gmra.mxu0 %v1735
        %v1884 = vpop.f32.mrf.mxu0
        %v1885 = vadd.f32 0.0, %v1884
        %v1886 = vpop.f32.mrf.mxu0
        %v1887 = vadd.f32 0.0, %v1886
        %1888 = vmatmul.bf16.gmra.mxu0 %v1736
        %v1889 = vpop.f32.mrf.mxu0
        %v1890 = vadd.f32 0.0, %v1889
        %v1891 = vpop.f32.mrf.mxu0
        %v1892 = vadd.f32 0.0, %v1891
        %1893 = vmatmul.bf16.gmra.mxu0 %v1737
        %v1894 = vpop.f32.mrf.mxu0
        %v1895 = vadd.f32 0.0, %v1894
        %v1896 = vpop.f32.mrf.mxu0
        %v1897 = vadd.f32 0.0, %v1896
        %1898 = vmatmul.bf16.gmra.mxu0 %v1738
        %v1899 = vpop.f32.mrf.mxu0
        %v1900 = vadd.f32 0.0, %v1899
        %v1901 = vpop.f32.mrf.mxu0
        %v1902 = vadd.f32 0.0, %v1901
        %1903 = vmatmul.bf16.gmra.mxu0 %v1739
        %v1904 = vpop.f32.mrf.mxu0
        %v1905 = vadd.f32 0.0, %v1904
        %v1906 = vpop.f32.mrf.mxu0
        %v1907 = vadd.f32 0.0, %v1906
        %1908 = vmatmul.bf16.gmra.mxu0 %v1740
        %v1909 = vpop.f32.mrf.mxu0
        %v1910 = vadd.f32 0.0, %v1909
        %v1911 = vpop.f32.mrf.mxu0
        %v1912 = vadd.f32 0.0, %v1911
        %1913 = vmatmul.bf16.gmra.mxu0 %v1741
        %v1914 = vpop.f32.mrf.mxu0
        %v1915 = vadd.f32 0.0, %v1914
        %v1916 = vpop.f32.mrf.mxu0
        %v1917 = vadd.f32 0.0, %v1916
        %1918 = vmatmul.bf16.gmra.mxu0 %v1742
        %v1919 = vpop.f32.mrf.mxu0
        %v1920 = vadd.f32 0.0, %v1919
        %v1921 = vpop.f32.mrf.mxu0
        %v1922 = vadd.f32 0.0, %v1921
        %1923 = vmatmul.bf16.gmra.mxu0 %v1743
        %v1924 = vpop.f32.mrf.mxu0
        %v1925 = vadd.f32 0.0, %v1924
        %v1926 = vpop.f32.mrf.mxu0
        %v1927 = vadd.f32 0.0, %v1926
        %1928 = vmatmul.bf16.gmra.mxu0 %v1744
        %v1929 = vpop.f32.mrf.mxu0
        %v1930 = vadd.f32 0.0, %v1929
        %v1931 = vpop.f32.mrf.mxu0
        %v1932 = vadd.f32 0.0, %v1931
        %1933 = vmatmul.bf16.gmra.mxu0 %v1745
        %v1934 = vpop.f32.mrf.mxu0
        %v1935 = vadd.f32 0.0, %v1934
        %v1936 = vpop.f32.mrf.mxu0
        %v1937 = vadd.f32 0.0, %v1936
        %1938 = vmatmul.bf16.gmra.mxu0 %v1746
        %v1939 = vpop.f32.mrf.mxu0
        %v1940 = vadd.f32 0.0, %v1939
        %v1941 = vpop.f32.mrf.mxu0
        %v1942 = vadd.f32 0.0, %v1941
        %1943 = vmatmul.bf16.gmra.mxu0 %v1747
        %v1944 = vpop.f32.mrf.mxu0
        %v1945 = vadd.f32 0.0, %v1944
        %v1946 = vpop.f32.mrf.mxu0
        %v1947 = vadd.f32 0.0, %v1946
        %1948 = vmatmul.bf16.gmra.mxu0 %v1748
        %v1949 = vpop.f32.mrf.mxu0
        %v1950 = vadd.f32 0.0, %v1949
        %v1951 = vpop.f32.mrf.mxu0
        %v1952 = vadd.f32 0.0, %v1951
        %1953 = vmatmul.bf16.gmra.mxu0 %v1749
        %v1954 = vpop.f32.mrf.mxu0
        %v1955 = vadd.f32 0.0, %v1954
        %v1956 = vpop.f32.mrf.mxu0
        %v1957 = vadd.f32 0.0, %v1956
        %1958 = vmatmul.bf16.gmra.mxu0 %v1750
        %v1959 = vpop.f32.mrf.mxu0
        %v1960 = vadd.f32 0.0, %v1959
        %v1961 = vpop.f32.mrf.mxu0
        %v1962 = vadd.f32 0.0, %v1961
        %1963 = vmatmul.bf16.gmra.mxu0 %v1751
        %v1964 = vpop.f32.mrf.mxu0
        %v1965 = vadd.f32 0.0, %v1964
        %v1966 = vpop.f32.mrf.mxu0
        %v1967 = vadd.f32 0.0, %v1966
        %1968 = vmatmul.bf16.gmra.mxu0 %v1752
        %v1969 = vpop.f32.mrf.mxu0
        %v1970 = vadd.f32 0.0, %v1969
        %v1971 = vpop.f32.mrf.mxu0
        %v1972 = vadd.f32 0.0, %v1971
        %1973 = vmatmul.bf16.gmra.mxu0 %v1753
        %v1974 = vpop.f32.mrf.mxu0
        %v1975 = vadd.f32 0.0, %v1974
        %v1976 = vpop.f32.mrf.mxu0
        %v1977 = vadd.f32 0.0, %v1976
        %1978 = vmatmul.bf16.gmra.mxu0 %v1754
        %v1979 = vpop.f32.mrf.mxu0
        %v1980 = vadd.f32 0.0, %v1979
        %v1981 = vpop.f32.mrf.mxu0
        %v1982 = vadd.f32 0.0, %v1981
        %1983 = vmatmul.bf16.gmra.mxu0 %v1755
        %v1984 = vpop.f32.mrf.mxu0
        %v1985 = vadd.f32 0.0, %v1984
        %v1986 = vpop.f32.mrf.mxu0
        %v1987 = vadd.f32 0.0, %v1986
        %1988 = vdwg.mxu0
        %v1989 = vpack.c.bf16 %v1830, %v1830
        %v1990 = vpack.c.bf16 %v1832, %v1832
        %v1991 = vpack.c.bf16 %v1835, %v1835
        %v1992 = vpack.c.bf16 %v1837, %v1837
        %v1993 = vpack.c.bf16 %v1840, %v1840
        %v1994 = vpack.c.bf16 %v1842, %v1842
        %v1995 = vpack.c.bf16 %v1845, %v1845
        %v1996 = vpack.c.bf16 %v1847, %v1847
        %v1997 = vpack.c.bf16 %v1850, %v1850
        %v1998 = vpack.c.bf16 %v1852, %v1852
        %v1999 = vpack.c.bf16 %v1855, %v1855
        %v2000 = vpack.c.bf16 %v1857, %v1857
        %v2001 = vpack.c.bf16 %v1860, %v1860
        %v2002 = vpack.c.bf16 %v1862, %v1862
        %v2003 = vpack.c.bf16 %v1865, %v1865
        %v2004 = vpack.c.bf16 %v1867, %v1867
        %v2005 = vpack.c.bf16 %v1870, %v1870
        %v2006 = vpack.c.bf16 %v1872, %v1872
        %v2007 = vpack.c.bf16 %v1875, %v1875
        %v2008 = vpack.c.bf16 %v1877, %v1877
        %v2009 = vpack.c.bf16 %v1880, %v1880
        %v2010 = vpack.c.bf16 %v1882, %v1882
        %v2011 = vpack.c.bf16 %v1885, %v1885
        %v2012 = vpack.c.bf16 %v1887, %v1887
        %v2013 = vpack.c.bf16 %v1890, %v1890
        %v2014 = vpack.c.bf16 %v1892, %v1892
        %v2015 = vpack.c.bf16 %v1895, %v1895
        %v2016 = vpack.c.bf16 %v1897, %v1897
        %v2017 = vpack.c.bf16 %v1900, %v1900
        %v2018 = vpack.c.bf16 %v1902, %v1902
        %v2019 = vpack.c.bf16 %v1905, %v1905
        %v2020 = vpack.c.bf16 %v1907, %v1907
        %v2021 = vpack.c.bf16 %v1910, %v1910
        %v2022 = vpack.c.bf16 %v1912, %v1912
        %v2023 = vpack.c.bf16 %v1915, %v1915
        %v2024 = vpack.c.bf16 %v1917, %v1917
        %v2025 = vpack.c.bf16 %v1920, %v1920
        %v2026 = vpack.c.bf16 %v1922, %v1922
        %v2027 = vpack.c.bf16 %v1925, %v1925
        %v2028 = vpack.c.bf16 %v1927, %v1927
        %v2029 = vpack.c.bf16 %v1930, %v1930
        %v2030 = vpack.c.bf16 %v1932, %v1932
        %v2031 = vpack.c.bf16 %v1935, %v1935
        %v2032 = vpack.c.bf16 %v1937, %v1937
        %v2033 = vpack.c.bf16 %v1940, %v1940
        %v2034 = vpack.c.bf16 %v1942, %v1942
        %v2035 = vpack.c.bf16 %v1945, %v1945
        %v2036 = vpack.c.bf16 %v1947, %v1947
        %v2037 = vpack.c.bf16 %v1950, %v1950
        %v2038 = vpack.c.bf16 %v1952, %v1952
        %v2039 = vpack.c.bf16 %v1955, %v1955
        %v2040 = vpack.c.bf16 %v1957, %v1957
        %v2041 = vpack.c.bf16 %v1960, %v1960
        %v2042 = vpack.c.bf16 %v1962, %v1962
        %v2043 = vpack.c.bf16 %v1965, %v1965
        %v2044 = vpack.c.bf16 %v1967, %v1967
        %v2045 = vpack.c.bf16 %v1970, %v1970
        %v2046 = vpack.c.bf16 %v1972, %v1972
        %v2047 = vpack.c.bf16 %v1975, %v1975
        %v2048 = vpack.c.bf16 %v1977, %v1977
        %v2049 = vpack.c.bf16 %v1980, %v1980
        %v2050 = vpack.c.bf16 %v1982, %v1982
        %v2051 = vpack.c.bf16 %v1985, %v1985
        %v2052 = vpack.c.bf16 %v1987, %v1987
        %s2053 = smul.addr %s1393, 4
        %s2054 = scalar_lea.vmem [#allocation3], %s2053
        %2055 = vst [vmem:[%s2054] sm:$0xf] %v1989
        %2056 = vst [vmem:[%s2054 + $0x4] sm:$0xf] %v1990
        %2057 = vst [vmem:[%s2054 + $0x8] sm:$0xf] %v1991
        %2058 = vst [vmem:[%s2054 + $0xc] sm:$0xf] %v1992
        %2059 = vst [vmem:[%s2054 + $0x10] sm:$0xf] %v1993
        %2060 = vst [vmem:[%s2054 + $0x14] sm:$0xf] %v1994
        %2061 = vst [vmem:[%s2054 + $0x18] sm:$0xf] %v1995
        %2062 = vst [vmem:[%s2054 + $0x1c] sm:$0xf] %v1996
        %2063 = vst [vmem:[%s2054 + $0x20] sm:$0xf] %v1997
        %2064 = vst [vmem:[%s2054 + $0x24] sm:$0xf] %v1998
        %2065 = vst [vmem:[%s2054 + $0x28] sm:$0xf] %v1999
        %2066 = vst [vmem:[%s2054 + $0x2c] sm:$0xf] %v2000
        %2067 = vst [vmem:[%s2054 + $0x30] sm:$0xf] %v2001
        %2068 = vst [vmem:[%s2054 + $0x34] sm:$0xf] %v2002
        %2069 = vst [vmem:[%s2054 + $0x38] sm:$0xf] %v2003
        %2070 = vst [vmem:[%s2054 + $0x3c] sm:$0xf] %v2004
        %2071 = vst [vmem:[%s2054 + $0x40] sm:$0xf] %v2005
        %2072 = vst [vmem:[%s2054 + $0x44] sm:$0xf] %v2006
        %2073 = vst [vmem:[%s2054 + $0x48] sm:$0xf] %v2007
        %2074 = vst [vmem:[%s2054 + $0x4c] sm:$0xf] %v2008
        %2075 = vst [vmem:[%s2054 + $0x50] sm:$0xf] %v2009
        %2076 = vst [vmem:[%s2054 + $0x54] sm:$0xf] %v2010
        %2077 = vst [vmem:[%s2054 + $0x58] sm:$0xf] %v2011
        %2078 = vst [vmem:[%s2054 + $0x5c] sm:$0xf] %v2012
        %2079 = vst [vmem:[%s2054 + $0x60] sm:$0xf] %v2013
        %2080 = vst [vmem:[%s2054 + $0x64] sm:$0xf] %v2014
        %2081 = vst [vmem:[%s2054 + $0x68] sm:$0xf] %v2015
        %2082 = vst [vmem:[%s2054 + $0x6c] sm:$0xf] %v2016
        %2083 = vst [vmem:[%s2054 + $0x70] sm:$0xf] %v2017
        %2084 = vst [vmem:[%s2054 + $0x74] sm:$0xf] %v2018
        %2085 = vst [vmem:[%s2054 + $0x78] sm:$0xf] %v2019
        %2086 = vst [vmem:[%s2054 + $0x7c] sm:$0xf] %v2020
        %2087 = vst [vmem:[%s2054 + $0x80] sm:$0xf] %v2021
        %2088 = vst [vmem:[%s2054 + $0x84] sm:$0xf] %v2022
        %2089 = vst [vmem:[%s2054 + $0x88] sm:$0xf] %v2023
        %2090 = vst [vmem:[%s2054 + $0x8c] sm:$0xf] %v2024
        %2091 = vst [vmem:[%s2054 + $0x90] sm:$0xf] %v2025
        %2092 = vst [vmem:[%s2054 + $0x94] sm:$0xf] %v2026
        %2093 = vst [vmem:[%s2054 + $0x98] sm:$0xf] %v2027
        %2094 = vst [vmem:[%s2054 + $0x9c] sm:$0xf] %v2028
        %2095 = vst [vmem:[%s2054 + $0xa0] sm:$0xf] %v2029
        %2096 = vst [vmem:[%s2054 + $0xa4] sm:$0xf] %v2030
        %2097 = vst [vmem:[%s2054 + $0xa8] sm:$0xf] %v2031
        %2098 = vst [vmem:[%s2054 + $0xac] sm:$0xf] %v2032
        %2099 = vst [vmem:[%s2054 + $0xb0] sm:$0xf] %v2033
        %2100 = vst [vmem:[%s2054 + $0xb4] sm:$0xf] %v2034
        %2101 = vst [vmem:[%s2054 + $0xb8] sm:$0xf] %v2035
        %2102 = vst [vmem:[%s2054 + $0xbc] sm:$0xf] %v2036
        %2103 = vst [vmem:[%s2054 + $0xc0] sm:$0xf] %v2037
        %2104 = vst [vmem:[%s2054 + $0xc4] sm:$0xf] %v2038
        %2105 = vst [vmem:[%s2054 + $0xc8] sm:$0xf] %v2039
        %2106 = vst [vmem:[%s2054 + $0xcc] sm:$0xf] %v2040
        %2107 = vst [vmem:[%s2054 + $0xd0] sm:$0xf] %v2041
        %2108 = vst [vmem:[%s2054 + $0xd4] sm:$0xf] %v2042
        %2109 = vst [vmem:[%s2054 + $0xd8] sm:$0xf] %v2043
        %2110 = vst [vmem:[%s2054 + $0xdc] sm:$0xf] %v2044
        %2111 = vst [vmem:[%s2054 + $0xe0] sm:$0xf] %v2045
        %2112 = vst [vmem:[%s2054 + $0xe4] sm:$0xf] %v2046
        %2113 = vst [vmem:[%s2054 + $0xe8] sm:$0xf] %v2047
        %2114 = vst [vmem:[%s2054 + $0xec] sm:$0xf] %v2048
        %2115 = vst [vmem:[%s2054 + $0xf0] sm:$0xf] %v2049
        %2116 = vst [vmem:[%s2054 + $0xf4] sm:$0xf] %v2050
        %2117 = vst [vmem:[%s2054 + $0xf8] sm:$0xf] %v2051
        %2118 = vst [vmem:[%s2054 + $0xfc] sm:$0xf] %v2052
        %v2119 = vld [vmem:[#allocation6] sm:$0x1]
        %v2120 = vadd.f32 %v1830, %v1832
        %v2121 = vadd.f32 %v2120, %v1835
        %v2122 = vadd.f32 %v2121, %v1837
        %v2123 = vadd.f32 %v2122, %v1840
        %v2124 = vadd.f32 %v2123, %v1842
        %v2125 = vadd.f32 %v2124, %v1845
        %v2126 = vadd.f32 %v2125, %v1847
        %v2127 = vadd.f32 %v2126, %v1850
        %v2128 = vadd.f32 %v2127, %v1852
        %v2129 = vadd.f32 %v2128, %v1855
        %v2130 = vadd.f32 %v2129, %v1857
        %v2131 = vadd.f32 %v2130, %v1860
        %v2132 = vadd.f32 %v2131, %v1862
        %v2133 = vadd.f32 %v2132, %v1865
        %v2134 = vadd.f32 %v2133, %v1867
        %v2135 = vadd.f32 %v2134, %v1870
        %v2136 = vadd.f32 %v2135, %v1872
        %v2137 = vadd.f32 %v2136, %v1875
        %v2138 = vadd.f32 %v2137, %v1877
        %v2139 = vadd.f32 %v2138, %v1880
        %v2140 = vadd.f32 %v2139, %v1882
        %v2141 = vadd.f32 %v2140, %v1885
        %v2142 = vadd.f32 %v2141, %v1887
        %v2143 = vadd.f32 %v2142, %v1890
        %v2144 = vadd.f32 %v2143, %v1892
        %v2145 = vadd.f32 %v2144, %v1895
        %v2146 = vadd.f32 %v2145, %v1897
        %v2147 = vadd.f32 %v2146, %v1900
        %v2148 = vadd.f32 %v2147, %v1902
        %v2149 = vadd.f32 %v2148, %v1905
        %v2150 = vadd.f32 %v2149, %v1907
        %v2151 = vadd.f32 %v2150, %v1910
        %v2152 = vadd.f32 %v2151, %v1912
        %v2153 = vadd.f32 %v2152, %v1915
        %v2154 = vadd.f32 %v2153, %v1917
        %v2155 = vadd.f32 %v2154, %v1920
        %v2156 = vadd.f32 %v2155, %v1922
        %v2157 = vadd.f32 %v2156, %v1925
        %v2158 = vadd.f32 %v2157, %v1927
        %v2159 = vadd.f32 %v2158, %v1930
        %v2160 = vadd.f32 %v2159, %v1932
        %v2161 = vadd.f32 %v2160, %v1935
        %v2162 = vadd.f32 %v2161, %v1937
        %v2163 = vadd.f32 %v2162, %v1940
        %v2164 = vadd.f32 %v2163, %v1942
        %v2165 = vadd.f32 %v2164, %v1945
        %v2166 = vadd.f32 %v2165, %v1947
        %v2167 = vadd.f32 %v2166, %v1950
        %v2168 = vadd.f32 %v2167, %v1952
        %v2169 = vadd.f32 %v2168, %v1955
        %v2170 = vadd.f32 %v2169, %v1957
        %v2171 = vadd.f32 %v2170, %v1960
        %v2172 = vadd.f32 %v2171, %v1962
        %v2173 = vadd.f32 %v2172, %v1965
        %v2174 = vadd.f32 %v2173, %v1967
        %v2175 = vadd.f32 %v2174, %v1970
        %v2176 = vadd.f32 %v2175, %v1972
        %v2177 = vadd.f32 %v2176, %v1975
        %v2178 = vadd.f32 %v2177, %v1977
        %v2179 = vadd.f32 %v2178, %v1980
        %v2180 = vadd.f32 %v2179, %v1982
        %v2181 = vadd.f32 %v2180, %v1985
        %v2182 = vadd.f32 %v2181, %v1987
        %v2183 = vrot.slane %v2182, 4
        %v2184 = vadd.f32 %v2182, %v2183
        %v2185 = vrot.slane %v2184, 2
        %v2186 = vadd.f32 %v2184, %v2185
        %v2187 = vrot.slane %v2186, 1
        %v2188 = vadd.f32 %v2186, %v2187
        %v2189 = vadd.f32 %v2119, %v2188
        %2190 = vst [vmem:[#allocation6] sm:$0x1] %v2189
        %v2191 = vld [vmem:[#allocation7] sm:$0x1]
        %v2192 = vmul.f32 %v1830, %v1830
        %v2193 = vmul.f32 %v1832, %v1832
        %v2194 = vmul.f32 %v1835, %v1835
        %v2195 = vmul.f32 %v1837, %v1837
        %v2196 = vmul.f32 %v1840, %v1840
        %v2197 = vmul.f32 %v1842, %v1842
        %v2198 = vmul.f32 %v1845, %v1845
        %v2199 = vmul.f32 %v1847, %v1847
        %v2200 = vmul.f32 %v1850, %v1850
        %v2201 = vmul.f32 %v1852, %v1852
        %v2202 = vmul.f32 %v1855, %v1855
        %v2203 = vmul.f32 %v1857, %v1857
        %v2204 = vmul.f32 %v1860, %v1860
        %v2205 = vmul.f32 %v1862, %v1862
        %v2206 = vmul.f32 %v1865, %v1865
        %v2207 = vmul.f32 %v1867, %v1867
        %v2208 = vmul.f32 %v1870, %v1870
        %v2209 = vmul.f32 %v1872, %v1872
        %v2210 = vmul.f32 %v1875, %v1875
        %v2211 = vmul.f32 %v1877, %v1877
        %v2212 = vmul.f32 %v1880, %v1880
        %v2213 = vmul.f32 %v1882, %v1882
        %v2214 = vmul.f32 %v1885, %v1885
        %v2215 = vmul.f32 %v1887, %v1887
        %v2216 = vmul.f32 %v1890, %v1890
        %v2217 = vmul.f32 %v1892, %v1892
        %v2218 = vmul.f32 %v1895, %v1895
        %v2219 = vmul.f32 %v1897, %v1897
        %v2220 = vmul.f32 %v1900, %v1900
        %v2221 = vmul.f32 %v1902, %v1902
        %v2222 = vmul.f32 %v1905, %v1905
        %v2223 = vmul.f32 %v1907, %v1907
        %v2224 = vmul.f32 %v1910, %v1910
        %v2225 = vmul.f32 %v1912, %v1912
        %v2226 = vmul.f32 %v1915, %v1915
        %v2227 = vmul.f32 %v1917, %v1917
        %v2228 = vmul.f32 %v1920, %v1920
        %v2229 = vmul.f32 %v1922, %v1922
        %v2230 = vmul.f32 %v1925, %v1925
        %v2231 = vmul.f32 %v1927, %v1927
        %v2232 = vmul.f32 %v1930, %v1930
        %v2233 = vmul.f32 %v1932, %v1932
        %v2234 = vmul.f32 %v1935, %v1935
        %v2235 = vmul.f32 %v1937, %v1937
        %v2236 = vmul.f32 %v1940, %v1940
        %v2237 = vmul.f32 %v1942, %v1942
        %v2238 = vmul.f32 %v1945, %v1945
        %v2239 = vmul.f32 %v1947, %v1947
        %v2240 = vmul.f32 %v1950, %v1950
        %v2241 = vmul.f32 %v1952, %v1952
        %v2242 = vmul.f32 %v1955, %v1955
        %v2243 = vmul.f32 %v1957, %v1957
        %v2244 = vmul.f32 %v1960, %v1960
        %v2245 = vmul.f32 %v1962, %v1962
        %v2246 = vmul.f32 %v1965, %v1965
        %v2247 = vmul.f32 %v1967, %v1967
        %v2248 = vmul.f32 %v1970, %v1970
        %v2249 = vmul.f32 %v1972, %v1972
        %v2250 = vmul.f32 %v1975, %v1975
        %v2251 = vmul.f32 %v1977, %v1977
        %v2252 = vmul.f32 %v1980, %v1980
        %v2253 = vmul.f32 %v1982, %v1982
        %v2254 = vmul.f32 %v1985, %v1985
        %v2255 = vmul.f32 %v1987, %v1987
        %v2256 = vadd.f32 %v2192, %v2193
        %v2257 = vadd.f32 %v2256, %v2194
        %v2258 = vadd.f32 %v2257, %v2195
        %v2259 = vadd.f32 %v2258, %v2196
        %v2260 = vadd.f32 %v2259, %v2197
        %v2261 = vadd.f32 %v2260, %v2198
        %v2262 = vadd.f32 %v2261, %v2199
        %v2263 = vadd.f32 %v2262, %v2200
        %v2264 = vadd.f32 %v2263, %v2201
        %v2265 = vadd.f32 %v2264, %v2202
        %v2266 = vadd.f32 %v2265, %v2203
        %v2267 = vadd.f32 %v2266, %v2204
        %v2268 = vadd.f32 %v2267, %v2205
        %v2269 = vadd.f32 %v2268, %v2206
        %v2270 = vadd.f32 %v2269, %v2207
        %v2271 = vadd.f32 %v2270, %v2208
        %v2272 = vadd.f32 %v2271, %v2209
        %v2273 = vadd.f32 %v2272, %v2210
        %v2274 = vadd.f32 %v2273, %v2211
        %v2275 = vadd.f32 %v2274, %v2212
        %v2276 = vadd.f32 %v2275, %v2213
        %v2277 = vadd.f32 %v2276, %v2214
        %v2278 = vadd.f32 %v2277, %v2215
        %v2279 = vadd.f32 %v2278, %v2216
        %v2280 = vadd.f32 %v2279, %v2217
        %v2281 = vadd.f32 %v2280, %v2218
        %v2282 = vadd.f32 %v2281, %v2219
        %v2283 = vadd.f32 %v2282, %v2220
        %v2284 = vadd.f32 %v2283, %v2221
        %v2285 = vadd.f32 %v2284, %v2222
        %v2286 = vadd.f32 %v2285, %v2223
        %v2287 = vadd.f32 %v2286, %v2224
        %v2288 = vadd.f32 %v2287, %v2225
        %v2289 = vadd.f32 %v2288, %v2226
        %v2290 = vadd.f32 %v2289, %v2227
        %v2291 = vadd.f32 %v2290, %v2228
        %v2292 = vadd.f32 %v2291, %v2229
        %v2293 = vadd.f32 %v2292, %v2230
        %v2294 = vadd.f32 %v2293, %v2231
        %v2295 = vadd.f32 %v2294, %v2232
        %v2296 = vadd.f32 %v2295, %v2233
        %v2297 = vadd.f32 %v2296, %v2234
        %v2298 = vadd.f32 %v2297, %v2235
        %v2299 = vadd.f32 %v2298, %v2236
        %v2300 = vadd.f32 %v2299, %v2237
        %v2301 = vadd.f32 %v2300, %v2238
        %v2302 = vadd.f32 %v2301, %v2239
        %v2303 = vadd.f32 %v2302, %v2240
        %v2304 = vadd.f32 %v2303, %v2241
        %v2305 = vadd.f32 %v2304, %v2242
        %v2306 = vadd.f32 %v2305, %v2243
        %v2307 = vadd.f32 %v2306, %v2244
        %v2308 = vadd.f32 %v2307, %v2245
        %v2309 = vadd.f32 %v2308, %v2246
        %v2310 = vadd.f32 %v2309, %v2247
        %v2311 = vadd.f32 %v2310, %v2248
        %v2312 = vadd.f32 %v2311, %v2249
        %v2313 = vadd.f32 %v2312, %v2250
        %v2314 = vadd.f32 %v2313, %v2251
        %v2315 = vadd.f32 %v2314, %v2252
        %v2316 = vadd.f32 %v2315, %v2253
        %v2317 = vadd.f32 %v2316, %v2254
        %v2318 = vadd.f32 %v2317, %v2255
        %v2319 = vrot.slane %v2318, 4
        %v2320 = vadd.f32 %v2318, %v2319
        %v2321 = vrot.slane %v2320, 2
        %v2322 = vadd.f32 %v2320, %v2321
        %v2323 = vrot.slane %v2322, 1
        %v2324 = vadd.f32 %v2322, %v2323
        %v2325 = vadd.f32 %v2191, %v2324
        %2326 = vst [vmem:[#allocation7] sm:$0x1] %v2325
      $region84: #{tpu_custom_call.1} parent=67 // pred_fallthru
        _
      %p2327 = scmp.eq.s32.totalorder %s31, 2
      %p2328 = pnand %p2327, %p495
      %p2329 = pneg %p2328
      // Predicated region
      $region85: #{tpu_custom_call.1} parent=67 // pred_check
        _
      $region86: #{tpu_custom_call.1} parent=67 // pred_check_branch
        %2331 = sbr.rel (%p2328) target = $region88
      $region87: #{tpu_custom_call.1} parent=67 // pred_region
        %v2332 = vld [vmem:[#allocation6] sm:$0x1]
        %v2333 = vmul.f32 %v2332, 0.0009765625
        %v2334 = vld [vmem:[#allocation7] sm:$0x1]
        %v2335 = vmul.f32 %v2334, 0.0009765625
        %v2336 = vmul.f32 %v2333, %v2333
        %v2337 = vsub.f32 %v2335, %v2336
        %v2338 = vmax.f32 %v2337, 0.0
        %v2339 = vld [vmem:[%s6] sm:$0x1]
        %v2340 = vadd.f32 %v2338, 1e-05
        %v2341 = vrsqrt.pop %v2340
        %v2342 = vmul.f32 %v2341, %v2340
        %v2343 = vmul.f32 %v2342, %v2341
        %v2344 = vmul.f32 0.5, %v2343
        %v2345 = vsub.f32 1.5, %v2344
        %v2346 = vmul.f32 %v2341, %v2345
        %vm2347 = vweird.f32 %v2340
        %vm2348 = vweird.f32 %v2341
        %vm2349 = vmor %vm2347, %vm2348
        %v2350 = vsel %vm2349, %v2341, %v2346
        %v2351 = vmul.f32 %v2339, %v2350
        %2352 = vst [vmem:[#allocation6] sm:$0x1] %v2351
        %v2353 = vld [vmem:[%s7] sm:$0x1]
        %v2354 = vmul.f32 %v2333, %v2351
        %v2355 = vsub.f32 %v2353, %v2354
        %2356 = vst [vmem:[#allocation7] sm:$0x1] %v2355
      $region88: #{tpu_custom_call.1} parent=67 // pred_fallthru
        _
      // Predicated region
      $region89: #{tpu_custom_call.1} parent=67 // pred_check
        %p2357 = pneg %p2327
      $region90: #{tpu_custom_call.1} parent=67 // pred_check_branch
        %2359 = sbr.rel (%p2357) target = $region92
      $region91: #{tpu_custom_call.1} parent=67 // pred_region
        %s2360 = smul.u32 %s32, 64
        %s2361 = smul.addr %s2360, 4
        %s2362 = scalar_lea.vmem [#allocation3], %s2361
        %v2363 = vld [vmem:[%s2362] sm:$0xf]
        %v2364 = vld [vmem:[%s2362 + $0x4] sm:$0xf]
        %v2365 = vld [vmem:[%s2362 + $0x8] sm:$0xf]
        %v2366 = vld [vmem:[%s2362 + $0xc] sm:$0xf]
        %v2367 = vld [vmem:[%s2362 + $0x10] sm:$0xf]
        %v2368 = vld [vmem:[%s2362 + $0x14] sm:$0xf]
        %v2369 = vld [vmem:[%s2362 + $0x18] sm:$0xf]
        %v2370 = vld [vmem:[%s2362 + $0x1c] sm:$0xf]
        %v2371 = vld [vmem:[%s2362 + $0x20] sm:$0xf]
        %v2372 = vld [vmem:[%s2362 + $0x24] sm:$0xf]
        %v2373 = vld [vmem:[%s2362 + $0x28] sm:$0xf]
        %v2374 = vld [vmem:[%s2362 + $0x2c] sm:$0xf]
        %v2375 = vld [vmem:[%s2362 + $0x30] sm:$0xf]
        %v2376 = vld [vmem:[%s2362 + $0x34] sm:$0xf]
        %v2377 = vld [vmem:[%s2362 + $0x38] sm:$0xf]
        %v2378 = vld [vmem:[%s2362 + $0x3c] sm:$0xf]
        %v2379 = vld [vmem:[%s2362 + $0x40] sm:$0xf]
        %v2380 = vld [vmem:[%s2362 + $0x44] sm:$0xf]
        %v2381 = vld [vmem:[%s2362 + $0x48] sm:$0xf]
        %v2382 = vld [vmem:[%s2362 + $0x4c] sm:$0xf]
        %v2383 = vld [vmem:[%s2362 + $0x50] sm:$0xf]
        %v2384 = vld [vmem:[%s2362 + $0x54] sm:$0xf]
        %v2385 = vld [vmem:[%s2362 + $0x58] sm:$0xf]
        %v2386 = vld [vmem:[%s2362 + $0x5c] sm:$0xf]
        %v2387 = vld [vmem:[%s2362 + $0x60] sm:$0xf]
        %v2388 = vld [vmem:[%s2362 + $0x64] sm:$0xf]
        %v2389 = vld [vmem:[%s2362 + $0x68] sm:$0xf]
        %v2390 = vld [vmem:[%s2362 + $0x6c] sm:$0xf]
        %v2391 = vld [vmem:[%s2362 + $0x70] sm:$0xf]
        %v2392 = vld [vmem:[%s2362 + $0x74] sm:$0xf]
        %v2393 = vld [vmem:[%s2362 + $0x78] sm:$0xf]
        %v2394 = vld [vmem:[%s2362 + $0x7c] sm:$0xf]
        %v2395 = vld [vmem:[%s2362 + $0x80] sm:$0xf]
        %v2396 = vld [vmem:[%s2362 + $0x84] sm:$0xf]
        %v2397 = vld [vmem:[%s2362 + $0x88] sm:$0xf]
        %v2398 = vld [vmem:[%s2362 + $0x8c] sm:$0xf]
        %v2399 = vld [vmem:[%s2362 + $0x90] sm:$0xf]
        %v2400 = vld [vmem:[%s2362 + $0x94] sm:$0xf]
        %v2401 = vld [vmem:[%s2362 + $0x98] sm:$0xf]
        %v2402 = vld [vmem:[%s2362 + $0x9c] sm:$0xf]
        %v2403 = vld [vmem:[%s2362 + $0xa0] sm:$0xf]
        %v2404 = vld [vmem:[%s2362 + $0xa4] sm:$0xf]
        %v2405 = vld [vmem:[%s2362 + $0xa8] sm:$0xf]
        %v2406 = vld [vmem:[%s2362 + $0xac] sm:$0xf]
        %v2407 = vld [vmem:[%s2362 + $0xb0] sm:$0xf]
        %v2408 = vld [vmem:[%s2362 + $0xb4] sm:$0xf]
        %v2409 = vld [vmem:[%s2362 + $0xb8] sm:$0xf]
        %v2410 = vld [vmem:[%s2362 + $0xbc] sm:$0xf]
        %v2411 = vld [vmem:[%s2362 + $0xc0] sm:$0xf]
        %v2412 = vld [vmem:[%s2362 + $0xc4] sm:$0xf]
        %v2413 = vld [vmem:[%s2362 + $0xc8] sm:$0xf]
        %v2414 = vld [vmem:[%s2362 + $0xcc] sm:$0xf]
        %v2415 = vld [vmem:[%s2362 + $0xd0] sm:$0xf]
        %v2416 = vld [vmem:[%s2362 + $0xd4] sm:$0xf]
        %v2417 = vld [vmem:[%s2362 + $0xd8] sm:$0xf]
        %v2418 = vld [vmem:[%s2362 + $0xdc] sm:$0xf]
        %v2419 = vld [vmem:[%s2362 + $0xe0] sm:$0xf]
        %v2420 = vld [vmem:[%s2362 + $0xe4] sm:$0xf]
        %v2421 = vld [vmem:[%s2362 + $0xe8] sm:$0xf]
        %v2422 = vld [vmem:[%s2362 + $0xec] sm:$0xf]
        %v2423 = vld [vmem:[%s2362 + $0xf0] sm:$0xf]
        %v2424 = vld [vmem:[%s2362 + $0xf4] sm:$0xf]
        %v2425 = vld [vmem:[%s2362 + $0xf8] sm:$0xf]
        %v2426 = vld [vmem:[%s2362 + $0xfc] sm:$0xf]
        %v2427 = vunpack.c.l.bf16 %v2363
        %v2428 = vunpack.c.l.bf16 %v2364
        %v2429 = vunpack.c.l.bf16 %v2365
        %v2430 = vunpack.c.l.bf16 %v2366
        %v2431 = vunpack.c.l.bf16 %v2367
        %v2432 = vunpack.c.l.bf16 %v2368
        %v2433 = vunpack.c.l.bf16 %v2369
        %v2434 = vunpack.c.l.bf16 %v2370
        %v2435 = vunpack.c.l.bf16 %v2371
        %v2436 = vunpack.c.l.bf16 %v2372
        %v2437 = vunpack.c.l.bf16 %v2373
        %v2438 = vunpack.c.l.bf16 %v2374
        %v2439 = vunpack.c.l.bf16 %v2375
        %v2440 = vunpack.c.l.bf16 %v2376
        %v2441 = vunpack.c.l.bf16 %v2377
        %v2442 = vunpack.c.l.bf16 %v2378
        %v2443 = vunpack.c.l.bf16 %v2379
        %v2444 = vunpack.c.l.bf16 %v2380
        %v2445 = vunpack.c.l.bf16 %v2381
        %v2446 = vunpack.c.l.bf16 %v2382
        %v2447 = vunpack.c.l.bf16 %v2383
        %v2448 = vunpack.c.l.bf16 %v2384
        %v2449 = vunpack.c.l.bf16 %v2385
        %v2450 = vunpack.c.l.bf16 %v2386
        %v2451 = vunpack.c.l.bf16 %v2387
        %v2452 = vunpack.c.l.bf16 %v2388
        %v2453 = vunpack.c.l.bf16 %v2389
        %v2454 = vunpack.c.l.bf16 %v2390
        %v2455 = vunpack.c.l.bf16 %v2391
        %v2456 = vunpack.c.l.bf16 %v2392
        %v2457 = vunpack.c.l.bf16 %v2393
        %v2458 = vunpack.c.l.bf16 %v2394
        %v2459 = vunpack.c.l.bf16 %v2395
        %v2460 = vunpack.c.l.bf16 %v2396
        %v2461 = vunpack.c.l.bf16 %v2397
        %v2462 = vunpack.c.l.bf16 %v2398
        %v2463 = vunpack.c.l.bf16 %v2399
        %v2464 = vunpack.c.l.bf16 %v2400
        %v2465 = vunpack.c.l.bf16 %v2401
        %v2466 = vunpack.c.l.bf16 %v2402
        %v2467 = vunpack.c.l.bf16 %v2403
        %v2468 = vunpack.c.l.bf16 %v2404
        %v2469 = vunpack.c.l.bf16 %v2405
        %v2470 = vunpack.c.l.bf16 %v2406
        %v2471 = vunpack.c.l.bf16 %v2407
        %v2472 = vunpack.c.l.bf16 %v2408
        %v2473 = vunpack.c.l.bf16 %v2409
        %v2474 = vunpack.c.l.bf16 %v2410
        %v2475 = vunpack.c.l.bf16 %v2411
        %v2476 = vunpack.c.l.bf16 %v2412
        %v2477 = vunpack.c.l.bf16 %v2413
        %v2478 = vunpack.c.l.bf16 %v2414
        %v2479 = vunpack.c.l.bf16 %v2415
        %v2480 = vunpack.c.l.bf16 %v2416
        %v2481 = vunpack.c.l.bf16 %v2417
        %v2482 = vunpack.c.l.bf16 %v2418
        %v2483 = vunpack.c.l.bf16 %v2419
        %v2484 = vunpack.c.l.bf16 %v2420
        %v2485 = vunpack.c.l.bf16 %v2421
        %v2486 = vunpack.c.l.bf16 %v2422
        %v2487 = vunpack.c.l.bf16 %v2423
        %v2488 = vunpack.c.l.bf16 %v2424
        %v2489 = vunpack.c.l.bf16 %v2425
        %v2490 = vunpack.c.l.bf16 %v2426
        %v2491 = vld [vmem:[#allocation6] sm:$0x1]
        %v2493 = vperm.slane %v2491, 0
        %v2495 = vmul.f32 %v2427, %v2493
        %v2496 = vmul.f32 %v2428, %v2493
        %v2497 = vmul.f32 %v2429, %v2493
        %v2498 = vmul.f32 %v2430, %v2493
        %v2499 = vmul.f32 %v2431, %v2493
        %v2500 = vmul.f32 %v2432, %v2493
        %v2501 = vmul.f32 %v2433, %v2493
        %v2502 = vmul.f32 %v2434, %v2493
        %v2503 = vmul.f32 %v2435, %v2493
        %v2504 = vmul.f32 %v2436, %v2493
        %v2505 = vmul.f32 %v2437, %v2493
        %v2506 = vmul.f32 %v2438, %v2493
        %v2507 = vmul.f32 %v2439, %v2493
        %v2508 = vmul.f32 %v2440, %v2493
        %v2509 = vmul.f32 %v2441, %v2493
        %v2510 = vmul.f32 %v2442, %v2493
        %v2511 = vmul.f32 %v2443, %v2493
        %v2512 = vmul.f32 %v2444, %v2493
        %v2513 = vmul.f32 %v2445, %v2493
        %v2514 = vmul.f32 %v2446, %v2493
        %v2515 = vmul.f32 %v2447, %v2493
        %v2516 = vmul.f32 %v2448, %v2493
        %v2517 = vmul.f32 %v2449, %v2493
        %v2518 = vmul.f32 %v2450, %v2493
        %v2519 = vmul.f32 %v2451, %v2493
        %v2520 = vmul.f32 %v2452, %v2493
        %v2521 = vmul.f32 %v2453, %v2493
        %v2522 = vmul.f32 %v2454, %v2493
        %v2523 = vmul.f32 %v2455, %v2493
        %v2524 = vmul.f32 %v2456, %v2493
        %v2525 = vmul.f32 %v2457, %v2493
        %v2526 = vmul.f32 %v2458, %v2493
        %v2527 = vmul.f32 %v2459, %v2493
        %v2528 = vmul.f32 %v2460, %v2493
        %v2529 = vmul.f32 %v2461, %v2493
        %v2530 = vmul.f32 %v2462, %v2493
        %v2531 = vmul.f32 %v2463, %v2493
        %v2532 = vmul.f32 %v2464, %v2493
        %v2533 = vmul.f32 %v2465, %v2493
        %v2534 = vmul.f32 %v2466, %v2493
        %v2535 = vmul.f32 %v2467, %v2493
        %v2536 = vmul.f32 %v2468, %v2493
        %v2537 = vmul.f32 %v2469, %v2493
        %v2538 = vmul.f32 %v2470, %v2493
        %v2539 = vmul.f32 %v2471, %v2493
        %v2540 = vmul.f32 %v2472, %v2493
        %v2541 = vmul.f32 %v2473, %v2493
        %v2542 = vmul.f32 %v2474, %v2493
        %v2543 = vmul.f32 %v2475, %v2493
        %v2544 = vmul.f32 %v2476, %v2493
        %v2545 = vmul.f32 %v2477, %v2493
        %v2546 = vmul.f32 %v2478, %v2493
        %v2547 = vmul.f32 %v2479, %v2493
        %v2548 = vmul.f32 %v2480, %v2493
        %v2549 = vmul.f32 %v2481, %v2493
        %v2550 = vmul.f32 %v2482, %v2493
        %v2551 = vmul.f32 %v2483, %v2493
        %v2552 = vmul.f32 %v2484, %v2493
        %v2553 = vmul.f32 %v2485, %v2493
        %v2554 = vmul.f32 %v2486, %v2493
        %v2555 = vmul.f32 %v2487, %v2493
        %v2556 = vmul.f32 %v2488, %v2493
        %v2557 = vmul.f32 %v2489, %v2493
        %v2558 = vmul.f32 %v2490, %v2493
        %v2559 = vld [vmem:[#allocation7] sm:$0x1]
        %v2561 = vperm.slane %v2559, 0
        %v2563 = vadd.f32 %v2495, %v2561
        %v2564 = vadd.f32 %v2496, %v2561
        %v2565 = vadd.f32 %v2497, %v2561
        %v2566 = vadd.f32 %v2498, %v2561
        %v2567 = vadd.f32 %v2499, %v2561
        %v2568 = vadd.f32 %v2500, %v2561
        %v2569 = vadd.f32 %v2501, %v2561
        %v2570 = vadd.f32 %v2502, %v2561
        %v2571 = vadd.f32 %v2503, %v2561
        %v2572 = vadd.f32 %v2504, %v2561
        %v2573 = vadd.f32 %v2505, %v2561
        %v2574 = vadd.f32 %v2506, %v2561
        %v2575 = vadd.f32 %v2507, %v2561
        %v2576 = vadd.f32 %v2508, %v2561
        %v2577 = vadd.f32 %v2509, %v2561
        %v2578 = vadd.f32 %v2510, %v2561
        %v2579 = vadd.f32 %v2511, %v2561
        %v2580 = vadd.f32 %v2512, %v2561
        %v2581 = vadd.f32 %v2513, %v2561
        %v2582 = vadd.f32 %v2514, %v2561
        %v2583 = vadd.f32 %v2515, %v2561
        %v2584 = vadd.f32 %v2516, %v2561
        %v2585 = vadd.f32 %v2517, %v2561
        %v2586 = vadd.f32 %v2518, %v2561
        %v2587 = vadd.f32 %v2519, %v2561
        %v2588 = vadd.f32 %v2520, %v2561
        %v2589 = vadd.f32 %v2521, %v2561
        %v2590 = vadd.f32 %v2522, %v2561
        %v2591 = vadd.f32 %v2523, %v2561
        %v2592 = vadd.f32 %v2524, %v2561
        %v2593 = vadd.f32 %v2525, %v2561
        %v2594 = vadd.f32 %v2526, %v2561
        %v2595 = vadd.f32 %v2527, %v2561
        %v2596 = vadd.f32 %v2528, %v2561
        %v2597 = vadd.f32 %v2529, %v2561
        %v2598 = vadd.f32 %v2530, %v2561
        %v2599 = vadd.f32 %v2531, %v2561
        %v2600 = vadd.f32 %v2532, %v2561
        %v2601 = vadd.f32 %v2533, %v2561
        %v2602 = vadd.f32 %v2534, %v2561
        %v2603 = vadd.f32 %v2535, %v2561
        %v2604 = vadd.f32 %v2536, %v2561
        %v2605 = vadd.f32 %v2537, %v2561
        %v2606 = vadd.f32 %v2538, %v2561
        %v2607 = vadd.f32 %v2539, %v2561
        %v2608 = vadd.f32 %v2540, %v2561
        %v2609 = vadd.f32 %v2541, %v2561
        %v2610 = vadd.f32 %v2542, %v2561
        %v2611 = vadd.f32 %v2543, %v2561
        %v2612 = vadd.f32 %v2544, %v2561
        %v2613 = vadd.f32 %v2545, %v2561
        %v2614 = vadd.f32 %v2546, %v2561
        %v2615 = vadd.f32 %v2547, %v2561
        %v2616 = vadd.f32 %v2548, %v2561
        %v2617 = vadd.f32 %v2549, %v2561
        %v2618 = vadd.f32 %v2550, %v2561
        %v2619 = vadd.f32 %v2551, %v2561
        %v2620 = vadd.f32 %v2552, %v2561
        %v2621 = vadd.f32 %v2553, %v2561
        %v2622 = vadd.f32 %v2554, %v2561
        %v2623 = vadd.f32 %v2555, %v2561
        %v2624 = vadd.f32 %v2556, %v2561
        %v2625 = vadd.f32 %v2557, %v2561
        %v2626 = vadd.f32 %v2558, %v2561
        %v2627 = vmax.f32 %v2563, 0.0
        %v2628 = vmax.f32 %v2564, 0.0
        %v2629 = vmax.f32 %v2565, 0.0
        %v2630 = vmax.f32 %v2566, 0.0
        %v2631 = vmax.f32 %v2567, 0.0
        %v2632 = vmax.f32 %v2568, 0.0
        %v2633 = vmax.f32 %v2569, 0.0
        %v2634 = vmax.f32 %v2570, 0.0
        %v2635 = vmax.f32 %v2571, 0.0
        %v2636 = vmax.f32 %v2572, 0.0
        %v2637 = vmax.f32 %v2573, 0.0
        %v2638 = vmax.f32 %v2574, 0.0
        %v2639 = vmax.f32 %v2575, 0.0
        %v2640 = vmax.f32 %v2576, 0.0
        %v2641 = vmax.f32 %v2577, 0.0
        %v2642 = vmax.f32 %v2578, 0.0
        %v2643 = vmax.f32 %v2579, 0.0
        %v2644 = vmax.f32 %v2580, 0.0
        %v2645 = vmax.f32 %v2581, 0.0
        %v2646 = vmax.f32 %v2582, 0.0
        %v2647 = vmax.f32 %v2583, 0.0
        %v2648 = vmax.f32 %v2584, 0.0
        %v2649 = vmax.f32 %v2585, 0.0
        %v2650 = vmax.f32 %v2586, 0.0
        %v2651 = vmax.f32 %v2587, 0.0
        %v2652 = vmax.f32 %v2588, 0.0
        %v2653 = vmax.f32 %v2589, 0.0
        %v2654 = vmax.f32 %v2590, 0.0
        %v2655 = vmax.f32 %v2591, 0.0
        %v2656 = vmax.f32 %v2592, 0.0
        %v2657 = vmax.f32 %v2593, 0.0
        %v2658 = vmax.f32 %v2594, 0.0
        %v2659 = vmax.f32 %v2595, 0.0
        %v2660 = vmax.f32 %v2596, 0.0
        %v2661 = vmax.f32 %v2597, 0.0
        %v2662 = vmax.f32 %v2598, 0.0
        %v2663 = vmax.f32 %v2599, 0.0
        %v2664 = vmax.f32 %v2600, 0.0
        %v2665 = vmax.f32 %v2601, 0.0
        %v2666 = vmax.f32 %v2602, 0.0
        %v2667 = vmax.f32 %v2603, 0.0
        %v2668 = vmax.f32 %v2604, 0.0
        %v2669 = vmax.f32 %v2605, 0.0
        %v2670 = vmax.f32 %v2606, 0.0
        %v2671 = vmax.f32 %v2607, 0.0
        %v2672 = vmax.f32 %v2608, 0.0
        %v2673 = vmax.f32 %v2609, 0.0
        %v2674 = vmax.f32 %v2610, 0.0
        %v2675 = vmax.f32 %v2611, 0.0
        %v2676 = vmax.f32 %v2612, 0.0
        %v2677 = vmax.f32 %v2613, 0.0
        %v2678 = vmax.f32 %v2614, 0.0
        %v2679 = vmax.f32 %v2615, 0.0
        %v2680 = vmax.f32 %v2616, 0.0
        %v2681 = vmax.f32 %v2617, 0.0
        %v2682 = vmax.f32 %v2618, 0.0
        %v2683 = vmax.f32 %v2619, 0.0
        %v2684 = vmax.f32 %v2620, 0.0
        %v2685 = vmax.f32 %v2621, 0.0
        %v2686 = vmax.f32 %v2622, 0.0
        %v2687 = vmax.f32 %v2623, 0.0
        %v2688 = vmax.f32 %v2624, 0.0
        %v2689 = vmax.f32 %v2625, 0.0
        %v2690 = vmax.f32 %v2626, 0.0
        %v2691 = vld [vmem:[%s8] sm:$0x1]
        %v2693 = vperm.slane %v2691, 0
        %v2695 = vmul.f32 %v2627, %v2693
        %v2696 = vmul.f32 %v2628, %v2693
        %v2697 = vmul.f32 %v2629, %v2693
        %v2698 = vmul.f32 %v2630, %v2693
        %v2699 = vmul.f32 %v2631, %v2693
        %v2700 = vmul.f32 %v2632, %v2693
        %v2701 = vmul.f32 %v2633, %v2693
        %v2702 = vmul.f32 %v2634, %v2693
        %v2703 = vmul.f32 %v2635, %v2693
        %v2704 = vmul.f32 %v2636, %v2693
        %v2705 = vmul.f32 %v2637, %v2693
        %v2706 = vmul.f32 %v2638, %v2693
        %v2707 = vmul.f32 %v2639, %v2693
        %v2708 = vmul.f32 %v2640, %v2693
        %v2709 = vmul.f32 %v2641, %v2693
        %v2710 = vmul.f32 %v2642, %v2693
        %v2711 = vmul.f32 %v2643, %v2693
        %v2712 = vmul.f32 %v2644, %v2693
        %v2713 = vmul.f32 %v2645, %v2693
        %v2714 = vmul.f32 %v2646, %v2693
        %v2715 = vmul.f32 %v2647, %v2693
        %v2716 = vmul.f32 %v2648, %v2693
        %v2717 = vmul.f32 %v2649, %v2693
        %v2718 = vmul.f32 %v2650, %v2693
        %v2719 = vmul.f32 %v2651, %v2693
        %v2720 = vmul.f32 %v2652, %v2693
        %v2721 = vmul.f32 %v2653, %v2693
        %v2722 = vmul.f32 %v2654, %v2693
        %v2723 = vmul.f32 %v2655, %v2693
        %v2724 = vmul.f32 %v2656, %v2693
        %v2725 = vmul.f32 %v2657, %v2693
        %v2726 = vmul.f32 %v2658, %v2693
        %v2727 = vmul.f32 %v2659, %v2693
        %v2728 = vmul.f32 %v2660, %v2693
        %v2729 = vmul.f32 %v2661, %v2693
        %v2730 = vmul.f32 %v2662, %v2693
        %v2731 = vmul.f32 %v2663, %v2693
        %v2732 = vmul.f32 %v2664, %v2693
        %v2733 = vmul.f32 %v2665, %v2693
        %v2734 = vmul.f32 %v2666, %v2693
        %v2735 = vmul.f32 %v2667, %v2693
        %v2736 = vmul.f32 %v2668, %v2693
        %v2737 = vmul.f32 %v2669, %v2693
        %v2738 = vmul.f32 %v2670, %v2693
        %v2739 = vmul.f32 %v2671, %v2693
        %v2740 = vmul.f32 %v2672, %v2693
        %v2741 = vmul.f32 %v2673, %v2693
        %v2742 = vmul.f32 %v2674, %v2693
        %v2743 = vmul.f32 %v2675, %v2693
        %v2744 = vmul.f32 %v2676, %v2693
        %v2745 = vmul.f32 %v2677, %v2693
        %v2746 = vmul.f32 %v2678, %v2693
        %v2747 = vmul.f32 %v2679, %v2693
        %v2748 = vmul.f32 %v2680, %v2693
        %v2749 = vmul.f32 %v2681, %v2693
        %v2750 = vmul.f32 %v2682, %v2693
        %v2751 = vmul.f32 %v2683, %v2693
        %v2752 = vmul.f32 %v2684, %v2693
        %v2753 = vmul.f32 %v2685, %v2693
        %v2754 = vmul.f32 %v2686, %v2693
        %v2755 = vmul.f32 %v2687, %v2693
        %v2756 = vmul.f32 %v2688, %v2693
        %v2757 = vmul.f32 %v2689, %v2693
        %v2758 = vmul.f32 %v2690, %v2693
        %2759 = vadd.xlane.f32.xlu0 %v2695
        %v2760 = vpop.xlane.xlu0 %2759
        %2761 = vadd.xlane.f32.xlu0 %v2696
        %v2762 = vpop.xlane.xlu0 %2761
        %2763 = vadd.xlane.f32.xlu0 %v2697
        %v2764 = vpop.xlane.xlu0 %2763
        %2765 = vadd.xlane.f32.xlu0 %v2698
        %v2766 = vpop.xlane.xlu0 %2765
        %2767 = vadd.xlane.f32.xlu0 %v2699
        %v2768 = vpop.xlane.xlu0 %2767
        %2769 = vadd.xlane.f32.xlu0 %v2700
        %v2770 = vpop.xlane.xlu0 %2769
        %2771 = vadd.xlane.f32.xlu0 %v2701
        %v2772 = vpop.xlane.xlu0 %2771
        %2773 = vadd.xlane.f32.xlu0 %v2702
        %v2774 = vpop.xlane.xlu0 %2773
        %2775 = vadd.xlane.f32.xlu0 %v2703
        %v2776 = vpop.xlane.xlu0 %2775
        %2777 = vadd.xlane.f32.xlu0 %v2704
        %v2778 = vpop.xlane.xlu0 %2777
        %2779 = vadd.xlane.f32.xlu0 %v2705
        %v2780 = vpop.xlane.xlu0 %2779
        %2781 = vadd.xlane.f32.xlu0 %v2706
        %v2782 = vpop.xlane.xlu0 %2781
        %2783 = vadd.xlane.f32.xlu0 %v2707
        %v2784 = vpop.xlane.xlu0 %2783
        %2785 = vadd.xlane.f32.xlu0 %v2708
        %v2786 = vpop.xlane.xlu0 %2785
        %2787 = vadd.xlane.f32.xlu0 %v2709
        %v2788 = vpop.xlane.xlu0 %2787
        %2789 = vadd.xlane.f32.xlu0 %v2710
        %v2790 = vpop.xlane.xlu0 %2789
        %2791 = vadd.xlane.f32.xlu0 %v2711
        %v2792 = vpop.xlane.xlu0 %2791
        %2793 = vadd.xlane.f32.xlu0 %v2712
        %v2794 = vpop.xlane.xlu0 %2793
        %2795 = vadd.xlane.f32.xlu0 %v2713
        %v2796 = vpop.xlane.xlu0 %2795
        %2797 = vadd.xlane.f32.xlu0 %v2714
        %v2798 = vpop.xlane.xlu0 %2797
        %2799 = vadd.xlane.f32.xlu0 %v2715
        %v2800 = vpop.xlane.xlu0 %2799
        %2801 = vadd.xlane.f32.xlu0 %v2716
        %v2802 = vpop.xlane.xlu0 %2801
        %2803 = vadd.xlane.f32.xlu0 %v2717
        %v2804 = vpop.xlane.xlu0 %2803
        %2805 = vadd.xlane.f32.xlu0 %v2718
        %v2806 = vpop.xlane.xlu0 %2805
        %2807 = vadd.xlane.f32.xlu0 %v2719
        %v2808 = vpop.xlane.xlu0 %2807
        %2809 = vadd.xlane.f32.xlu0 %v2720
        %v2810 = vpop.xlane.xlu0 %2809
        %2811 = vadd.xlane.f32.xlu0 %v2721
        %v2812 = vpop.xlane.xlu0 %2811
        %2813 = vadd.xlane.f32.xlu0 %v2722
        %v2814 = vpop.xlane.xlu0 %2813
        %2815 = vadd.xlane.f32.xlu0 %v2723
        %v2816 = vpop.xlane.xlu0 %2815
        %2817 = vadd.xlane.f32.xlu0 %v2724
        %v2818 = vpop.xlane.xlu0 %2817
        %2819 = vadd.xlane.f32.xlu0 %v2725
        %v2820 = vpop.xlane.xlu0 %2819
        %2821 = vadd.xlane.f32.xlu0 %v2726
        %v2822 = vpop.xlane.xlu0 %2821
        %2823 = vadd.xlane.f32.xlu0 %v2727
        %v2824 = vpop.xlane.xlu0 %2823
        %2825 = vadd.xlane.f32.xlu0 %v2728
        %v2826 = vpop.xlane.xlu0 %2825
        %2827 = vadd.xlane.f32.xlu0 %v2729
        %v2828 = vpop.xlane.xlu0 %2827
        %2829 = vadd.xlane.f32.xlu0 %v2730
        %v2830 = vpop.xlane.xlu0 %2829
        %2831 = vadd.xlane.f32.xlu0 %v2731
        %v2832 = vpop.xlane.xlu0 %2831
        %2833 = vadd.xlane.f32.xlu0 %v2732
        %v2834 = vpop.xlane.xlu0 %2833
        %2835 = vadd.xlane.f32.xlu0 %v2733
        %v2836 = vpop.xlane.xlu0 %2835
        %2837 = vadd.xlane.f32.xlu0 %v2734
        %v2838 = vpop.xlane.xlu0 %2837
        %2839 = vadd.xlane.f32.xlu0 %v2735
        %v2840 = vpop.xlane.xlu0 %2839
        %2841 = vadd.xlane.f32.xlu0 %v2736
        %v2842 = vpop.xlane.xlu0 %2841
        %2843 = vadd.xlane.f32.xlu0 %v2737
        %v2844 = vpop.xlane.xlu0 %2843
        %2845 = vadd.xlane.f32.xlu0 %v2738
        %v2846 = vpop.xlane.xlu0 %2845
        %2847 = vadd.xlane.f32.xlu0 %v2739
        %v2848 = vpop.xlane.xlu0 %2847
        %2849 = vadd.xlane.f32.xlu0 %v2740
        %v2850 = vpop.xlane.xlu0 %2849
        %2851 = vadd.xlane.f32.xlu0 %v2741
        %v2852 = vpop.xlane.xlu0 %2851
        %2853 = vadd.xlane.f32.xlu0 %v2742
        %v2854 = vpop.xlane.xlu0 %2853
        %2855 = vadd.xlane.f32.xlu0 %v2743
        %v2856 = vpop.xlane.xlu0 %2855
        %2857 = vadd.xlane.f32.xlu0 %v2744
        %v2858 = vpop.xlane.xlu0 %2857
        %2859 = vadd.xlane.f32.xlu0 %v2745
        %v2860 = vpop.xlane.xlu0 %2859
        %2861 = vadd.xlane.f32.xlu0 %v2746
        %v2862 = vpop.xlane.xlu0 %2861
        %2863 = vadd.xlane.f32.xlu0 %v2747
        %v2864 = vpop.xlane.xlu0 %2863
        %2865 = vadd.xlane.f32.xlu0 %v2748
        %v2866 = vpop.xlane.xlu0 %2865
        %2867 = vadd.xlane.f32.xlu0 %v2749
        %v2868 = vpop.xlane.xlu0 %2867
        %2869 = vadd.xlane.f32.xlu0 %v2750
        %v2870 = vpop.xlane.xlu0 %2869
        %2871 = vadd.xlane.f32.xlu0 %v2751
        %v2872 = vpop.xlane.xlu0 %2871
        %2873 = vadd.xlane.f32.xlu0 %v2752
        %v2874 = vpop.xlane.xlu0 %2873
        %2875 = vadd.xlane.f32.xlu0 %v2753
        %v2876 = vpop.xlane.xlu0 %2875
        %2877 = vadd.xlane.f32.xlu0 %v2754
        %v2878 = vpop.xlane.xlu0 %2877
        %2879 = vadd.xlane.f32.xlu0 %v2755
        %v2880 = vpop.xlane.xlu0 %2879
        %2881 = vadd.xlane.f32.xlu0 %v2756
        %v2882 = vpop.xlane.xlu0 %2881
        %2883 = vadd.xlane.f32.xlu0 %v2757
        %v2884 = vpop.xlane.xlu0 %2883
        %2885 = vadd.xlane.f32.xlu0 %v2758
        %v2886 = vpop.xlane.xlu0 %2885
        %v2887 = vld [vmem:[#allocation8] sm:$0x1]
        %v2889 = vperm.slane %v2887, 0
        %v2891 = vadd.f32 %v2760, %v2889
        %v2892 = vadd.f32 %v2762, %v2889
        %v2893 = vadd.f32 %v2764, %v2889
        %v2894 = vadd.f32 %v2766, %v2889
        %v2895 = vadd.f32 %v2768, %v2889
        %v2896 = vadd.f32 %v2770, %v2889
        %v2897 = vadd.f32 %v2772, %v2889
        %v2898 = vadd.f32 %v2774, %v2889
        %v2899 = vadd.f32 %v2776, %v2889
        %v2900 = vadd.f32 %v2778, %v2889
        %v2901 = vadd.f32 %v2780, %v2889
        %v2902 = vadd.f32 %v2782, %v2889
        %v2903 = vadd.f32 %v2784, %v2889
        %v2904 = vadd.f32 %v2786, %v2889
        %v2905 = vadd.f32 %v2788, %v2889
        %v2906 = vadd.f32 %v2790, %v2889
        %v2907 = vadd.f32 %v2792, %v2889
        %v2908 = vadd.f32 %v2794, %v2889
        %v2909 = vadd.f32 %v2796, %v2889
        %v2910 = vadd.f32 %v2798, %v2889
        %v2911 = vadd.f32 %v2800, %v2889
        %v2912 = vadd.f32 %v2802, %v2889
        %v2913 = vadd.f32 %v2804, %v2889
        %v2914 = vadd.f32 %v2806, %v2889
        %v2915 = vadd.f32 %v2808, %v2889
        %v2916 = vadd.f32 %v2810, %v2889
        %v2917 = vadd.f32 %v2812, %v2889
        %v2918 = vadd.f32 %v2814, %v2889
        %v2919 = vadd.f32 %v2816, %v2889
        %v2920 = vadd.f32 %v2818, %v2889
        %v2921 = vadd.f32 %v2820, %v2889
        %v2922 = vadd.f32 %v2822, %v2889
        %v2923 = vadd.f32 %v2824, %v2889
        %v2924 = vadd.f32 %v2826, %v2889
        %v2925 = vadd.f32 %v2828, %v2889
        %v2926 = vadd.f32 %v2830, %v2889
        %v2927 = vadd.f32 %v2832, %v2889
        %v2928 = vadd.f32 %v2834, %v2889
        %v2929 = vadd.f32 %v2836, %v2889
        %v2930 = vadd.f32 %v2838, %v2889
        %v2931 = vadd.f32 %v2840, %v2889
        %v2932 = vadd.f32 %v2842, %v2889
        %v2933 = vadd.f32 %v2844, %v2889
        %v2934 = vadd.f32 %v2846, %v2889
        %v2935 = vadd.f32 %v2848, %v2889
        %v2936 = vadd.f32 %v2850, %v2889
        %v2937 = vadd.f32 %v2852, %v2889
        %v2938 = vadd.f32 %v2854, %v2889
        %v2939 = vadd.f32 %v2856, %v2889
        %v2940 = vadd.f32 %v2858, %v2889
        %v2941 = vadd.f32 %v2860, %v2889
        %v2942 = vadd.f32 %v2862, %v2889
        %v2943 = vadd.f32 %v2864, %v2889
        %v2944 = vadd.f32 %v2866, %v2889
        %v2945 = vadd.f32 %v2868, %v2889
        %v2946 = vadd.f32 %v2870, %v2889
        %v2947 = vadd.f32 %v2872, %v2889
        %v2948 = vadd.f32 %v2874, %v2889
        %v2949 = vadd.f32 %v2876, %v2889
        %v2950 = vadd.f32 %v2878, %v2889
        %v2951 = vadd.f32 %v2880, %v2889
        %v2952 = vadd.f32 %v2882, %v2889
        %v2953 = vadd.f32 %v2884, %v2889
        %v2954 = vadd.f32 %v2886, %v2889
        %v2955 = vld [vmem:[%s479] sm:$0xff]
        %v2956 = vld [vmem:[%s479 + $0x8] sm:$0xff]
        %v2957 = vld [vmem:[%s479 + $0x10] sm:$0xff]
        %v2958 = vld [vmem:[%s479 + $0x18] sm:$0xff]
        %v2959 = vld [vmem:[%s479 + $0x20] sm:$0xff]
        %v2960 = vld [vmem:[%s479 + $0x28] sm:$0xff]
        %v2961 = vld [vmem:[%s479 + $0x30] sm:$0xff]
        %v2962 = vld [vmem:[%s479 + $0x38] sm:$0xff]
        %v2963 = vld [vmem:[%s479 + $0x40] sm:$0xff]
        %v2964 = vld [vmem:[%s479 + $0x48] sm:$0xff]
        %v2965 = vld [vmem:[%s479 + $0x50] sm:$0xff]
        %v2966 = vld [vmem:[%s479 + $0x58] sm:$0xff]
        %v2967 = vld [vmem:[%s479 + $0x60] sm:$0xff]
        %v2968 = vld [vmem:[%s479 + $0x68] sm:$0xff]
        %v2969 = vld [vmem:[%s479 + $0x70] sm:$0xff]
        %v2970 = vld [vmem:[%s479 + $0x78] sm:$0xff]
        %v2971 = vld [vmem:[%s479 + $0x80] sm:$0xff]
        %v2972 = vld [vmem:[%s479 + $0x88] sm:$0xff]
        %v2973 = vld [vmem:[%s479 + $0x90] sm:$0xff]
        %v2974 = vld [vmem:[%s479 + $0x98] sm:$0xff]
        %v2975 = vld [vmem:[%s479 + $0xa0] sm:$0xff]
        %v2976 = vld [vmem:[%s479 + $0xa8] sm:$0xff]
        %v2977 = vld [vmem:[%s479 + $0xb0] sm:$0xff]
        %v2978 = vld [vmem:[%s479 + $0xb8] sm:$0xff]
        %v2979 = vld [vmem:[%s479 + $0xc0] sm:$0xff]
        %v2980 = vld [vmem:[%s479 + $0xc8] sm:$0xff]
        %v2981 = vld [vmem:[%s479 + $0xd0] sm:$0xff]
        %v2982 = vld [vmem:[%s479 + $0xd8] sm:$0xff]
        %v2983 = vld [vmem:[%s479 + $0xe0] sm:$0xff]
        %v2984 = vld [vmem:[%s479 + $0xe8] sm:$0xff]
        %v2985 = vld [vmem:[%s479 + $0xf0] sm:$0xff]
        %v2986 = vld [vmem:[%s479 + $0xf8] sm:$0xff]
        %v2987 = vld [vmem:[%s479 + $0x100] sm:$0xff]
        %v2988 = vld [vmem:[%s479 + $0x108] sm:$0xff]
        %v2989 = vld [vmem:[%s479 + $0x110] sm:$0xff]
        %v2990 = vld [vmem:[%s479 + $0x118] sm:$0xff]
        %v2991 = vld [vmem:[%s479 + $0x120] sm:$0xff]
        %v2992 = vld [vmem:[%s479 + $0x128] sm:$0xff]
        %v2993 = vld [vmem:[%s479 + $0x130] sm:$0xff]
        %v2994 = vld [vmem:[%s479 + $0x138] sm:$0xff]
        %v2995 = vld [vmem:[%s479 + $0x140] sm:$0xff]
        %v2996 = vld [vmem:[%s479 + $0x148] sm:$0xff]
        %v2997 = vld [vmem:[%s479 + $0x150] sm:$0xff]
        %v2998 = vld [vmem:[%s479 + $0x158] sm:$0xff]
        %v2999 = vld [vmem:[%s479 + $0x160] sm:$0xff]
        %v3000 = vld [vmem:[%s479 + $0x168] sm:$0xff]
        %v3001 = vld [vmem:[%s479 + $0x170] sm:$0xff]
        %v3002 = vld [vmem:[%s479 + $0x178] sm:$0xff]
        %v3003 = vld [vmem:[%s479 + $0x180] sm:$0xff]
        %v3004 = vld [vmem:[%s479 + $0x188] sm:$0xff]
        %v3005 = vld [vmem:[%s479 + $0x190] sm:$0xff]
        %v3006 = vld [vmem:[%s479 + $0x198] sm:$0xff]
        %v3007 = vld [vmem:[%s479 + $0x1a0] sm:$0xff]
        %v3008 = vld [vmem:[%s479 + $0x1a8] sm:$0xff]
        %v3009 = vld [vmem:[%s479 + $0x1b0] sm:$0xff]
        %v3010 = vld [vmem:[%s479 + $0x1b8] sm:$0xff]
        %v3011 = vld [vmem:[%s479 + $0x1c0] sm:$0xff]
        %v3012 = vld [vmem:[%s479 + $0x1c8] sm:$0xff]
        %v3013 = vld [vmem:[%s479 + $0x1d0] sm:$0xff]
        %v3014 = vld [vmem:[%s479 + $0x1d8] sm:$0xff]
        %v3015 = vld [vmem:[%s479 + $0x1e0] sm:$0xff]
        %v3016 = vld [vmem:[%s479 + $0x1e8] sm:$0xff]
        %v3017 = vld [vmem:[%s479 + $0x1f0] sm:$0xff]
        %v3018 = vld [vmem:[%s479 + $0x1f8] sm:$0xff]
        %v3019 = vld [vmem:[%s10] sm:$0x1]
        %v3021 = vperm.slane %v3019, 0
        %v3023 = vmul.f32 %v2955, %v3021
        %v3024 = vmul.f32 %v2956, %v3021
        %v3025 = vmul.f32 %v2957, %v3021
        %v3026 = vmul.f32 %v2958, %v3021
        %v3027 = vmul.f32 %v2959, %v3021
        %v3028 = vmul.f32 %v2960, %v3021
        %v3029 = vmul.f32 %v2961, %v3021
        %v3030 = vmul.f32 %v2962, %v3021
        %v3031 = vmul.f32 %v2963, %v3021
        %v3032 = vmul.f32 %v2964, %v3021
        %v3033 = vmul.f32 %v2965, %v3021
        %v3034 = vmul.f32 %v2966, %v3021
        %v3035 = vmul.f32 %v2967, %v3021
        %v3036 = vmul.f32 %v2968, %v3021
        %v3037 = vmul.f32 %v2969, %v3021
        %v3038 = vmul.f32 %v2970, %v3021
        %v3039 = vmul.f32 %v2971, %v3021
        %v3040 = vmul.f32 %v2972, %v3021
        %v3041 = vmul.f32 %v2973, %v3021
        %v3042 = vmul.f32 %v2974, %v3021
        %v3043 = vmul.f32 %v2975, %v3021
        %v3044 = vmul.f32 %v2976, %v3021
        %v3045 = vmul.f32 %v2977, %v3021
        %v3046 = vmul.f32 %v2978, %v3021
        %v3047 = vmul.f32 %v2979, %v3021
        %v3048 = vmul.f32 %v2980, %v3021
        %v3049 = vmul.f32 %v2981, %v3021
        %v3050 = vmul.f32 %v2982, %v3021
        %v3051 = vmul.f32 %v2983, %v3021
        %v3052 = vmul.f32 %v2984, %v3021
        %v3053 = vmul.f32 %v2985, %v3021
        %v3054 = vmul.f32 %v2986, %v3021
        %v3055 = vmul.f32 %v2987, %v3021
        %v3056 = vmul.f32 %v2988, %v3021
        %v3057 = vmul.f32 %v2989, %v3021
        %v3058 = vmul.f32 %v2990, %v3021
        %v3059 = vmul.f32 %v2991, %v3021
        %v3060 = vmul.f32 %v2992, %v3021
        %v3061 = vmul.f32 %v2993, %v3021
        %v3062 = vmul.f32 %v2994, %v3021
        %v3063 = vmul.f32 %v2995, %v3021
        %v3064 = vmul.f32 %v2996, %v3021
        %v3065 = vmul.f32 %v2997, %v3021
        %v3066 = vmul.f32 %v2998, %v3021
        %v3067 = vmul.f32 %v2999, %v3021
        %v3068 = vmul.f32 %v3000, %v3021
        %v3069 = vmul.f32 %v3001, %v3021
        %v3070 = vmul.f32 %v3002, %v3021
        %v3071 = vmul.f32 %v3003, %v3021
        %v3072 = vmul.f32 %v3004, %v3021
        %v3073 = vmul.f32 %v3005, %v3021
        %v3074 = vmul.f32 %v3006, %v3021
        %v3075 = vmul.f32 %v3007, %v3021
        %v3076 = vmul.f32 %v3008, %v3021
        %v3077 = vmul.f32 %v3009, %v3021
        %v3078 = vmul.f32 %v3010, %v3021
        %v3079 = vmul.f32 %v3011, %v3021
        %v3080 = vmul.f32 %v3012, %v3021
        %v3081 = vmul.f32 %v3013, %v3021
        %v3082 = vmul.f32 %v3014, %v3021
        %v3083 = vmul.f32 %v3015, %v3021
        %v3084 = vmul.f32 %v3016, %v3021
        %v3085 = vmul.f32 %v3017, %v3021
        %v3086 = vmul.f32 %v3018, %v3021
        %vm3087 = vcmask 31744
        %v3088 = vsel %vm3087, %v3023, 0.0
        %3089 = vadd.xlane.f32.xlu0 %v3088
        %v3090 = vpop.xlane.xlu0 %3089
        %v3091 = vsel %vm3087, %v3024, 0.0
        %3092 = vadd.xlane.f32.xlu0 %v3091
        %v3093 = vpop.xlane.xlu0 %3092
        %v3094 = vsel %vm3087, %v3025, 0.0
        %3095 = vadd.xlane.f32.xlu0 %v3094
        %v3096 = vpop.xlane.xlu0 %3095
        %v3097 = vsel %vm3087, %v3026, 0.0
        %3098 = vadd.xlane.f32.xlu0 %v3097
        %v3099 = vpop.xlane.xlu0 %3098
        %v3100 = vsel %vm3087, %v3027, 0.0
        %3101 = vadd.xlane.f32.xlu0 %v3100
        %v3102 = vpop.xlane.xlu0 %3101
        %v3103 = vsel %vm3087, %v3028, 0.0
        %3104 = vadd.xlane.f32.xlu0 %v3103
        %v3105 = vpop.xlane.xlu0 %3104
        %v3106 = vsel %vm3087, %v3029, 0.0
        %3107 = vadd.xlane.f32.xlu0 %v3106
        %v3108 = vpop.xlane.xlu0 %3107
        %v3109 = vsel %vm3087, %v3030, 0.0
        %3110 = vadd.xlane.f32.xlu0 %v3109
        %v3111 = vpop.xlane.xlu0 %3110
        %v3112 = vsel %vm3087, %v3031, 0.0
        %3113 = vadd.xlane.f32.xlu0 %v3112
        %v3114 = vpop.xlane.xlu0 %3113
        %v3115 = vsel %vm3087, %v3032, 0.0
        %3116 = vadd.xlane.f32.xlu0 %v3115
        %v3117 = vpop.xlane.xlu0 %3116
        %v3118 = vsel %vm3087, %v3033, 0.0
        %3119 = vadd.xlane.f32.xlu0 %v3118
        %v3120 = vpop.xlane.xlu0 %3119
        %v3121 = vsel %vm3087, %v3034, 0.0
        %3122 = vadd.xlane.f32.xlu0 %v3121
        %v3123 = vpop.xlane.xlu0 %3122
        %v3124 = vsel %vm3087, %v3035, 0.0
        %3125 = vadd.xlane.f32.xlu0 %v3124
        %v3126 = vpop.xlane.xlu0 %3125
        %v3127 = vsel %vm3087, %v3036, 0.0
        %3128 = vadd.xlane.f32.xlu0 %v3127
        %v3129 = vpop.xlane.xlu0 %3128
        %v3130 = vsel %vm3087, %v3037, 0.0
        %3131 = vadd.xlane.f32.xlu0 %v3130
        %v3132 = vpop.xlane.xlu0 %3131
        %v3133 = vsel %vm3087, %v3038, 0.0
        %3134 = vadd.xlane.f32.xlu0 %v3133
        %v3135 = vpop.xlane.xlu0 %3134
        %v3136 = vsel %vm3087, %v3039, 0.0
        %3137 = vadd.xlane.f32.xlu0 %v3136
        %v3138 = vpop.xlane.xlu0 %3137
        %v3139 = vsel %vm3087, %v3040, 0.0
        %3140 = vadd.xlane.f32.xlu0 %v3139
        %v3141 = vpop.xlane.xlu0 %3140
        %v3142 = vsel %vm3087, %v3041, 0.0
        %3143 = vadd.xlane.f32.xlu0 %v3142
        %v3144 = vpop.xlane.xlu0 %3143
        %v3145 = vsel %vm3087, %v3042, 0.0
        %3146 = vadd.xlane.f32.xlu0 %v3145
        %v3147 = vpop.xlane.xlu0 %3146
        %v3148 = vsel %vm3087, %v3043, 0.0
        %3149 = vadd.xlane.f32.xlu0 %v3148
        %v3150 = vpop.xlane.xlu0 %3149
        %v3151 = vsel %vm3087, %v3044, 0.0
        %3152 = vadd.xlane.f32.xlu0 %v3151
        %v3153 = vpop.xlane.xlu0 %3152
        %v3154 = vsel %vm3087, %v3045, 0.0
        %3155 = vadd.xlane.f32.xlu0 %v3154
        %v3156 = vpop.xlane.xlu0 %3155
        %v3157 = vsel %vm3087, %v3046, 0.0
        %3158 = vadd.xlane.f32.xlu0 %v3157
        %v3159 = vpop.xlane.xlu0 %3158
        %v3160 = vsel %vm3087, %v3047, 0.0
        %3161 = vadd.xlane.f32.xlu0 %v3160
        %v3162 = vpop.xlane.xlu0 %3161
        %v3163 = vsel %vm3087, %v3048, 0.0
        %3164 = vadd.xlane.f32.xlu0 %v3163
        %v3165 = vpop.xlane.xlu0 %3164
        %v3166 = vsel %vm3087, %v3049, 0.0
        %3167 = vadd.xlane.f32.xlu0 %v3166
        %v3168 = vpop.xlane.xlu0 %3167
        %v3169 = vsel %vm3087, %v3050, 0.0
        %3170 = vadd.xlane.f32.xlu0 %v3169
        %v3171 = vpop.xlane.xlu0 %3170
        %v3172 = vsel %vm3087, %v3051, 0.0
        %3173 = vadd.xlane.f32.xlu0 %v3172
        %v3174 = vpop.xlane.xlu0 %3173
        %v3175 = vsel %vm3087, %v3052, 0.0
        %3176 = vadd.xlane.f32.xlu0 %v3175
        %v3177 = vpop.xlane.xlu0 %3176
        %v3178 = vsel %vm3087, %v3053, 0.0
        %3179 = vadd.xlane.f32.xlu0 %v3178
        %v3180 = vpop.xlane.xlu0 %3179
        %v3181 = vsel %vm3087, %v3054, 0.0
        %3182 = vadd.xlane.f32.xlu0 %v3181
        %v3183 = vpop.xlane.xlu0 %3182
        %v3184 = vsel %vm3087, %v3055, 0.0
        %3185 = vadd.xlane.f32.xlu0 %v3184
        %v3186 = vpop.xlane.xlu0 %3185
        %v3187 = vsel %vm3087, %v3056, 0.0
        %3188 = vadd.xlane.f32.xlu0 %v3187
        %v3189 = vpop.xlane.xlu0 %3188
        %v3190 = vsel %vm3087, %v3057, 0.0
        %3191 = vadd.xlane.f32.xlu0 %v3190
        %v3192 = vpop.xlane.xlu0 %3191
        %v3193 = vsel %vm3087, %v3058, 0.0
        %3194 = vadd.xlane.f32.xlu0 %v3193
        %v3195 = vpop.xlane.xlu0 %3194
        %v3196 = vsel %vm3087, %v3059, 0.0
        %3197 = vadd.xlane.f32.xlu0 %v3196
        %v3198 = vpop.xlane.xlu0 %3197
        %v3199 = vsel %vm3087, %v3060, 0.0
        %3200 = vadd.xlane.f32.xlu0 %v3199
        %v3201 = vpop.xlane.xlu0 %3200
        %v3202 = vsel %vm3087, %v3061, 0.0
        %3203 = vadd.xlane.f32.xlu0 %v3202
        %v3204 = vpop.xlane.xlu0 %3203
        %v3205 = vsel %vm3087, %v3062, 0.0
        %3206 = vadd.xlane.f32.xlu0 %v3205
        %v3207 = vpop.xlane.xlu0 %3206
        %v3208 = vsel %vm3087, %v3063, 0.0
        %3209 = vadd.xlane.f32.xlu0 %v3208
        %v3210 = vpop.xlane.xlu0 %3209
        %v3211 = vsel %vm3087, %v3064, 0.0
        %3212 = vadd.xlane.f32.xlu0 %v3211
        %v3213 = vpop.xlane.xlu0 %3212
        %v3214 = vsel %vm3087, %v3065, 0.0
        %3215 = vadd.xlane.f32.xlu0 %v3214
        %v3216 = vpop.xlane.xlu0 %3215
        %v3217 = vsel %vm3087, %v3066, 0.0
        %3218 = vadd.xlane.f32.xlu0 %v3217
        %v3219 = vpop.xlane.xlu0 %3218
        %v3220 = vsel %vm3087, %v3067, 0.0
        %3221 = vadd.xlane.f32.xlu0 %v3220
        %v3222 = vpop.xlane.xlu0 %3221
        %v3223 = vsel %vm3087, %v3068, 0.0
        %3224 = vadd.xlane.f32.xlu0 %v3223
        %v3225 = vpop.xlane.xlu0 %3224
        %v3226 = vsel %vm3087, %v3069, 0.0
        %3227 = vadd.xlane.f32.xlu0 %v3226
        %v3228 = vpop.xlane.xlu0 %3227
        %v3229 = vsel %vm3087, %v3070, 0.0
        %3230 = vadd.xlane.f32.xlu0 %v3229
        %v3231 = vpop.xlane.xlu0 %3230
        %v3232 = vsel %vm3087, %v3071, 0.0
        %3233 = vadd.xlane.f32.xlu0 %v3232
        %v3234 = vpop.xlane.xlu0 %3233
        %v3235 = vsel %vm3087, %v3072, 0.0
        %3236 = vadd.xlane.f32.xlu0 %v3235
        %v3237 = vpop.xlane.xlu0 %3236
        %v3238 = vsel %vm3087, %v3073, 0.0
        %3239 = vadd.xlane.f32.xlu0 %v3238
        %v3240 = vpop.xlane.xlu0 %3239
        %v3241 = vsel %vm3087, %v3074, 0.0
        %3242 = vadd.xlane.f32.xlu0 %v3241
        %v3243 = vpop.xlane.xlu0 %3242
        %v3244 = vsel %vm3087, %v3075, 0.0
        %3245 = vadd.xlane.f32.xlu0 %v3244
        %v3246 = vpop.xlane.xlu0 %3245
        %v3247 = vsel %vm3087, %v3076, 0.0
        %3248 = vadd.xlane.f32.xlu0 %v3247
        %v3249 = vpop.xlane.xlu0 %3248
        %v3250 = vsel %vm3087, %v3077, 0.0
        %3251 = vadd.xlane.f32.xlu0 %v3250
        %v3252 = vpop.xlane.xlu0 %3251
        %v3253 = vsel %vm3087, %v3078, 0.0
        %3254 = vadd.xlane.f32.xlu0 %v3253
        %v3255 = vpop.xlane.xlu0 %3254
        %v3256 = vsel %vm3087, %v3079, 0.0
        %3257 = vadd.xlane.f32.xlu0 %v3256
        %v3258 = vpop.xlane.xlu0 %3257
        %v3259 = vsel %vm3087, %v3080, 0.0
        %3260 = vadd.xlane.f32.xlu0 %v3259
        %v3261 = vpop.xlane.xlu0 %3260
        %v3262 = vsel %vm3087, %v3081, 0.0
        %3263 = vadd.xlane.f32.xlu0 %v3262
        %v3264 = vpop.xlane.xlu0 %3263
        %v3265 = vsel %vm3087, %v3082, 0.0
        %3266 = vadd.xlane.f32.xlu0 %v3265
        %v3267 = vpop.xlane.xlu0 %3266
        %v3268 = vsel %vm3087, %v3083, 0.0
        %3269 = vadd.xlane.f32.xlu0 %v3268
        %v3270 = vpop.xlane.xlu0 %3269
        %v3271 = vsel %vm3087, %v3084, 0.0
        %3272 = vadd.xlane.f32.xlu0 %v3271
        %v3273 = vpop.xlane.xlu0 %3272
        %v3274 = vsel %vm3087, %v3085, 0.0
        %3275 = vadd.xlane.f32.xlu0 %v3274
        %v3276 = vpop.xlane.xlu0 %3275
        %v3277 = vsel %vm3087, %v3086, 0.0
        %3278 = vadd.xlane.f32.xlu0 %v3277
        %v3279 = vpop.xlane.xlu0 %3278
        %v3280 = vld [vmem:[#allocation9] sm:$0x1]
        %v3282 = vperm.slane %v3280, 0
        %v3284 = vadd.f32 %v3090, %v3282
        %v3285 = vadd.f32 %v3093, %v3282
        %v3286 = vadd.f32 %v3096, %v3282
        %v3287 = vadd.f32 %v3099, %v3282
        %v3288 = vadd.f32 %v3102, %v3282
        %v3289 = vadd.f32 %v3105, %v3282
        %v3290 = vadd.f32 %v3108, %v3282
        %v3291 = vadd.f32 %v3111, %v3282
        %v3292 = vadd.f32 %v3114, %v3282
        %v3293 = vadd.f32 %v3117, %v3282
        %v3294 = vadd.f32 %v3120, %v3282
        %v3295 = vadd.f32 %v3123, %v3282
        %v3296 = vadd.f32 %v3126, %v3282
        %v3297 = vadd.f32 %v3129, %v3282
        %v3298 = vadd.f32 %v3132, %v3282
        %v3299 = vadd.f32 %v3135, %v3282
        %v3300 = vadd.f32 %v3138, %v3282
        %v3301 = vadd.f32 %v3141, %v3282
        %v3302 = vadd.f32 %v3144, %v3282
        %v3303 = vadd.f32 %v3147, %v3282
        %v3304 = vadd.f32 %v3150, %v3282
        %v3305 = vadd.f32 %v3153, %v3282
        %v3306 = vadd.f32 %v3156, %v3282
        %v3307 = vadd.f32 %v3159, %v3282
        %v3308 = vadd.f32 %v3162, %v3282
        %v3309 = vadd.f32 %v3165, %v3282
        %v3310 = vadd.f32 %v3168, %v3282
        %v3311 = vadd.f32 %v3171, %v3282
        %v3312 = vadd.f32 %v3174, %v3282
        %v3313 = vadd.f32 %v3177, %v3282
        %v3314 = vadd.f32 %v3180, %v3282
        %v3315 = vadd.f32 %v3183, %v3282
        %v3316 = vadd.f32 %v3186, %v3282
        %v3317 = vadd.f32 %v3189, %v3282
        %v3318 = vadd.f32 %v3192, %v3282
        %v3319 = vadd.f32 %v3195, %v3282
        %v3320 = vadd.f32 %v3198, %v3282
        %v3321 = vadd.f32 %v3201, %v3282
        %v3322 = vadd.f32 %v3204, %v3282
        %v3323 = vadd.f32 %v3207, %v3282
        %v3324 = vadd.f32 %v3210, %v3282
        %v3325 = vadd.f32 %v3213, %v3282
        %v3326 = vadd.f32 %v3216, %v3282
        %v3327 = vadd.f32 %v3219, %v3282
        %v3328 = vadd.f32 %v3222, %v3282
        %v3329 = vadd.f32 %v3225, %v3282
        %v3330 = vadd.f32 %v3228, %v3282
        %v3331 = vadd.f32 %v3231, %v3282
        %v3332 = vadd.f32 %v3234, %v3282
        %v3333 = vadd.f32 %v3237, %v3282
        %v3334 = vadd.f32 %v3240, %v3282
        %v3335 = vadd.f32 %v3243, %v3282
        %v3336 = vadd.f32 %v3246, %v3282
        %v3337 = vadd.f32 %v3249, %v3282
        %v3338 = vadd.f32 %v3252, %v3282
        %v3339 = vadd.f32 %v3255, %v3282
        %v3340 = vadd.f32 %v3258, %v3282
        %v3341 = vadd.f32 %v3261, %v3282
        %v3342 = vadd.f32 %v3264, %v3282
        %v3343 = vadd.f32 %v3267, %v3282
        %v3344 = vadd.f32 %v3270, %v3282
        %v3345 = vadd.f32 %v3273, %v3282
        %v3346 = vadd.f32 %v3276, %v3282
        %v3347 = vadd.f32 %v3279, %v3282
        %v3348 = vadd.f32 %v3284, %v2891
        %v3349 = vadd.f32 %v3285, %v2892
        %v3350 = vadd.f32 %v3286, %v2893
        %v3351 = vadd.f32 %v3287, %v2894
        %v3352 = vadd.f32 %v3288, %v2895
        %v3353 = vadd.f32 %v3289, %v2896
        %v3354 = vadd.f32 %v3290, %v2897
        %v3355 = vadd.f32 %v3291, %v2898
        %v3356 = vadd.f32 %v3292, %v2899
        %v3357 = vadd.f32 %v3293, %v2900
        %v3358 = vadd.f32 %v3294, %v2901
        %v3359 = vadd.f32 %v3295, %v2902
        %v3360 = vadd.f32 %v3296, %v2903
        %v3361 = vadd.f32 %v3297, %v2904
        %v3362 = vadd.f32 %v3298, %v2905
        %v3363 = vadd.f32 %v3299, %v2906
        %v3364 = vadd.f32 %v3300, %v2907
        %v3365 = vadd.f32 %v3301, %v2908
        %v3366 = vadd.f32 %v3302, %v2909
        %v3367 = vadd.f32 %v3303, %v2910
        %v3368 = vadd.f32 %v3304, %v2911
        %v3369 = vadd.f32 %v3305, %v2912
        %v3370 = vadd.f32 %v3306, %v2913
        %v3371 = vadd.f32 %v3307, %v2914
        %v3372 = vadd.f32 %v3308, %v2915
        %v3373 = vadd.f32 %v3309, %v2916
        %v3374 = vadd.f32 %v3310, %v2917
        %v3375 = vadd.f32 %v3311, %v2918
        %v3376 = vadd.f32 %v3312, %v2919
        %v3377 = vadd.f32 %v3313, %v2920
        %v3378 = vadd.f32 %v3314, %v2921
        %v3379 = vadd.f32 %v3315, %v2922
        %v3380 = vadd.f32 %v3316, %v2923
        %v3381 = vadd.f32 %v3317, %v2924
        %v3382 = vadd.f32 %v3318, %v2925
        %v3383 = vadd.f32 %v3319, %v2926
        %v3384 = vadd.f32 %v3320, %v2927
        %v3385 = vadd.f32 %v3321, %v2928
        %v3386 = vadd.f32 %v3322, %v2929
        %v3387 = vadd.f32 %v3323, %v2930
        %v3388 = vadd.f32 %v3324, %v2931
        %v3389 = vadd.f32 %v3325, %v2932
        %v3390 = vadd.f32 %v3326, %v2933
        %v3391 = vadd.f32 %v3327, %v2934
        %v3392 = vadd.f32 %v3328, %v2935
        %v3393 = vadd.f32 %v3329, %v2936
        %v3394 = vadd.f32 %v3330, %v2937
        %v3395 = vadd.f32 %v3331, %v2938
        %v3396 = vadd.f32 %v3332, %v2939
        %v3397 = vadd.f32 %v3333, %v2940
        %v3398 = vadd.f32 %v3334, %v2941
        %v3399 = vadd.f32 %v3335, %v2942
        %v3400 = vadd.f32 %v3336, %v2943
        %v3401 = vadd.f32 %v3337, %v2944
        %v3402 = vadd.f32 %v3338, %v2945
        %v3403 = vadd.f32 %v3339, %v2946
        %v3404 = vadd.f32 %v3340, %v2947
        %v3405 = vadd.f32 %v3341, %v2948
        %v3406 = vadd.f32 %v3342, %v2949
        %v3407 = vadd.f32 %v3343, %v2950
        %v3408 = vadd.f32 %v3344, %v2951
        %v3409 = vadd.f32 %v3345, %v2952
        %v3410 = vadd.f32 %v3346, %v2953
        %v3411 = vadd.f32 %v3347, %v2954
        %v3412 = vmul.f32 %v3348, 0.5
        %v3413 = vmul.f32 %v3349, 0.5
        %v3414 = vmul.f32 %v3350, 0.5
        %v3415 = vmul.f32 %v3351, 0.5
        %v3416 = vmul.f32 %v3352, 0.5
        %v3417 = vmul.f32 %v3353, 0.5
        %v3418 = vmul.f32 %v3354, 0.5
        %v3419 = vmul.f32 %v3355, 0.5
        %v3420 = vmul.f32 %v3356, 0.5
        %v3421 = vmul.f32 %v3357, 0.5
        %v3422 = vmul.f32 %v3358, 0.5
        %v3423 = vmul.f32 %v3359, 0.5
        %v3424 = vmul.f32 %v3360, 0.5
        %v3425 = vmul.f32 %v3361, 0.5
        %v3426 = vmul.f32 %v3362, 0.5
        %v3427 = vmul.f32 %v3363, 0.5
        %v3428 = vmul.f32 %v3364, 0.5
        %v3429 = vmul.f32 %v3365, 0.5
        %v3430 = vmul.f32 %v3366, 0.5
        %v3431 = vmul.f32 %v3367, 0.5
        %v3432 = vmul.f32 %v3368, 0.5
        %v3433 = vmul.f32 %v3369, 0.5
        %v3434 = vmul.f32 %v3370, 0.5
        %v3435 = vmul.f32 %v3371, 0.5
        %v3436 = vmul.f32 %v3372, 0.5
        %v3437 = vmul.f32 %v3373, 0.5
        %v3438 = vmul.f32 %v3374, 0.5
        %v3439 = vmul.f32 %v3375, 0.5
        %v3440 = vmul.f32 %v3376, 0.5
        %v3441 = vmul.f32 %v3377, 0.5
        %v3442 = vmul.f32 %v3378, 0.5
        %v3443 = vmul.f32 %v3379, 0.5
        %v3444 = vmul.f32 %v3380, 0.5
        %v3445 = vmul.f32 %v3381, 0.5
        %v3446 = vmul.f32 %v3382, 0.5
        %v3447 = vmul.f32 %v3383, 0.5
        %v3448 = vmul.f32 %v3384, 0.5
        %v3449 = vmul.f32 %v3385, 0.5
        %v3450 = vmul.f32 %v3386, 0.5
        %v3451 = vmul.f32 %v3387, 0.5
        %v3452 = vmul.f32 %v3388, 0.5
        %v3453 = vmul.f32 %v3389, 0.5
        %v3454 = vmul.f32 %v3390, 0.5
        %v3455 = vmul.f32 %v3391, 0.5
        %v3456 = vmul.f32 %v3392, 0.5
        %v3457 = vmul.f32 %v3393, 0.5
        %v3458 = vmul.f32 %v3394, 0.5
        %v3459 = vmul.f32 %v3395, 0.5
        %v3460 = vmul.f32 %v3396, 0.5
        %v3461 = vmul.f32 %v3397, 0.5
        %v3462 = vmul.f32 %v3398, 0.5
        %v3463 = vmul.f32 %v3399, 0.5
        %v3464 = vmul.f32 %v3400, 0.5
        %v3465 = vmul.f32 %v3401, 0.5
        %v3466 = vmul.f32 %v3402, 0.5
        %v3467 = vmul.f32 %v3403, 0.5
        %v3468 = vmul.f32 %v3404, 0.5
        %v3469 = vmul.f32 %v3405, 0.5
        %v3470 = vmul.f32 %v3406, 0.5
        %v3471 = vmul.f32 %v3407, 0.5
        %v3472 = vmul.f32 %v3408, 0.5
        %v3473 = vmul.f32 %v3409, 0.5
        %v3474 = vmul.f32 %v3410, 0.5
        %v3475 = vmul.f32 %v3411, 0.5
        %v3476 = vxor.u32 %v3412, 2147483648
        %v3477 = vxor.u32 %v3413, 2147483648
        %v3478 = vxor.u32 %v3414, 2147483648
        %v3479 = vxor.u32 %v3415, 2147483648
        %v3480 = vxor.u32 %v3416, 2147483648
        %v3481 = vxor.u32 %v3417, 2147483648
        %v3482 = vxor.u32 %v3418, 2147483648
        %v3483 = vxor.u32 %v3419, 2147483648
        %v3484 = vxor.u32 %v3420, 2147483648
        %v3485 = vxor.u32 %v3421, 2147483648
        %v3486 = vxor.u32 %v3422, 2147483648
        %v3487 = vxor.u32 %v3423, 2147483648
        %v3488 = vxor.u32 %v3424, 2147483648
        %v3489 = vxor.u32 %v3425, 2147483648
        %v3490 = vxor.u32 %v3426, 2147483648
        %v3491 = vxor.u32 %v3427, 2147483648
        %v3492 = vxor.u32 %v3428, 2147483648
        %v3493 = vxor.u32 %v3429, 2147483648
        %v3494 = vxor.u32 %v3430, 2147483648
        %v3495 = vxor.u32 %v3431, 2147483648
        %v3496 = vxor.u32 %v3432, 2147483648
        %v3497 = vxor.u32 %v3433, 2147483648
        %v3498 = vxor.u32 %v3434, 2147483648
        %v3499 = vxor.u32 %v3435, 2147483648
        %v3500 = vxor.u32 %v3436, 2147483648
        %v3501 = vxor.u32 %v3437, 2147483648
        %v3502 = vxor.u32 %v3438, 2147483648
        %v3503 = vxor.u32 %v3439, 2147483648
        %v3504 = vxor.u32 %v3440, 2147483648
        %v3505 = vxor.u32 %v3441, 2147483648
        %v3506 = vxor.u32 %v3442, 2147483648
        %v3507 = vxor.u32 %v3443, 2147483648
        %v3508 = vxor.u32 %v3444, 2147483648
        %v3509 = vxor.u32 %v3445, 2147483648
        %v3510 = vxor.u32 %v3446, 2147483648
        %v3511 = vxor.u32 %v3447, 2147483648
        %v3512 = vxor.u32 %v3448, 2147483648
        %v3513 = vxor.u32 %v3449, 2147483648
        %v3514 = vxor.u32 %v3450, 2147483648
        %v3515 = vxor.u32 %v3451, 2147483648
        %v3516 = vxor.u32 %v3452, 2147483648
        %v3517 = vxor.u32 %v3453, 2147483648
        %v3518 = vxor.u32 %v3454, 2147483648
        %v3519 = vxor.u32 %v3455, 2147483648
        %v3520 = vxor.u32 %v3456, 2147483648
        %v3521 = vxor.u32 %v3457, 2147483648
        %v3522 = vxor.u32 %v3458, 2147483648
        %v3523 = vxor.u32 %v3459, 2147483648
        %v3524 = vxor.u32 %v3460, 2147483648
        %v3525 = vxor.u32 %v3461, 2147483648
        %v3526 = vxor.u32 %v3462, 2147483648
        %v3527 = vxor.u32 %v3463, 2147483648
        %v3528 = vxor.u32 %v3464, 2147483648
        %v3529 = vxor.u32 %v3465, 2147483648
        %v3530 = vxor.u32 %v3466, 2147483648
        %v3531 = vxor.u32 %v3467, 2147483648
        %v3532 = vxor.u32 %v3468, 2147483648
        %v3533 = vxor.u32 %v3469, 2147483648
        %v3534 = vxor.u32 %v3470, 2147483648
        %v3535 = vxor.u32 %v3471, 2147483648
        %v3536 = vxor.u32 %v3472, 2147483648
        %v3537 = vxor.u32 %v3473, 2147483648
        %v3538 = vxor.u32 %v3474, 2147483648
        %v3539 = vxor.u32 %v3475, 2147483648
        %v3540 = vmul.f32 %v3476, 1.442695
        %v3541 = vpow.pop %v3540
        %v3542 = vmul.f32 %v3477, 1.442695
        %v3543 = vpow.pop %v3542
        %v3544 = vmul.f32 %v3478, 1.442695
        %v3545 = vpow.pop %v3544
        %v3546 = vmul.f32 %v3479, 1.442695
        %v3547 = vpow.pop %v3546
        %v3548 = vmul.f32 %v3480, 1.442695
        %v3549 = vpow.pop %v3548
        %v3550 = vmul.f32 %v3481, 1.442695
        %v3551 = vpow.pop %v3550
        %v3552 = vmul.f32 %v3482, 1.442695
        %v3553 = vpow.pop %v3552
        %v3554 = vmul.f32 %v3483, 1.442695
        %v3555 = vpow.pop %v3554
        %v3556 = vmul.f32 %v3484, 1.442695
        %v3557 = vpow.pop %v3556
        %v3558 = vmul.f32 %v3485, 1.442695
        %v3559 = vpow.pop %v3558
        %v3560 = vmul.f32 %v3486, 1.442695
        %v3561 = vpow.pop %v3560
        %v3562 = vmul.f32 %v3487, 1.442695
        %v3563 = vpow.pop %v3562
        %v3564 = vmul.f32 %v3488, 1.442695
        %v3565 = vpow.pop %v3564
        %v3566 = vmul.f32 %v3489, 1.442695
        %v3567 = vpow.pop %v3566
        %v3568 = vmul.f32 %v3490, 1.442695
        %v3569 = vpow.pop %v3568
        %v3570 = vmul.f32 %v3491, 1.442695
        %v3571 = vpow.pop %v3570
        %v3572 = vmul.f32 %v3492, 1.442695
        %v3573 = vpow.pop %v3572
        %v3574 = vmul.f32 %v3493, 1.442695
        %v3575 = vpow.pop %v3574
        %v3576 = vmul.f32 %v3494, 1.442695
        %v3577 = vpow.pop %v3576
        %v3578 = vmul.f32 %v3495, 1.442695
        %v3579 = vpow.pop %v3578
        %v3580 = vmul.f32 %v3496, 1.442695
        %v3581 = vpow.pop %v3580
        %v3582 = vmul.f32 %v3497, 1.442695
        %v3583 = vpow.pop %v3582
        %v3584 = vmul.f32 %v3498, 1.442695
        %v3585 = vpow.pop %v3584
        %v3586 = vmul.f32 %v3499, 1.442695
        %v3587 = vpow.pop %v3586
        %v3588 = vmul.f32 %v3500, 1.442695
        %v3589 = vpow.pop %v3588
        %v3590 = vmul.f32 %v3501, 1.442695
        %v3591 = vpow.pop %v3590
        %v3592 = vmul.f32 %v3502, 1.442695
        %v3593 = vpow.pop %v3592
        %v3594 = vmul.f32 %v3503, 1.442695
        %v3595 = vpow.pop %v3594
        %v3596 = vmul.f32 %v3504, 1.442695
        %v3597 = vpow.pop %v3596
        %v3598 = vmul.f32 %v3505, 1.442695
        %v3599 = vpow.pop %v3598
        %v3600 = vmul.f32 %v3506, 1.442695
        %v3601 = vpow.pop %v3600
        %v3602 = vmul.f32 %v3507, 1.442695
        %v3603 = vpow.pop %v3602
        %v3604 = vmul.f32 %v3508, 1.442695
        %v3605 = vpow.pop %v3604
        %v3606 = vmul.f32 %v3509, 1.442695
        %v3607 = vpow.pop %v3606
        %v3608 = vmul.f32 %v3510, 1.442695
        %v3609 = vpow.pop %v3608
        %v3610 = vmul.f32 %v3511, 1.442695
        %v3611 = vpow.pop %v3610
        %v3612 = vmul.f32 %v3512, 1.442695
        %v3613 = vpow.pop %v3612
        %v3614 = vmul.f32 %v3513, 1.442695
        %v3615 = vpow.pop %v3614
        %v3616 = vmul.f32 %v3514, 1.442695
        %v3617 = vpow.pop %v3616
        %v3618 = vmul.f32 %v3515, 1.442695
        %v3619 = vpow.pop %v3618
        %v3620 = vmul.f32 %v3516, 1.442695
        %v3621 = vpow.pop %v3620
        %v3622 = vmul.f32 %v3517, 1.442695
        %v3623 = vpow.pop %v3622
        %v3624 = vmul.f32 %v3518, 1.442695
        %v3625 = vpow.pop %v3624
        %v3626 = vmul.f32 %v3519, 1.442695
        %v3627 = vpow.pop %v3626
        %v3628 = vmul.f32 %v3520, 1.442695
        %v3629 = vpow.pop %v3628
        %v3630 = vmul.f32 %v3521, 1.442695
        %v3631 = vpow.pop %v3630
        %v3632 = vmul.f32 %v3522, 1.442695
        %v3633 = vpow.pop %v3632
        %v3634 = vmul.f32 %v3523, 1.442695
        %v3635 = vpow.pop %v3634
        %v3636 = vmul.f32 %v3524, 1.442695
        %v3637 = vpow.pop %v3636
        %v3638 = vmul.f32 %v3525, 1.442695
        %v3639 = vpow.pop %v3638
        %v3640 = vmul.f32 %v3526, 1.442695
        %v3641 = vpow.pop %v3640
        %v3642 = vmul.f32 %v3527, 1.442695
        %v3643 = vpow.pop %v3642
        %v3644 = vmul.f32 %v3528, 1.442695
        %v3645 = vpow.pop %v3644
        %v3646 = vmul.f32 %v3529, 1.442695
        %v3647 = vpow.pop %v3646
        %v3648 = vmul.f32 %v3530, 1.442695
        %v3649 = vpow.pop %v3648
        %v3650 = vmul.f32 %v3531, 1.442695
        %v3651 = vpow.pop %v3650
        %v3652 = vmul.f32 %v3532, 1.442695
        %v3653 = vpow.pop %v3652
        %v3654 = vmul.f32 %v3533, 1.442695
        %v3655 = vpow.pop %v3654
        %v3656 = vmul.f32 %v3534, 1.442695
        %v3657 = vpow.pop %v3656
        %v3658 = vmul.f32 %v3535, 1.442695
        %v3659 = vpow.pop %v3658
        %v3660 = vmul.f32 %v3536, 1.442695
        %v3661 = vpow.pop %v3660
        %v3662 = vmul.f32 %v3537, 1.442695
        %v3663 = vpow.pop %v3662
        %v3664 = vmul.f32 %v3538, 1.442695
        %v3665 = vpow.pop %v3664
        %v3666 = vmul.f32 %v3539, 1.442695
        %v3667 = vpow.pop %v3666
        %v3668 = vadd.f32 %v3541, 1.0
        %v3669 = vadd.f32 %v3543, 1.0
        %v3670 = vadd.f32 %v3545, 1.0
        %v3671 = vadd.f32 %v3547, 1.0
        %v3672 = vadd.f32 %v3549, 1.0
        %v3673 = vadd.f32 %v3551, 1.0
        %v3674 = vadd.f32 %v3553, 1.0
        %v3675 = vadd.f32 %v3555, 1.0
        %v3676 = vadd.f32 %v3557, 1.0
        %v3677 = vadd.f32 %v3559, 1.0
        %v3678 = vadd.f32 %v3561, 1.0
        %v3679 = vadd.f32 %v3563, 1.0
        %v3680 = vadd.f32 %v3565, 1.0
        %v3681 = vadd.f32 %v3567, 1.0
        %v3682 = vadd.f32 %v3569, 1.0
        %v3683 = vadd.f32 %v3571, 1.0
        %v3684 = vadd.f32 %v3573, 1.0
        %v3685 = vadd.f32 %v3575, 1.0
        %v3686 = vadd.f32 %v3577, 1.0
        %v3687 = vadd.f32 %v3579, 1.0
        %v3688 = vadd.f32 %v3581, 1.0
        %v3689 = vadd.f32 %v3583, 1.0
        %v3690 = vadd.f32 %v3585, 1.0
        %v3691 = vadd.f32 %v3587, 1.0
        %v3692 = vadd.f32 %v3589, 1.0
        %v3693 = vadd.f32 %v3591, 1.0
        %v3694 = vadd.f32 %v3593, 1.0
        %v3695 = vadd.f32 %v3595, 1.0
        %v3696 = vadd.f32 %v3597, 1.0
        %v3697 = vadd.f32 %v3599, 1.0
        %v3698 = vadd.f32 %v3601, 1.0
        %v3699 = vadd.f32 %v3603, 1.0
        %v3700 = vadd.f32 %v3605, 1.0
        %v3701 = vadd.f32 %v3607, 1.0
        %v3702 = vadd.f32 %v3609, 1.0
        %v3703 = vadd.f32 %v3611, 1.0
        %v3704 = vadd.f32 %v3613, 1.0
        %v3705 = vadd.f32 %v3615, 1.0
        %v3706 = vadd.f32 %v3617, 1.0
        %v3707 = vadd.f32 %v3619, 1.0
        %v3708 = vadd.f32 %v3621, 1.0
        %v3709 = vadd.f32 %v3623, 1.0
        %v3710 = vadd.f32 %v3625, 1.0
        %v3711 = vadd.f32 %v3627, 1.0
        %v3712 = vadd.f32 %v3629, 1.0
        %v3713 = vadd.f32 %v3631, 1.0
        %v3714 = vadd.f32 %v3633, 1.0
        %v3715 = vadd.f32 %v3635, 1.0
        %v3716 = vadd.f32 %v3637, 1.0
        %v3717 = vadd.f32 %v3639, 1.0
        %v3718 = vadd.f32 %v3641, 1.0
        %v3719 = vadd.f32 %v3643, 1.0
        %v3720 = vadd.f32 %v3645, 1.0
        %v3721 = vadd.f32 %v3647, 1.0
        %v3722 = vadd.f32 %v3649, 1.0
        %v3723 = vadd.f32 %v3651, 1.0
        %v3724 = vadd.f32 %v3653, 1.0
        %v3725 = vadd.f32 %v3655, 1.0
        %v3726 = vadd.f32 %v3657, 1.0
        %v3727 = vadd.f32 %v3659, 1.0
        %v3728 = vadd.f32 %v3661, 1.0
        %v3729 = vadd.f32 %v3663, 1.0
        %v3730 = vadd.f32 %v3665, 1.0
        %v3731 = vadd.f32 %v3667, 1.0
        %v3732 = vrcp.pop %v3668
        %v3733 = vmul.f32 %v3668, %v3732
        %v3734 = vsub.f32 1.0, %v3733
        %v3735 = vmul.f32 %v3732, %v3734
        %v3736 = vadd.f32 %v3732, %v3735
        %vm3737 = vweird.f32 %v3668
        %vm3738 = vweird.f32 %v3732
        %vm3739 = vmor %vm3737, %vm3738
        %v3740 = vsel %vm3739, %v3732, %v3736
        %v3741 = vand.u32 2147483647, %v3668
        %vm3742 = vcmp.eq.f32.partialorder %v3741, 8.507059e+37
        %v3743 = vand.u32 %v3668, 2147483648
        %v3744 = vor.u32 1.1754944e-38, %v3743
        %v3745 = vsel %vm3742, %v3744, %v3740
        %v3746 = vmul.f32 1.0, %v3745
        %v3747 = vrcp.pop %v3669
        %v3748 = vmul.f32 %v3669, %v3747
        %v3749 = vsub.f32 1.0, %v3748
        %v3750 = vmul.f32 %v3747, %v3749
        %v3751 = vadd.f32 %v3747, %v3750
        %vm3752 = vweird.f32 %v3669
        %vm3753 = vweird.f32 %v3747
        %vm3754 = vmor %vm3752, %vm3753
        %v3755 = vsel %vm3754, %v3747, %v3751
        %v3756 = vand.u32 2147483647, %v3669
        %vm3757 = vcmp.eq.f32.partialorder %v3756, 8.507059e+37
        %v3758 = vand.u32 %v3669, 2147483648
        %v3759 = vor.u32 1.1754944e-38, %v3758
        %v3760 = vsel %vm3757, %v3759, %v3755
        %v3761 = vmul.f32 1.0, %v3760
        %v3762 = vrcp.pop %v3670
        %v3763 = vmul.f32 %v3670, %v3762
        %v3764 = vsub.f32 1.0, %v3763
        %v3765 = vmul.f32 %v3762, %v3764
        %v3766 = vadd.f32 %v3762, %v3765
        %vm3767 = vweird.f32 %v3670
        %vm3768 = vweird.f32 %v3762
        %vm3769 = vmor %vm3767, %vm3768
        %v3770 = vsel %vm3769, %v3762, %v3766
        %v3771 = vand.u32 2147483647, %v3670
        %vm3772 = vcmp.eq.f32.partialorder %v3771, 8.507059e+37
        %v3773 = vand.u32 %v3670, 2147483648
        %v3774 = vor.u32 1.1754944e-38, %v3773
        %v3775 = vsel %vm3772, %v3774, %v3770
        %v3776 = vmul.f32 1.0, %v3775
        %v3777 = vrcp.pop %v3671
        %v3778 = vmul.f32 %v3671, %v3777
        %v3779 = vsub.f32 1.0, %v3778
        %v3780 = vmul.f32 %v3777, %v3779
        %v3781 = vadd.f32 %v3777, %v3780
        %vm3782 = vweird.f32 %v3671
        %vm3783 = vweird.f32 %v3777
        %vm3784 = vmor %vm3782, %vm3783
        %v3785 = vsel %vm3784, %v3777, %v3781
        %v3786 = vand.u32 2147483647, %v3671
        %vm3787 = vcmp.eq.f32.partialorder %v3786, 8.507059e+37
        %v3788 = vand.u32 %v3671, 2147483648
        %v3789 = vor.u32 1.1754944e-38, %v3788
        %v3790 = vsel %vm3787, %v3789, %v3785
        %v3791 = vmul.f32 1.0, %v3790
        %v3792 = vrcp.pop %v3672
        %v3793 = vmul.f32 %v3672, %v3792
        %v3794 = vsub.f32 1.0, %v3793
        %v3795 = vmul.f32 %v3792, %v3794
        %v3796 = vadd.f32 %v3792, %v3795
        %vm3797 = vweird.f32 %v3672
        %vm3798 = vweird.f32 %v3792
        %vm3799 = vmor %vm3797, %vm3798
        %v3800 = vsel %vm3799, %v3792, %v3796
        %v3801 = vand.u32 2147483647, %v3672
        %vm3802 = vcmp.eq.f32.partialorder %v3801, 8.507059e+37
        %v3803 = vand.u32 %v3672, 2147483648
        %v3804 = vor.u32 1.1754944e-38, %v3803
        %v3805 = vsel %vm3802, %v3804, %v3800
        %v3806 = vmul.f32 1.0, %v3805
        %v3807 = vrcp.pop %v3673
        %v3808 = vmul.f32 %v3673, %v3807
        %v3809 = vsub.f32 1.0, %v3808
        %v3810 = vmul.f32 %v3807, %v3809
        %v3811 = vadd.f32 %v3807, %v3810
        %vm3812 = vweird.f32 %v3673
        %vm3813 = vweird.f32 %v3807
        %vm3814 = vmor %vm3812, %vm3813
        %v3815 = vsel %vm3814, %v3807, %v3811
        %v3816 = vand.u32 2147483647, %v3673
        %vm3817 = vcmp.eq.f32.partialorder %v3816, 8.507059e+37
        %v3818 = vand.u32 %v3673, 2147483648
        %v3819 = vor.u32 1.1754944e-38, %v3818
        %v3820 = vsel %vm3817, %v3819, %v3815
        %v3821 = vmul.f32 1.0, %v3820
        %v3822 = vrcp.pop %v3674
        %v3823 = vmul.f32 %v3674, %v3822
        %v3824 = vsub.f32 1.0, %v3823
        %v3825 = vmul.f32 %v3822, %v3824
        %v3826 = vadd.f32 %v3822, %v3825
        %vm3827 = vweird.f32 %v3674
        %vm3828 = vweird.f32 %v3822
        %vm3829 = vmor %vm3827, %vm3828
        %v3830 = vsel %vm3829, %v3822, %v3826
        %v3831 = vand.u32 2147483647, %v3674
        %vm3832 = vcmp.eq.f32.partialorder %v3831, 8.507059e+37
        %v3833 = vand.u32 %v3674, 2147483648
        %v3834 = vor.u32 1.1754944e-38, %v3833
        %v3835 = vsel %vm3832, %v3834, %v3830
        %v3836 = vmul.f32 1.0, %v3835
        %v3837 = vrcp.pop %v3675
        %v3838 = vmul.f32 %v3675, %v3837
        %v3839 = vsub.f32 1.0, %v3838
        %v3840 = vmul.f32 %v3837, %v3839
        %v3841 = vadd.f32 %v3837, %v3840
        %vm3842 = vweird.f32 %v3675
        %vm3843 = vweird.f32 %v3837
        %vm3844 = vmor %vm3842, %vm3843
        %v3845 = vsel %vm3844, %v3837, %v3841
        %v3846 = vand.u32 2147483647, %v3675
        %vm3847 = vcmp.eq.f32.partialorder %v3846, 8.507059e+37
        %v3848 = vand.u32 %v3675, 2147483648
        %v3849 = vor.u32 1.1754944e-38, %v3848
        %v3850 = vsel %vm3847, %v3849, %v3845
        %v3851 = vmul.f32 1.0, %v3850
        %v3852 = vrcp.pop %v3676
        %v3853 = vmul.f32 %v3676, %v3852
        %v3854 = vsub.f32 1.0, %v3853
        %v3855 = vmul.f32 %v3852, %v3854
        %v3856 = vadd.f32 %v3852, %v3855
        %vm3857 = vweird.f32 %v3676
        %vm3858 = vweird.f32 %v3852
        %vm3859 = vmor %vm3857, %vm3858
        %v3860 = vsel %vm3859, %v3852, %v3856
        %v3861 = vand.u32 2147483647, %v3676
        %vm3862 = vcmp.eq.f32.partialorder %v3861, 8.507059e+37
        %v3863 = vand.u32 %v3676, 2147483648
        %v3864 = vor.u32 1.1754944e-38, %v3863
        %v3865 = vsel %vm3862, %v3864, %v3860
        %v3866 = vmul.f32 1.0, %v3865
        %v3867 = vrcp.pop %v3677
        %v3868 = vmul.f32 %v3677, %v3867
        %v3869 = vsub.f32 1.0, %v3868
        %v3870 = vmul.f32 %v3867, %v3869
        %v3871 = vadd.f32 %v3867, %v3870
        %vm3872 = vweird.f32 %v3677
        %vm3873 = vweird.f32 %v3867
        %vm3874 = vmor %vm3872, %vm3873
        %v3875 = vsel %vm3874, %v3867, %v3871
        %v3876 = vand.u32 2147483647, %v3677
        %vm3877 = vcmp.eq.f32.partialorder %v3876, 8.507059e+37
        %v3878 = vand.u32 %v3677, 2147483648
        %v3879 = vor.u32 1.1754944e-38, %v3878
        %v3880 = vsel %vm3877, %v3879, %v3875
        %v3881 = vmul.f32 1.0, %v3880
        %v3882 = vrcp.pop %v3678
        %v3883 = vmul.f32 %v3678, %v3882
        %v3884 = vsub.f32 1.0, %v3883
        %v3885 = vmul.f32 %v3882, %v3884
        %v3886 = vadd.f32 %v3882, %v3885
        %vm3887 = vweird.f32 %v3678
        %vm3888 = vweird.f32 %v3882
        %vm3889 = vmor %vm3887, %vm3888
        %v3890 = vsel %vm3889, %v3882, %v3886
        %v3891 = vand.u32 2147483647, %v3678
        %vm3892 = vcmp.eq.f32.partialorder %v3891, 8.507059e+37
        %v3893 = vand.u32 %v3678, 2147483648
        %v3894 = vor.u32 1.1754944e-38, %v3893
        %v3895 = vsel %vm3892, %v3894, %v3890
        %v3896 = vmul.f32 1.0, %v3895
        %v3897 = vrcp.pop %v3679
        %v3898 = vmul.f32 %v3679, %v3897
        %v3899 = vsub.f32 1.0, %v3898
        %v3900 = vmul.f32 %v3897, %v3899
        %v3901 = vadd.f32 %v3897, %v3900
        %vm3902 = vweird.f32 %v3679
        %vm3903 = vweird.f32 %v3897
        %vm3904 = vmor %vm3902, %vm3903
        %v3905 = vsel %vm3904, %v3897, %v3901
        %v3906 = vand.u32 2147483647, %v3679
        %vm3907 = vcmp.eq.f32.partialorder %v3906, 8.507059e+37
        %v3908 = vand.u32 %v3679, 2147483648
        %v3909 = vor.u32 1.1754944e-38, %v3908
        %v3910 = vsel %vm3907, %v3909, %v3905
        %v3911 = vmul.f32 1.0, %v3910
        %v3912 = vrcp.pop %v3680
        %v3913 = vmul.f32 %v3680, %v3912
        %v3914 = vsub.f32 1.0, %v3913
        %v3915 = vmul.f32 %v3912, %v3914
        %v3916 = vadd.f32 %v3912, %v3915
        %vm3917 = vweird.f32 %v3680
        %vm3918 = vweird.f32 %v3912
        %vm3919 = vmor %vm3917, %vm3918
        %v3920 = vsel %vm3919, %v3912, %v3916
        %v3921 = vand.u32 2147483647, %v3680
        %vm3922 = vcmp.eq.f32.partialorder %v3921, 8.507059e+37
        %v3923 = vand.u32 %v3680, 2147483648
        %v3924 = vor.u32 1.1754944e-38, %v3923
        %v3925 = vsel %vm3922, %v3924, %v3920
        %v3926 = vmul.f32 1.0, %v3925
        %v3927 = vrcp.pop %v3681
        %v3928 = vmul.f32 %v3681, %v3927
        %v3929 = vsub.f32 1.0, %v3928
        %v3930 = vmul.f32 %v3927, %v3929
        %v3931 = vadd.f32 %v3927, %v3930
        %vm3932 = vweird.f32 %v3681
        %vm3933 = vweird.f32 %v3927
        %vm3934 = vmor %vm3932, %vm3933
        %v3935 = vsel %vm3934, %v3927, %v3931
        %v3936 = vand.u32 2147483647, %v3681
        %vm3937 = vcmp.eq.f32.partialorder %v3936, 8.507059e+37
        %v3938 = vand.u32 %v3681, 2147483648
        %v3939 = vor.u32 1.1754944e-38, %v3938
        %v3940 = vsel %vm3937, %v3939, %v3935
        %v3941 = vmul.f32 1.0, %v3940
        %v3942 = vrcp.pop %v3682
        %v3943 = vmul.f32 %v3682, %v3942
        %v3944 = vsub.f32 1.0, %v3943
        %v3945 = vmul.f32 %v3942, %v3944
        %v3946 = vadd.f32 %v3942, %v3945
        %vm3947 = vweird.f32 %v3682
        %vm3948 = vweird.f32 %v3942
        %vm3949 = vmor %vm3947, %vm3948
        %v3950 = vsel %vm3949, %v3942, %v3946
        %v3951 = vand.u32 2147483647, %v3682
        %vm3952 = vcmp.eq.f32.partialorder %v3951, 8.507059e+37
        %v3953 = vand.u32 %v3682, 2147483648
        %v3954 = vor.u32 1.1754944e-38, %v3953
        %v3955 = vsel %vm3952, %v3954, %v3950
        %v3956 = vmul.f32 1.0, %v3955
        %v3957 = vrcp.pop %v3683
        %v3958 = vmul.f32 %v3683, %v3957
        %v3959 = vsub.f32 1.0, %v3958
        %v3960 = vmul.f32 %v3957, %v3959
        %v3961 = vadd.f32 %v3957, %v3960
        %vm3962 = vweird.f32 %v3683
        %vm3963 = vweird.f32 %v3957
        %vm3964 = vmor %vm3962, %vm3963
        %v3965 = vsel %vm3964, %v3957, %v3961
        %v3966 = vand.u32 2147483647, %v3683
        %vm3967 = vcmp.eq.f32.partialorder %v3966, 8.507059e+37
        %v3968 = vand.u32 %v3683, 2147483648
        %v3969 = vor.u32 1.1754944e-38, %v3968
        %v3970 = vsel %vm3967, %v3969, %v3965
        %v3971 = vmul.f32 1.0, %v3970
        %v3972 = vrcp.pop %v3684
        %v3973 = vmul.f32 %v3684, %v3972
        %v3974 = vsub.f32 1.0, %v3973
        %v3975 = vmul.f32 %v3972, %v3974
        %v3976 = vadd.f32 %v3972, %v3975
        %vm3977 = vweird.f32 %v3684
        %vm3978 = vweird.f32 %v3972
        %vm3979 = vmor %vm3977, %vm3978
        %v3980 = vsel %vm3979, %v3972, %v3976
        %v3981 = vand.u32 2147483647, %v3684
        %vm3982 = vcmp.eq.f32.partialorder %v3981, 8.507059e+37
        %v3983 = vand.u32 %v3684, 2147483648
        %v3984 = vor.u32 1.1754944e-38, %v3983
        %v3985 = vsel %vm3982, %v3984, %v3980
        %v3986 = vmul.f32 1.0, %v3985
        %v3987 = vrcp.pop %v3685
        %v3988 = vmul.f32 %v3685, %v3987
        %v3989 = vsub.f32 1.0, %v3988
        %v3990 = vmul.f32 %v3987, %v3989
        %v3991 = vadd.f32 %v3987, %v3990
        %vm3992 = vweird.f32 %v3685
        %vm3993 = vweird.f32 %v3987
        %vm3994 = vmor %vm3992, %vm3993
        %v3995 = vsel %vm3994, %v3987, %v3991
        %v3996 = vand.u32 2147483647, %v3685
        %vm3997 = vcmp.eq.f32.partialorder %v3996, 8.507059e+37
        %v3998 = vand.u32 %v3685, 2147483648
        %v3999 = vor.u32 1.1754944e-38, %v3998
        %v4000 = vsel %vm3997, %v3999, %v3995
        %v4001 = vmul.f32 1.0, %v4000
        %v4002 = vrcp.pop %v3686
        %v4003 = vmul.f32 %v3686, %v4002
        %v4004 = vsub.f32 1.0, %v4003
        %v4005 = vmul.f32 %v4002, %v4004
        %v4006 = vadd.f32 %v4002, %v4005
        %vm4007 = vweird.f32 %v3686
        %vm4008 = vweird.f32 %v4002
        %vm4009 = vmor %vm4007, %vm4008
        %v4010 = vsel %vm4009, %v4002, %v4006
        %v4011 = vand.u32 2147483647, %v3686
        %vm4012 = vcmp.eq.f32.partialorder %v4011, 8.507059e+37
        %v4013 = vand.u32 %v3686, 2147483648
        %v4014 = vor.u32 1.1754944e-38, %v4013
        %v4015 = vsel %vm4012, %v4014, %v4010
        %v4016 = vmul.f32 1.0, %v4015
        %v4017 = vrcp.pop %v3687
        %v4018 = vmul.f32 %v3687, %v4017
        %v4019 = vsub.f32 1.0, %v4018
        %v4020 = vmul.f32 %v4017, %v4019
        %v4021 = vadd.f32 %v4017, %v4020
        %vm4022 = vweird.f32 %v3687
        %vm4023 = vweird.f32 %v4017
        %vm4024 = vmor %vm4022, %vm4023
        %v4025 = vsel %vm4024, %v4017, %v4021
        %v4026 = vand.u32 2147483647, %v3687
        %vm4027 = vcmp.eq.f32.partialorder %v4026, 8.507059e+37
        %v4028 = vand.u32 %v3687, 2147483648
        %v4029 = vor.u32 1.1754944e-38, %v4028
        %v4030 = vsel %vm4027, %v4029, %v4025
        %v4031 = vmul.f32 1.0, %v4030
        %v4032 = vrcp.pop %v3688
        %v4033 = vmul.f32 %v3688, %v4032
        %v4034 = vsub.f32 1.0, %v4033
        %v4035 = vmul.f32 %v4032, %v4034
        %v4036 = vadd.f32 %v4032, %v4035
        %vm4037 = vweird.f32 %v3688
        %vm4038 = vweird.f32 %v4032
        %vm4039 = vmor %vm4037, %vm4038
        %v4040 = vsel %vm4039, %v4032, %v4036
        %v4041 = vand.u32 2147483647, %v3688
        %vm4042 = vcmp.eq.f32.partialorder %v4041, 8.507059e+37
        %v4043 = vand.u32 %v3688, 2147483648
        %v4044 = vor.u32 1.1754944e-38, %v4043
        %v4045 = vsel %vm4042, %v4044, %v4040
        %v4046 = vmul.f32 1.0, %v4045
        %v4047 = vrcp.pop %v3689
        %v4048 = vmul.f32 %v3689, %v4047
        %v4049 = vsub.f32 1.0, %v4048
        %v4050 = vmul.f32 %v4047, %v4049
        %v4051 = vadd.f32 %v4047, %v4050
        %vm4052 = vweird.f32 %v3689
        %vm4053 = vweird.f32 %v4047
        %vm4054 = vmor %vm4052, %vm4053
        %v4055 = vsel %vm4054, %v4047, %v4051
        %v4056 = vand.u32 2147483647, %v3689
        %vm4057 = vcmp.eq.f32.partialorder %v4056, 8.507059e+37
        %v4058 = vand.u32 %v3689, 2147483648
        %v4059 = vor.u32 1.1754944e-38, %v4058
        %v4060 = vsel %vm4057, %v4059, %v4055
        %v4061 = vmul.f32 1.0, %v4060
        %v4062 = vrcp.pop %v3690
        %v4063 = vmul.f32 %v3690, %v4062
        %v4064 = vsub.f32 1.0, %v4063
        %v4065 = vmul.f32 %v4062, %v4064
        %v4066 = vadd.f32 %v4062, %v4065
        %vm4067 = vweird.f32 %v3690
        %vm4068 = vweird.f32 %v4062
        %vm4069 = vmor %vm4067, %vm4068
        %v4070 = vsel %vm4069, %v4062, %v4066
        %v4071 = vand.u32 2147483647, %v3690
        %vm4072 = vcmp.eq.f32.partialorder %v4071, 8.507059e+37
        %v4073 = vand.u32 %v3690, 2147483648
        %v4074 = vor.u32 1.1754944e-38, %v4073
        %v4075 = vsel %vm4072, %v4074, %v4070
        %v4076 = vmul.f32 1.0, %v4075
        %v4077 = vrcp.pop %v3691
        %v4078 = vmul.f32 %v3691, %v4077
        %v4079 = vsub.f32 1.0, %v4078
        %v4080 = vmul.f32 %v4077, %v4079
        %v4081 = vadd.f32 %v4077, %v4080
        %vm4082 = vweird.f32 %v3691
        %vm4083 = vweird.f32 %v4077
        %vm4084 = vmor %vm4082, %vm4083
        %v4085 = vsel %vm4084, %v4077, %v4081
        %v4086 = vand.u32 2147483647, %v3691
        %vm4087 = vcmp.eq.f32.partialorder %v4086, 8.507059e+37
        %v4088 = vand.u32 %v3691, 2147483648
        %v4089 = vor.u32 1.1754944e-38, %v4088
        %v4090 = vsel %vm4087, %v4089, %v4085
        %v4091 = vmul.f32 1.0, %v4090
        %v4092 = vrcp.pop %v3692
        %v4093 = vmul.f32 %v3692, %v4092
        %v4094 = vsub.f32 1.0, %v4093
        %v4095 = vmul.f32 %v4092, %v4094
        %v4096 = vadd.f32 %v4092, %v4095
        %vm4097 = vweird.f32 %v3692
        %vm4098 = vweird.f32 %v4092
        %vm4099 = vmor %vm4097, %vm4098
        %v4100 = vsel %vm4099, %v4092, %v4096
        %v4101 = vand.u32 2147483647, %v3692
        %vm4102 = vcmp.eq.f32.partialorder %v4101, 8.507059e+37
        %v4103 = vand.u32 %v3692, 2147483648
        %v4104 = vor.u32 1.1754944e-38, %v4103
        %v4105 = vsel %vm4102, %v4104, %v4100
        %v4106 = vmul.f32 1.0, %v4105
        %v4107 = vrcp.pop %v3693
        %v4108 = vmul.f32 %v3693, %v4107
        %v4109 = vsub.f32 1.0, %v4108
        %v4110 = vmul.f32 %v4107, %v4109
        %v4111 = vadd.f32 %v4107, %v4110
        %vm4112 = vweird.f32 %v3693
        %vm4113 = vweird.f32 %v4107
        %vm4114 = vmor %vm4112, %vm4113
        %v4115 = vsel %vm4114, %v4107, %v4111
        %v4116 = vand.u32 2147483647, %v3693
        %vm4117 = vcmp.eq.f32.partialorder %v4116, 8.507059e+37
        %v4118 = vand.u32 %v3693, 2147483648
        %v4119 = vor.u32 1.1754944e-38, %v4118
        %v4120 = vsel %vm4117, %v4119, %v4115
        %v4121 = vmul.f32 1.0, %v4120
        %v4122 = vrcp.pop %v3694
        %v4123 = vmul.f32 %v3694, %v4122
        %v4124 = vsub.f32 1.0, %v4123
        %v4125 = vmul.f32 %v4122, %v4124
        %v4126 = vadd.f32 %v4122, %v4125
        %vm4127 = vweird.f32 %v3694
        %vm4128 = vweird.f32 %v4122
        %vm4129 = vmor %vm4127, %vm4128
        %v4130 = vsel %vm4129, %v4122, %v4126
        %v4131 = vand.u32 2147483647, %v3694
        %vm4132 = vcmp.eq.f32.partialorder %v4131, 8.507059e+37
        %v4133 = vand.u32 %v3694, 2147483648
        %v4134 = vor.u32 1.1754944e-38, %v4133
        %v4135 = vsel %vm4132, %v4134, %v4130
        %v4136 = vmul.f32 1.0, %v4135
        %v4137 = vrcp.pop %v3695
        %v4138 = vmul.f32 %v3695, %v4137
        %v4139 = vsub.f32 1.0, %v4138
        %v4140 = vmul.f32 %v4137, %v4139
        %v4141 = vadd.f32 %v4137, %v4140
        %vm4142 = vweird.f32 %v3695
        %vm4143 = vweird.f32 %v4137
        %vm4144 = vmor %vm4142, %vm4143
        %v4145 = vsel %vm4144, %v4137, %v4141
        %v4146 = vand.u32 2147483647, %v3695
        %vm4147 = vcmp.eq.f32.partialorder %v4146, 8.507059e+37
        %v4148 = vand.u32 %v3695, 2147483648
        %v4149 = vor.u32 1.1754944e-38, %v4148
        %v4150 = vsel %vm4147, %v4149, %v4145
        %v4151 = vmul.f32 1.0, %v4150
        %v4152 = vrcp.pop %v3696
        %v4153 = vmul.f32 %v3696, %v4152
        %v4154 = vsub.f32 1.0, %v4153
        %v4155 = vmul.f32 %v4152, %v4154
        %v4156 = vadd.f32 %v4152, %v4155
        %vm4157 = vweird.f32 %v3696
        %vm4158 = vweird.f32 %v4152
        %vm4159 = vmor %vm4157, %vm4158
        %v4160 = vsel %vm4159, %v4152, %v4156
        %v4161 = vand.u32 2147483647, %v3696
        %vm4162 = vcmp.eq.f32.partialorder %v4161, 8.507059e+37
        %v4163 = vand.u32 %v3696, 2147483648
        %v4164 = vor.u32 1.1754944e-38, %v4163
        %v4165 = vsel %vm4162, %v4164, %v4160
        %v4166 = vmul.f32 1.0, %v4165
        %v4167 = vrcp.pop %v3697
        %v4168 = vmul.f32 %v3697, %v4167
        %v4169 = vsub.f32 1.0, %v4168
        %v4170 = vmul.f32 %v4167, %v4169
        %v4171 = vadd.f32 %v4167, %v4170
        %vm4172 = vweird.f32 %v3697
        %vm4173 = vweird.f32 %v4167
        %vm4174 = vmor %vm4172, %vm4173
        %v4175 = vsel %vm4174, %v4167, %v4171
        %v4176 = vand.u32 2147483647, %v3697
        %vm4177 = vcmp.eq.f32.partialorder %v4176, 8.507059e+37
        %v4178 = vand.u32 %v3697, 2147483648
        %v4179 = vor.u32 1.1754944e-38, %v4178
        %v4180 = vsel %vm4177, %v4179, %v4175
        %v4181 = vmul.f32 1.0, %v4180
        %v4182 = vrcp.pop %v3698
        %v4183 = vmul.f32 %v3698, %v4182
        %v4184 = vsub.f32 1.0, %v4183
        %v4185 = vmul.f32 %v4182, %v4184
        %v4186 = vadd.f32 %v4182, %v4185
        %vm4187 = vweird.f32 %v3698
        %vm4188 = vweird.f32 %v4182
        %vm4189 = vmor %vm4187, %vm4188
        %v4190 = vsel %vm4189, %v4182, %v4186
        %v4191 = vand.u32 2147483647, %v3698
        %vm4192 = vcmp.eq.f32.partialorder %v4191, 8.507059e+37
        %v4193 = vand.u32 %v3698, 2147483648
        %v4194 = vor.u32 1.1754944e-38, %v4193
        %v4195 = vsel %vm4192, %v4194, %v4190
        %v4196 = vmul.f32 1.0, %v4195
        %v4197 = vrcp.pop %v3699
        %v4198 = vmul.f32 %v3699, %v4197
        %v4199 = vsub.f32 1.0, %v4198
        %v4200 = vmul.f32 %v4197, %v4199
        %v4201 = vadd.f32 %v4197, %v4200
        %vm4202 = vweird.f32 %v3699
        %vm4203 = vweird.f32 %v4197
        %vm4204 = vmor %vm4202, %vm4203
        %v4205 = vsel %vm4204, %v4197, %v4201
        %v4206 = vand.u32 2147483647, %v3699
        %vm4207 = vcmp.eq.f32.partialorder %v4206, 8.507059e+37
        %v4208 = vand.u32 %v3699, 2147483648
        %v4209 = vor.u32 1.1754944e-38, %v4208
        %v4210 = vsel %vm4207, %v4209, %v4205
        %v4211 = vmul.f32 1.0, %v4210
        %v4212 = vrcp.pop %v3700
        %v4213 = vmul.f32 %v3700, %v4212
        %v4214 = vsub.f32 1.0, %v4213
        %v4215 = vmul.f32 %v4212, %v4214
        %v4216 = vadd.f32 %v4212, %v4215
        %vm4217 = vweird.f32 %v3700
        %vm4218 = vweird.f32 %v4212
        %vm4219 = vmor %vm4217, %vm4218
        %v4220 = vsel %vm4219, %v4212, %v4216
        %v4221 = vand.u32 2147483647, %v3700
        %vm4222 = vcmp.eq.f32.partialorder %v4221, 8.507059e+37
        %v4223 = vand.u32 %v3700, 2147483648
        %v4224 = vor.u32 1.1754944e-38, %v4223
        %v4225 = vsel %vm4222, %v4224, %v4220
        %v4226 = vmul.f32 1.0, %v4225
        %v4227 = vrcp.pop %v3701
        %v4228 = vmul.f32 %v3701, %v4227
        %v4229 = vsub.f32 1.0, %v4228
        %v4230 = vmul.f32 %v4227, %v4229
        %v4231 = vadd.f32 %v4227, %v4230
        %vm4232 = vweird.f32 %v3701
        %vm4233 = vweird.f32 %v4227
        %vm4234 = vmor %vm4232, %vm4233
        %v4235 = vsel %vm4234, %v4227, %v4231
        %v4236 = vand.u32 2147483647, %v3701
        %vm4237 = vcmp.eq.f32.partialorder %v4236, 8.507059e+37
        %v4238 = vand.u32 %v3701, 2147483648
        %v4239 = vor.u32 1.1754944e-38, %v4238
        %v4240 = vsel %vm4237, %v4239, %v4235
        %v4241 = vmul.f32 1.0, %v4240
        %v4242 = vrcp.pop %v3702
        %v4243 = vmul.f32 %v3702, %v4242
        %v4244 = vsub.f32 1.0, %v4243
        %v4245 = vmul.f32 %v4242, %v4244
        %v4246 = vadd.f32 %v4242, %v4245
        %vm4247 = vweird.f32 %v3702
        %vm4248 = vweird.f32 %v4242
        %vm4249 = vmor %vm4247, %vm4248
        %v4250 = vsel %vm4249, %v4242, %v4246
        %v4251 = vand.u32 2147483647, %v3702
        %vm4252 = vcmp.eq.f32.partialorder %v4251, 8.507059e+37
        %v4253 = vand.u32 %v3702, 2147483648
        %v4254 = vor.u32 1.1754944e-38, %v4253
        %v4255 = vsel %vm4252, %v4254, %v4250
        %v4256 = vmul.f32 1.0, %v4255
        %v4257 = vrcp.pop %v3703
        %v4258 = vmul.f32 %v3703, %v4257
        %v4259 = vsub.f32 1.0, %v4258
        %v4260 = vmul.f32 %v4257, %v4259
        %v4261 = vadd.f32 %v4257, %v4260
        %vm4262 = vweird.f32 %v3703
        %vm4263 = vweird.f32 %v4257
        %vm4264 = vmor %vm4262, %vm4263
        %v4265 = vsel %vm4264, %v4257, %v4261
        %v4266 = vand.u32 2147483647, %v3703
        %vm4267 = vcmp.eq.f32.partialorder %v4266, 8.507059e+37
        %v4268 = vand.u32 %v3703, 2147483648
        %v4269 = vor.u32 1.1754944e-38, %v4268
        %v4270 = vsel %vm4267, %v4269, %v4265
        %v4271 = vmul.f32 1.0, %v4270
        %v4272 = vrcp.pop %v3704
        %v4273 = vmul.f32 %v3704, %v4272
        %v4274 = vsub.f32 1.0, %v4273
        %v4275 = vmul.f32 %v4272, %v4274
        %v4276 = vadd.f32 %v4272, %v4275
        %vm4277 = vweird.f32 %v3704
        %vm4278 = vweird.f32 %v4272
        %vm4279 = vmor %vm4277, %vm4278
        %v4280 = vsel %vm4279, %v4272, %v4276
        %v4281 = vand.u32 2147483647, %v3704
        %vm4282 = vcmp.eq.f32.partialorder %v4281, 8.507059e+37
        %v4283 = vand.u32 %v3704, 2147483648
        %v4284 = vor.u32 1.1754944e-38, %v4283
        %v4285 = vsel %vm4282, %v4284, %v4280
        %v4286 = vmul.f32 1.0, %v4285
        %v4287 = vrcp.pop %v3705
        %v4288 = vmul.f32 %v3705, %v4287
        %v4289 = vsub.f32 1.0, %v4288
        %v4290 = vmul.f32 %v4287, %v4289
        %v4291 = vadd.f32 %v4287, %v4290
        %vm4292 = vweird.f32 %v3705
        %vm4293 = vweird.f32 %v4287
        %vm4294 = vmor %vm4292, %vm4293
        %v4295 = vsel %vm4294, %v4287, %v4291
        %v4296 = vand.u32 2147483647, %v3705
        %vm4297 = vcmp.eq.f32.partialorder %v4296, 8.507059e+37
        %v4298 = vand.u32 %v3705, 2147483648
        %v4299 = vor.u32 1.1754944e-38, %v4298
        %v4300 = vsel %vm4297, %v4299, %v4295
        %v4301 = vmul.f32 1.0, %v4300
        %v4302 = vrcp.pop %v3706
        %v4303 = vmul.f32 %v3706, %v4302
        %v4304 = vsub.f32 1.0, %v4303
        %v4305 = vmul.f32 %v4302, %v4304
        %v4306 = vadd.f32 %v4302, %v4305
        %vm4307 = vweird.f32 %v3706
        %vm4308 = vweird.f32 %v4302
        %vm4309 = vmor %vm4307, %vm4308
        %v4310 = vsel %vm4309, %v4302, %v4306
        %v4311 = vand.u32 2147483647, %v3706
        %vm4312 = vcmp.eq.f32.partialorder %v4311, 8.507059e+37
        %v4313 = vand.u32 %v3706, 2147483648
        %v4314 = vor.u32 1.1754944e-38, %v4313
        %v4315 = vsel %vm4312, %v4314, %v4310
        %v4316 = vmul.f32 1.0, %v4315
        %v4317 = vrcp.pop %v3707
        %v4318 = vmul.f32 %v3707, %v4317
        %v4319 = vsub.f32 1.0, %v4318
        %v4320 = vmul.f32 %v4317, %v4319
        %v4321 = vadd.f32 %v4317, %v4320
        %vm4322 = vweird.f32 %v3707
        %vm4323 = vweird.f32 %v4317
        %vm4324 = vmor %vm4322, %vm4323
        %v4325 = vsel %vm4324, %v4317, %v4321
        %v4326 = vand.u32 2147483647, %v3707
        %vm4327 = vcmp.eq.f32.partialorder %v4326, 8.507059e+37
        %v4328 = vand.u32 %v3707, 2147483648
        %v4329 = vor.u32 1.1754944e-38, %v4328
        %v4330 = vsel %vm4327, %v4329, %v4325
        %v4331 = vmul.f32 1.0, %v4330
        %v4332 = vrcp.pop %v3708
        %v4333 = vmul.f32 %v3708, %v4332
        %v4334 = vsub.f32 1.0, %v4333
        %v4335 = vmul.f32 %v4332, %v4334
        %v4336 = vadd.f32 %v4332, %v4335
        %vm4337 = vweird.f32 %v3708
        %vm4338 = vweird.f32 %v4332
        %vm4339 = vmor %vm4337, %vm4338
        %v4340 = vsel %vm4339, %v4332, %v4336
        %v4341 = vand.u32 2147483647, %v3708
        %vm4342 = vcmp.eq.f32.partialorder %v4341, 8.507059e+37
        %v4343 = vand.u32 %v3708, 2147483648
        %v4344 = vor.u32 1.1754944e-38, %v4343
        %v4345 = vsel %vm4342, %v4344, %v4340
        %v4346 = vmul.f32 1.0, %v4345
        %v4347 = vrcp.pop %v3709
        %v4348 = vmul.f32 %v3709, %v4347
        %v4349 = vsub.f32 1.0, %v4348
        %v4350 = vmul.f32 %v4347, %v4349
        %v4351 = vadd.f32 %v4347, %v4350
        %vm4352 = vweird.f32 %v3709
        %vm4353 = vweird.f32 %v4347
        %vm4354 = vmor %vm4352, %vm4353
        %v4355 = vsel %vm4354, %v4347, %v4351
        %v4356 = vand.u32 2147483647, %v3709
        %vm4357 = vcmp.eq.f32.partialorder %v4356, 8.507059e+37
        %v4358 = vand.u32 %v3709, 2147483648
        %v4359 = vor.u32 1.1754944e-38, %v4358
        %v4360 = vsel %vm4357, %v4359, %v4355
        %v4361 = vmul.f32 1.0, %v4360
        %v4362 = vrcp.pop %v3710
        %v4363 = vmul.f32 %v3710, %v4362
        %v4364 = vsub.f32 1.0, %v4363
        %v4365 = vmul.f32 %v4362, %v4364
        %v4366 = vadd.f32 %v4362, %v4365
        %vm4367 = vweird.f32 %v3710
        %vm4368 = vweird.f32 %v4362
        %vm4369 = vmor %vm4367, %vm4368
        %v4370 = vsel %vm4369, %v4362, %v4366
        %v4371 = vand.u32 2147483647, %v3710
        %vm4372 = vcmp.eq.f32.partialorder %v4371, 8.507059e+37
        %v4373 = vand.u32 %v3710, 2147483648
        %v4374 = vor.u32 1.1754944e-38, %v4373
        %v4375 = vsel %vm4372, %v4374, %v4370
        %v4376 = vmul.f32 1.0, %v4375
        %v4377 = vrcp.pop %v3711
        %v4378 = vmul.f32 %v3711, %v4377
        %v4379 = vsub.f32 1.0, %v4378
        %v4380 = vmul.f32 %v4377, %v4379
        %v4381 = vadd.f32 %v4377, %v4380
        %vm4382 = vweird.f32 %v3711
        %vm4383 = vweird.f32 %v4377
        %vm4384 = vmor %vm4382, %vm4383
        %v4385 = vsel %vm4384, %v4377, %v4381
        %v4386 = vand.u32 2147483647, %v3711
        %vm4387 = vcmp.eq.f32.partialorder %v4386, 8.507059e+37
        %v4388 = vand.u32 %v3711, 2147483648
        %v4389 = vor.u32 1.1754944e-38, %v4388
        %v4390 = vsel %vm4387, %v4389, %v4385
        %v4391 = vmul.f32 1.0, %v4390
        %v4392 = vrcp.pop %v3712
        %v4393 = vmul.f32 %v3712, %v4392
        %v4394 = vsub.f32 1.0, %v4393
        %v4395 = vmul.f32 %v4392, %v4394
        %v4396 = vadd.f32 %v4392, %v4395
        %vm4397 = vweird.f32 %v3712
        %vm4398 = vweird.f32 %v4392
        %vm4399 = vmor %vm4397, %vm4398
        %v4400 = vsel %vm4399, %v4392, %v4396
        %v4401 = vand.u32 2147483647, %v3712
        %vm4402 = vcmp.eq.f32.partialorder %v4401, 8.507059e+37
        %v4403 = vand.u32 %v3712, 2147483648
        %v4404 = vor.u32 1.1754944e-38, %v4403
        %v4405 = vsel %vm4402, %v4404, %v4400
        %v4406 = vmul.f32 1.0, %v4405
        %v4407 = vrcp.pop %v3713
        %v4408 = vmul.f32 %v3713, %v4407
        %v4409 = vsub.f32 1.0, %v4408
        %v4410 = vmul.f32 %v4407, %v4409
        %v4411 = vadd.f32 %v4407, %v4410
        %vm4412 = vweird.f32 %v3713
        %vm4413 = vweird.f32 %v4407
        %vm4414 = vmor %vm4412, %vm4413
        %v4415 = vsel %vm4414, %v4407, %v4411
        %v4416 = vand.u32 2147483647, %v3713
        %vm4417 = vcmp.eq.f32.partialorder %v4416, 8.507059e+37
        %v4418 = vand.u32 %v3713, 2147483648
        %v4419 = vor.u32 1.1754944e-38, %v4418
        %v4420 = vsel %vm4417, %v4419, %v4415
        %v4421 = vmul.f32 1.0, %v4420
        %v4422 = vrcp.pop %v3714
        %v4423 = vmul.f32 %v3714, %v4422
        %v4424 = vsub.f32 1.0, %v4423
        %v4425 = vmul.f32 %v4422, %v4424
        %v4426 = vadd.f32 %v4422, %v4425
        %vm4427 = vweird.f32 %v3714
        %vm4428 = vweird.f32 %v4422
        %vm4429 = vmor %vm4427, %vm4428
        %v4430 = vsel %vm4429, %v4422, %v4426
        %v4431 = vand.u32 2147483647, %v3714
        %vm4432 = vcmp.eq.f32.partialorder %v4431, 8.507059e+37
        %v4433 = vand.u32 %v3714, 2147483648
        %v4434 = vor.u32 1.1754944e-38, %v4433
        %v4435 = vsel %vm4432, %v4434, %v4430
        %v4436 = vmul.f32 1.0, %v4435
        %v4437 = vrcp.pop %v3715
        %v4438 = vmul.f32 %v3715, %v4437
        %v4439 = vsub.f32 1.0, %v4438
        %v4440 = vmul.f32 %v4437, %v4439
        %v4441 = vadd.f32 %v4437, %v4440
        %vm4442 = vweird.f32 %v3715
        %vm4443 = vweird.f32 %v4437
        %vm4444 = vmor %vm4442, %vm4443
        %v4445 = vsel %vm4444, %v4437, %v4441
        %v4446 = vand.u32 2147483647, %v3715
        %vm4447 = vcmp.eq.f32.partialorder %v4446, 8.507059e+37
        %v4448 = vand.u32 %v3715, 2147483648
        %v4449 = vor.u32 1.1754944e-38, %v4448
        %v4450 = vsel %vm4447, %v4449, %v4445
        %v4451 = vmul.f32 1.0, %v4450
        %v4452 = vrcp.pop %v3716
        %v4453 = vmul.f32 %v3716, %v4452
        %v4454 = vsub.f32 1.0, %v4453
        %v4455 = vmul.f32 %v4452, %v4454
        %v4456 = vadd.f32 %v4452, %v4455
        %vm4457 = vweird.f32 %v3716
        %vm4458 = vweird.f32 %v4452
        %vm4459 = vmor %vm4457, %vm4458
        %v4460 = vsel %vm4459, %v4452, %v4456
        %v4461 = vand.u32 2147483647, %v3716
        %vm4462 = vcmp.eq.f32.partialorder %v4461, 8.507059e+37
        %v4463 = vand.u32 %v3716, 2147483648
        %v4464 = vor.u32 1.1754944e-38, %v4463
        %v4465 = vsel %vm4462, %v4464, %v4460
        %v4466 = vmul.f32 1.0, %v4465
        %v4467 = vrcp.pop %v3717
        %v4468 = vmul.f32 %v3717, %v4467
        %v4469 = vsub.f32 1.0, %v4468
        %v4470 = vmul.f32 %v4467, %v4469
        %v4471 = vadd.f32 %v4467, %v4470
        %vm4472 = vweird.f32 %v3717
        %vm4473 = vweird.f32 %v4467
        %vm4474 = vmor %vm4472, %vm4473
        %v4475 = vsel %vm4474, %v4467, %v4471
        %v4476 = vand.u32 2147483647, %v3717
        %vm4477 = vcmp.eq.f32.partialorder %v4476, 8.507059e+37
        %v4478 = vand.u32 %v3717, 2147483648
        %v4479 = vor.u32 1.1754944e-38, %v4478
        %v4480 = vsel %vm4477, %v4479, %v4475
        %v4481 = vmul.f32 1.0, %v4480
        %v4482 = vrcp.pop %v3718
        %v4483 = vmul.f32 %v3718, %v4482
        %v4484 = vsub.f32 1.0, %v4483
        %v4485 = vmul.f32 %v4482, %v4484
        %v4486 = vadd.f32 %v4482, %v4485
        %vm4487 = vweird.f32 %v3718
        %vm4488 = vweird.f32 %v4482
        %vm4489 = vmor %vm4487, %vm4488
        %v4490 = vsel %vm4489, %v4482, %v4486
        %v4491 = vand.u32 2147483647, %v3718
        %vm4492 = vcmp.eq.f32.partialorder %v4491, 8.507059e+37
        %v4493 = vand.u32 %v3718, 2147483648
        %v4494 = vor.u32 1.1754944e-38, %v4493
        %v4495 = vsel %vm4492, %v4494, %v4490
        %v4496 = vmul.f32 1.0, %v4495
        %v4497 = vrcp.pop %v3719
        %v4498 = vmul.f32 %v3719, %v4497
        %v4499 = vsub.f32 1.0, %v4498
        %v4500 = vmul.f32 %v4497, %v4499
        %v4501 = vadd.f32 %v4497, %v4500
        %vm4502 = vweird.f32 %v3719
        %vm4503 = vweird.f32 %v4497
        %vm4504 = vmor %vm4502, %vm4503
        %v4505 = vsel %vm4504, %v4497, %v4501
        %v4506 = vand.u32 2147483647, %v3719
        %vm4507 = vcmp.eq.f32.partialorder %v4506, 8.507059e+37
        %v4508 = vand.u32 %v3719, 2147483648
        %v4509 = vor.u32 1.1754944e-38, %v4508
        %v4510 = vsel %vm4507, %v4509, %v4505
        %v4511 = vmul.f32 1.0, %v4510
        %v4512 = vrcp.pop %v3720
        %v4513 = vmul.f32 %v3720, %v4512
        %v4514 = vsub.f32 1.0, %v4513
        %v4515 = vmul.f32 %v4512, %v4514
        %v4516 = vadd.f32 %v4512, %v4515
        %vm4517 = vweird.f32 %v3720
        %vm4518 = vweird.f32 %v4512
        %vm4519 = vmor %vm4517, %vm4518
        %v4520 = vsel %vm4519, %v4512, %v4516
        %v4521 = vand.u32 2147483647, %v3720
        %vm4522 = vcmp.eq.f32.partialorder %v4521, 8.507059e+37
        %v4523 = vand.u32 %v3720, 2147483648
        %v4524 = vor.u32 1.1754944e-38, %v4523
        %v4525 = vsel %vm4522, %v4524, %v4520
        %v4526 = vmul.f32 1.0, %v4525
        %v4527 = vrcp.pop %v3721
        %v4528 = vmul.f32 %v3721, %v4527
        %v4529 = vsub.f32 1.0, %v4528
        %v4530 = vmul.f32 %v4527, %v4529
        %v4531 = vadd.f32 %v4527, %v4530
        %vm4532 = vweird.f32 %v3721
        %vm4533 = vweird.f32 %v4527
        %vm4534 = vmor %vm4532, %vm4533
        %v4535 = vsel %vm4534, %v4527, %v4531
        %v4536 = vand.u32 2147483647, %v3721
        %vm4537 = vcmp.eq.f32.partialorder %v4536, 8.507059e+37
        %v4538 = vand.u32 %v3721, 2147483648
        %v4539 = vor.u32 1.1754944e-38, %v4538
        %v4540 = vsel %vm4537, %v4539, %v4535
        %v4541 = vmul.f32 1.0, %v4540
        %v4542 = vrcp.pop %v3722
        %v4543 = vmul.f32 %v3722, %v4542
        %v4544 = vsub.f32 1.0, %v4543
        %v4545 = vmul.f32 %v4542, %v4544
        %v4546 = vadd.f32 %v4542, %v4545
        %vm4547 = vweird.f32 %v3722
        %vm4548 = vweird.f32 %v4542
        %vm4549 = vmor %vm4547, %vm4548
        %v4550 = vsel %vm4549, %v4542, %v4546
        %v4551 = vand.u32 2147483647, %v3722
        %vm4552 = vcmp.eq.f32.partialorder %v4551, 8.507059e+37
        %v4553 = vand.u32 %v3722, 2147483648
        %v4554 = vor.u32 1.1754944e-38, %v4553
        %v4555 = vsel %vm4552, %v4554, %v4550
        %v4556 = vmul.f32 1.0, %v4555
        %v4557 = vrcp.pop %v3723
        %v4558 = vmul.f32 %v3723, %v4557
        %v4559 = vsub.f32 1.0, %v4558
        %v4560 = vmul.f32 %v4557, %v4559
        %v4561 = vadd.f32 %v4557, %v4560
        %vm4562 = vweird.f32 %v3723
        %vm4563 = vweird.f32 %v4557
        %vm4564 = vmor %vm4562, %vm4563
        %v4565 = vsel %vm4564, %v4557, %v4561
        %v4566 = vand.u32 2147483647, %v3723
        %vm4567 = vcmp.eq.f32.partialorder %v4566, 8.507059e+37
        %v4568 = vand.u32 %v3723, 2147483648
        %v4569 = vor.u32 1.1754944e-38, %v4568
        %v4570 = vsel %vm4567, %v4569, %v4565
        %v4571 = vmul.f32 1.0, %v4570
        %v4572 = vrcp.pop %v3724
        %v4573 = vmul.f32 %v3724, %v4572
        %v4574 = vsub.f32 1.0, %v4573
        %v4575 = vmul.f32 %v4572, %v4574
        %v4576 = vadd.f32 %v4572, %v4575
        %vm4577 = vweird.f32 %v3724
        %vm4578 = vweird.f32 %v4572
        %vm4579 = vmor %vm4577, %vm4578
        %v4580 = vsel %vm4579, %v4572, %v4576
        %v4581 = vand.u32 2147483647, %v3724
        %vm4582 = vcmp.eq.f32.partialorder %v4581, 8.507059e+37
        %v4583 = vand.u32 %v3724, 2147483648
        %v4584 = vor.u32 1.1754944e-38, %v4583
        %v4585 = vsel %vm4582, %v4584, %v4580
        %v4586 = vmul.f32 1.0, %v4585
        %v4587 = vrcp.pop %v3725
        %v4588 = vmul.f32 %v3725, %v4587
        %v4589 = vsub.f32 1.0, %v4588
        %v4590 = vmul.f32 %v4587, %v4589
        %v4591 = vadd.f32 %v4587, %v4590
        %vm4592 = vweird.f32 %v3725
        %vm4593 = vweird.f32 %v4587
        %vm4594 = vmor %vm4592, %vm4593
        %v4595 = vsel %vm4594, %v4587, %v4591
        %v4596 = vand.u32 2147483647, %v3725
        %vm4597 = vcmp.eq.f32.partialorder %v4596, 8.507059e+37
        %v4598 = vand.u32 %v3725, 2147483648
        %v4599 = vor.u32 1.1754944e-38, %v4598
        %v4600 = vsel %vm4597, %v4599, %v4595
        %v4601 = vmul.f32 1.0, %v4600
        %v4602 = vrcp.pop %v3726
        %v4603 = vmul.f32 %v3726, %v4602
        %v4604 = vsub.f32 1.0, %v4603
        %v4605 = vmul.f32 %v4602, %v4604
        %v4606 = vadd.f32 %v4602, %v4605
        %vm4607 = vweird.f32 %v3726
        %vm4608 = vweird.f32 %v4602
        %vm4609 = vmor %vm4607, %vm4608
        %v4610 = vsel %vm4609, %v4602, %v4606
        %v4611 = vand.u32 2147483647, %v3726
        %vm4612 = vcmp.eq.f32.partialorder %v4611, 8.507059e+37
        %v4613 = vand.u32 %v3726, 2147483648
        %v4614 = vor.u32 1.1754944e-38, %v4613
        %v4615 = vsel %vm4612, %v4614, %v4610
        %v4616 = vmul.f32 1.0, %v4615
        %v4617 = vrcp.pop %v3727
        %v4618 = vmul.f32 %v3727, %v4617
        %v4619 = vsub.f32 1.0, %v4618
        %v4620 = vmul.f32 %v4617, %v4619
        %v4621 = vadd.f32 %v4617, %v4620
        %vm4622 = vweird.f32 %v3727
        %vm4623 = vweird.f32 %v4617
        %vm4624 = vmor %vm4622, %vm4623
        %v4625 = vsel %vm4624, %v4617, %v4621
        %v4626 = vand.u32 2147483647, %v3727
        %vm4627 = vcmp.eq.f32.partialorder %v4626, 8.507059e+37
        %v4628 = vand.u32 %v3727, 2147483648
        %v4629 = vor.u32 1.1754944e-38, %v4628
        %v4630 = vsel %vm4627, %v4629, %v4625
        %v4631 = vmul.f32 1.0, %v4630
        %v4632 = vrcp.pop %v3728
        %v4633 = vmul.f32 %v3728, %v4632
        %v4634 = vsub.f32 1.0, %v4633
        %v4635 = vmul.f32 %v4632, %v4634
        %v4636 = vadd.f32 %v4632, %v4635
        %vm4637 = vweird.f32 %v3728
        %vm4638 = vweird.f32 %v4632
        %vm4639 = vmor %vm4637, %vm4638
        %v4640 = vsel %vm4639, %v4632, %v4636
        %v4641 = vand.u32 2147483647, %v3728
        %vm4642 = vcmp.eq.f32.partialorder %v4641, 8.507059e+37
        %v4643 = vand.u32 %v3728, 2147483648
        %v4644 = vor.u32 1.1754944e-38, %v4643
        %v4645 = vsel %vm4642, %v4644, %v4640
        %v4646 = vmul.f32 1.0, %v4645
        %v4647 = vrcp.pop %v3729
        %v4648 = vmul.f32 %v3729, %v4647
        %v4649 = vsub.f32 1.0, %v4648
        %v4650 = vmul.f32 %v4647, %v4649
        %v4651 = vadd.f32 %v4647, %v4650
        %vm4652 = vweird.f32 %v3729
        %vm4653 = vweird.f32 %v4647
        %vm4654 = vmor %vm4652, %vm4653
        %v4655 = vsel %vm4654, %v4647, %v4651
        %v4656 = vand.u32 2147483647, %v3729
        %vm4657 = vcmp.eq.f32.partialorder %v4656, 8.507059e+37
        %v4658 = vand.u32 %v3729, 2147483648
        %v4659 = vor.u32 1.1754944e-38, %v4658
        %v4660 = vsel %vm4657, %v4659, %v4655
        %v4661 = vmul.f32 1.0, %v4660
        %v4662 = vrcp.pop %v3730
        %v4663 = vmul.f32 %v3730, %v4662
        %v4664 = vsub.f32 1.0, %v4663
        %v4665 = vmul.f32 %v4662, %v4664
        %v4666 = vadd.f32 %v4662, %v4665
        %vm4667 = vweird.f32 %v3730
        %vm4668 = vweird.f32 %v4662
        %vm4669 = vmor %vm4667, %vm4668
        %v4670 = vsel %vm4669, %v4662, %v4666
        %v4671 = vand.u32 2147483647, %v3730
        %vm4672 = vcmp.eq.f32.partialorder %v4671, 8.507059e+37
        %v4673 = vand.u32 %v3730, 2147483648
        %v4674 = vor.u32 1.1754944e-38, %v4673
        %v4675 = vsel %vm4672, %v4674, %v4670
        %v4676 = vmul.f32 1.0, %v4675
        %v4677 = vrcp.pop %v3731
        %v4678 = vmul.f32 %v3731, %v4677
        %v4679 = vsub.f32 1.0, %v4678
        %v4680 = vmul.f32 %v4677, %v4679
        %v4681 = vadd.f32 %v4677, %v4680
        %vm4682 = vweird.f32 %v3731
        %vm4683 = vweird.f32 %v4677
        %vm4684 = vmor %vm4682, %vm4683
        %v4685 = vsel %vm4684, %v4677, %v4681
        %v4686 = vand.u32 2147483647, %v3731
        %vm4687 = vcmp.eq.f32.partialorder %v4686, 8.507059e+37
        %v4688 = vand.u32 %v3731, 2147483648
        %v4689 = vor.u32 1.1754944e-38, %v4688
        %v4690 = vsel %vm4687, %v4689, %v4685
        %v4691 = vmul.f32 1.0, %v4690
        %vm4692 = vcmask 7168
        %4693 = vst.msk [vmem:[%s489] sm:$0xff] %vm4692, %v3746
        %4694 = vst.msk [vmem:[%s489 + $0x8] sm:$0xff] %vm4692, %v3761
        %4695 = vst.msk [vmem:[%s489 + $0x10] sm:$0xff] %vm4692, %v3776
        %4696 = vst.msk [vmem:[%s489 + $0x18] sm:$0xff] %vm4692, %v3791
        %4697 = vst.msk [vmem:[%s489 + $0x20] sm:$0xff] %vm4692, %v3806
        %4698 = vst.msk [vmem:[%s489 + $0x28] sm:$0xff] %vm4692, %v3821
        %4699 = vst.msk [vmem:[%s489 + $0x30] sm:$0xff] %vm4692, %v3836
        %4700 = vst.msk [vmem:[%s489 + $0x38] sm:$0xff] %vm4692, %v3851
        %4701 = vst.msk [vmem:[%s489 + $0x40] sm:$0xff] %vm4692, %v3866
        %4702 = vst.msk [vmem:[%s489 + $0x48] sm:$0xff] %vm4692, %v3881
        %4703 = vst.msk [vmem:[%s489 + $0x50] sm:$0xff] %vm4692, %v3896
        %4704 = vst.msk [vmem:[%s489 + $0x58] sm:$0xff] %vm4692, %v3911
        %4705 = vst.msk [vmem:[%s489 + $0x60] sm:$0xff] %vm4692, %v3926
        %4706 = vst.msk [vmem:[%s489 + $0x68] sm:$0xff] %vm4692, %v3941
        %4707 = vst.msk [vmem:[%s489 + $0x70] sm:$0xff] %vm4692, %v3956
        %4708 = vst.msk [vmem:[%s489 + $0x78] sm:$0xff] %vm4692, %v3971
        %4709 = vst.msk [vmem:[%s489 + $0x80] sm:$0xff] %vm4692, %v3986
        %4710 = vst.msk [vmem:[%s489 + $0x88] sm:$0xff] %vm4692, %v4001
        %4711 = vst.msk [vmem:[%s489 + $0x90] sm:$0xff] %vm4692, %v4016
        %4712 = vst.msk [vmem:[%s489 + $0x98] sm:$0xff] %vm4692, %v4031
        %4713 = vst.msk [vmem:[%s489 + $0xa0] sm:$0xff] %vm4692, %v4046
        %4714 = vst.msk [vmem:[%s489 + $0xa8] sm:$0xff] %vm4692, %v4061
        %4715 = vst.msk [vmem:[%s489 + $0xb0] sm:$0xff] %vm4692, %v4076
        %4716 = vst.msk [vmem:[%s489 + $0xb8] sm:$0xff] %vm4692, %v4091
        %4717 = vst.msk [vmem:[%s489 + $0xc0] sm:$0xff] %vm4692, %v4106
        %4718 = vst.msk [vmem:[%s489 + $0xc8] sm:$0xff] %vm4692, %v4121
        %4719 = vst.msk [vmem:[%s489 + $0xd0] sm:$0xff] %vm4692, %v4136
        %4720 = vst.msk [vmem:[%s489 + $0xd8] sm:$0xff] %vm4692, %v4151
        %4721 = vst.msk [vmem:[%s489 + $0xe0] sm:$0xff] %vm4692, %v4166
        %4722 = vst.msk [vmem:[%s489 + $0xe8] sm:$0xff] %vm4692, %v4181
        %4723 = vst.msk [vmem:[%s489 + $0xf0] sm:$0xff] %vm4692, %v4196
        %4724 = vst.msk [vmem:[%s489 + $0xf8] sm:$0xff] %vm4692, %v4211
        %4725 = vst.msk [vmem:[%s489 + $0x100] sm:$0xff] %vm4692, %v4226
        %4726 = vst.msk [vmem:[%s489 + $0x108] sm:$0xff] %vm4692, %v4241
        %4727 = vst.msk [vmem:[%s489 + $0x110] sm:$0xff] %vm4692, %v4256
        %4728 = vst.msk [vmem:[%s489 + $0x118] sm:$0xff] %vm4692, %v4271
        %4729 = vst.msk [vmem:[%s489 + $0x120] sm:$0xff] %vm4692, %v4286
        %4730 = vst.msk [vmem:[%s489 + $0x128] sm:$0xff] %vm4692, %v4301
        %4731 = vst.msk [vmem:[%s489 + $0x130] sm:$0xff] %vm4692, %v4316
        %4732 = vst.msk [vmem:[%s489 + $0x138] sm:$0xff] %vm4692, %v4331
        %4733 = vst.msk [vmem:[%s489 + $0x140] sm:$0xff] %vm4692, %v4346
        %4734 = vst.msk [vmem:[%s489 + $0x148] sm:$0xff] %vm4692, %v4361
        %4735 = vst.msk [vmem:[%s489 + $0x150] sm:$0xff] %vm4692, %v4376
        %4736 = vst.msk [vmem:[%s489 + $0x158] sm:$0xff] %vm4692, %v4391
        %4737 = vst.msk [vmem:[%s489 + $0x160] sm:$0xff] %vm4692, %v4406
        %4738 = vst.msk [vmem:[%s489 + $0x168] sm:$0xff] %vm4692, %v4421
        %4739 = vst.msk [vmem:[%s489 + $0x170] sm:$0xff] %vm4692, %v4436
        %4740 = vst.msk [vmem:[%s489 + $0x178] sm:$0xff] %vm4692, %v4451
        %4741 = vst.msk [vmem:[%s489 + $0x180] sm:$0xff] %vm4692, %v4466
        %4742 = vst.msk [vmem:[%s489 + $0x188] sm:$0xff] %vm4692, %v4481
        %4743 = vst.msk [vmem:[%s489 + $0x190] sm:$0xff] %vm4692, %v4496
        %4744 = vst.msk [vmem:[%s489 + $0x198] sm:$0xff] %vm4692, %v4511
        %4745 = vst.msk [vmem:[%s489 + $0x1a0] sm:$0xff] %vm4692, %v4526
        %4746 = vst.msk [vmem:[%s489 + $0x1a8] sm:$0xff] %vm4692, %v4541
        %4747 = vst.msk [vmem:[%s489 + $0x1b0] sm:$0xff] %vm4692, %v4556
        %4748 = vst.msk [vmem:[%s489 + $0x1b8] sm:$0xff] %vm4692, %v4571
        %4749 = vst.msk [vmem:[%s489 + $0x1c0] sm:$0xff] %vm4692, %v4586
        %4750 = vst.msk [vmem:[%s489 + $0x1c8] sm:$0xff] %vm4692, %v4601
        %4751 = vst.msk [vmem:[%s489 + $0x1d0] sm:$0xff] %vm4692, %v4616
        %4752 = vst.msk [vmem:[%s489 + $0x1d8] sm:$0xff] %vm4692, %v4631
        %4753 = vst.msk [vmem:[%s489 + $0x1e0] sm:$0xff] %vm4692, %v4646
        %4754 = vst.msk [vmem:[%s489 + $0x1e8] sm:$0xff] %vm4692, %v4661
        %4755 = vst.msk [vmem:[%s489 + $0x1f0] sm:$0xff] %vm4692, %v4676
        %4756 = vst.msk [vmem:[%s489 + $0x1f8] sm:$0xff] %vm4692, %v4691
      $region92: #{tpu_custom_call.1} parent=67 // pred_fallthru
        _
      %p4757 = scmp.eq.s32.totalorder %s31, 2
      %s4758 = scalar_select %p4757, %s32, 0
      %s4759 = smul.u32 64, %s4758
      %p4760 = scmp.lt.s32.totalorder %s4759, 127
      %s4761 = scalar_select %p4760, %s4759, 127
      %s4762 = smul.addr %s4761, 8
      %s4763 = scalar_lea.vmem %s12, %s4762
      // Predicated region
      $region93: #{tpu_custom_call.1} parent=67 // pred_check
        %p4764 = pneg %p331
      $region94: #{tpu_custom_call.1} parent=67 // pred_check_branch
        %4766 = sbr.rel (%p4764) target = $region96
      $region95: #{tpu_custom_call.1} parent=67 // pred_region
        %p4767 = scmp.eq.s32.totalorder %s31, 2
        %s4768 = scalar_select %p4767, %s32, 0
        %s4769 = smul.u32 64, %s4768
      $region96: #{tpu_custom_call.1} parent=67 // pred_fallthru
        _
    $region68: #{tpu_custom_call.1} parent=5 // pred_fallthru
      _
    %p4770 = scmp.le.s32.totalorder 2, %s22
    // Predicated region
    $region97: #{tpu_custom_call.1} parent=5 // pred_check
      %p4771 = pneg %p4770
    $region98: #{tpu_custom_call.1} parent=5 // pred_check_branch
      %4773 = sbr.rel (%p4771) target = $region100
    $region99: #{tpu_custom_call.1} parent=5 // pred_region
      %s4774 = ssub.s32 %s22, 2
      // Predicated region
      $region101: #{tpu_custom_call.1} parent=99 // pred_check
        %p4775 = pneg %p337
      $region102: #{tpu_custom_call.1} parent=99 // pred_check_branch
        %4777 = sbr.rel (%p4775) target = $region104
      $region103: #{tpu_custom_call.1} parent=99 // pred_region
        %p4778 = scmp.eq.s32.totalorder %s33, 2
        %s4779 = scalar_select %p4778, %s34, 0
        %s4780 = smul.u32 64, %s4779
        %p4781 = scmp.lt.s32.totalorder %s4780, 127
        %s4782 = scalar_select %p4781, %s4780, 127
        %s4783 = smul.addr %s4782, 8
        %s4784 = scalar_lea.vmem %s12, %s4783
      $region104: #{tpu_custom_call.1} parent=99 // pred_fallthru
        _
    $region100: #{tpu_custom_call.1} parent=5 // pred_fallthru
      _
  $region6: #{tpu_custom_call.1} parent=0 // loop_footer
    %s26 = sadd.s32 1, %s22
  $region7: #{tpu_custom_call.1} parent=0 // loop_footer_branch
    %21 = sbr.rel target = $region3
  $region8: #{tpu_custom_call.1} parent=0 // loop_exit
    _

</llo_original>
